<compile_context>
chip_gen: v7x
topology: tpu7x:2x2x1
jax: 0.10.0
libtpu: 0.0.40
codegen_flags: <defaults>
</compile_context>

<pallas_src>
import functools

import jax
import jax.numpy as jnp
from jax.experimental import pallas as pl
from jax.experimental.pallas import tpu as pltpu


# ---------------------------------------------------------------------------
# Kernel A: fused conv1x1 chain + global max-pool over points.
# ---------------------------------------------------------------------------
def _conv_pool_kernel(x_ref, w1t_ref, b1_ref, w2_ref, b2_ref, w3_ref, b3_ref,
                      g_ref):
    # x_ref: (1, k, n_tile) bf16 (channels on sublanes, points on lanes).
    # g_ref: (1, 1, 1024) f32 — resident across the points (reduction) axis.
    n_step = pl.program_id(1)

    x = x_ref[0]                                                  # (k, n_tile)

    # conv1 (+ folded bn1) + relu, channel-major; then ONE XLU transpose.
    h = jnp.dot(w1t_ref[...], x,
                preferred_element_type=jnp.float32) + b1_ref[...]  # (64, n)
    h = jnp.maximum(h, 0.0)
    h = jnp.transpose(h.astype(jnp.bfloat16))                      # (n, 64)

    # conv2 (+ bn2) + relu -> (n_tile, 128)
    h = jnp.dot(h, w2_ref[...],
                preferred_element_type=jnp.float32) + b2_ref[...]
    h = jnp.maximum(h, 0.0)

    # conv3 (+ bn3) + relu -> (n_tile, 1024)
    h = jnp.dot(h.astype(jnp.bfloat16), w3_ref[...],
                preferred_element_type=jnp.float32) + b3_ref[...]
    h = jnp.maximum(h, 0.0)

    # Partial max over this chunk of points (sublane reduction -> lane-dense).
    part = jnp.max(h, axis=0, keepdims=True)[None]                 # (1,1,1024)

    @pl.when(n_step == 0)
    def _():
        g_ref[...] = part

    @pl.when(n_step > 0)
    def _():
        g_ref[...] = jnp.maximum(g_ref[...], part)


# ---------------------------------------------------------------------------
# Kernel B: fc1 -> fc2 -> fc3 over the whole batch (M = B), run once.
# ---------------------------------------------------------------------------
def _fc_kernel(g_ref, w4_ref, b4_ref, w5_ref, b5_ref, w6_ref, b6_ref, o_ref):
    f = jnp.dot(g_ref[...].astype(jnp.bfloat16), w4_ref[...],
                preferred_element_type=jnp.float32) + b4_ref[...]   # (B, 512)
    f = jnp.maximum(f, 0.0)
    f = jnp.dot(f.astype(jnp.bfloat16), w5_ref[...],
                preferred_element_type=jnp.float32) + b5_ref[...]   # (B, 256)
    f = jnp.maximum(f, 0.0)
    o_ref[...] = jnp.dot(f.astype(jnp.bfloat16), w6_ref[...],
                         preferred_element_type=jnp.float32) + b6_ref[...]


# ---------------------------------------------------------------------------
# Parameter construction / BN folding.
# ---------------------------------------------------------------------------
def _fold_bn(w, b, gamma, beta, mean, var, eps=1e-5):
    """Fold eval-mode BatchNorm into a linear layer (right-multiply weight)."""
    scale = gamma / jnp.sqrt(var + eps)
    shift = beta - mean * scale
    return w * scale[None, :], b * scale + shift


def make_tnet_params(k=3, seed=0, dtype=jnp.float32):
    """Deterministic synthetic parameters, BN folded into each layer (f32)."""
    key = jax.random.PRNGKey(seed)
    dims = [(k, 64), (64, 128), (128, 1024), (1024, 512), (512, 256), (256, k * k)]
    params = []
    for i, (cin, cout) in enumerate(dims):
        key, kw, kb, kg, kbeta, km, kv = jax.random.split(key, 7)
        w = jax.random.normal(kw, (cin, cout), dtype) * 0.05
        b = jax.random.normal(kb, (cout,), dtype) * 0.05
        if i < 5:  # layers followed by a BatchNorm in the torch module
            gamma = 1.0 + 0.1 * jax.random.normal(kg, (cout,), dtype)
            beta = 0.1 * jax.random.normal(kbeta, (cout,), dtype)
            mean = 0.1 * jax.random.normal(km, (cout,), dtype)
            var = 1.0 + 0.1 * jax.random.uniform(kv, (cout,), dtype)
            w, b = _fold_bn(w, b, gamma, beta, mean, var)
        params.append((w, b.reshape(1, cout)))
    return params


# ---------------------------------------------------------------------------
# Tiling / VMEM heuristics (generation-aware).
# ---------------------------------------------------------------------------
def _vmem_limit_bytes():
    cap = 64 * 1024 * 1024          # conservative fallback = v7x per-core VMEM
    try:
        cap = int(pltpu.get_tpu_info().vmem_capacity_bytes)
    except Exception:
        pass
    # ~70% of capacity, capped: ~45 MiB on v7x (64 MiB), ~90 MiB on v5e/v6e.
    return min(int(cap * 0.7), 96 * 1024 * 1024)


def _choose_n_tile(N, vmem_limit_bytes):
    """Largest points-chunk whose live f32 activations fit ~half the VMEM limit."""
    per_point_bytes = 6 * 1024      # h3(4K) + h2(0.5K) + h1/h1T + slack per point
    budget = vmem_limit_bytes // 2
    n_max = min(max(budget // per_point_bytes, 128), 8192)
    if N <= n_max:
        return N
    t = (n_max // 128) * 128
    while t >= 128:                 # multiples of 128 keep blocks lane-dense
        if N % t == 0:
            return t
        t -= 128
    # TODO(synk): N with no multiple-of-128 divisor <= n_max falls back to one
    # full-length chunk rather than padding the max-pool input.
    return N


# ---------------------------------------------------------------------------
# pallas_call wrappers.
# ---------------------------------------------------------------------------
def _conv_pool_call(x, w1t, b1, w2, b2, w3, b3, *, n_tile, vmem_limit):
    B, k, N = x.shape
    grid = (B, N // n_tile)
    flops = int(2 * B * N * (k * 64 + 64 * 128 + 128 * 1024))
    bytes_accessed = int(x.size * x.dtype.itemsize
                         + sum(a.size * a.dtype.itemsize
                               for a in (w1t, b1, w2, b2, w3, b3))
                         + B * 1024 * 4)
    return pl.pallas_call(
        _conv_pool_kernel,
        out_shape=jax.ShapeDtypeStruct((B, 1, 1024), jnp.float32),
        grid_spec=pltpu.PrefetchScalarGridSpec(
            num_scalar_prefetch=0,
            grid=grid,
            in_specs=[
                pl.BlockSpec((1, k, n_tile), lambda b, n: (b, 0, n)),
                pl.BlockSpec(w1t.shape, lambda b, n: (0, 0)),
                pl.BlockSpec(b1.shape, lambda b, n: (0, 0)),
                pl.BlockSpec(w2.shape, lambda b, n: (0, 0)),
                pl.BlockSpec(b2.shape, lambda b, n: (0, 0)),
                pl.BlockSpec(w3.shape, lambda b, n: (0, 0)),
                pl.BlockSpec(b3.shape, lambda b, n: (0, 0)),
            ],
            out_specs=pl.BlockSpec((1, 1, 1024), lambda b, n: (b, 0, 0)),
        ),
        compiler_params=pltpu.CompilerParams(
            dimension_semantics=("parallel", "arbitrary"),
            vmem_limit_bytes=vmem_limit),
        cost_estimate=pl.CostEstimate(
            flops=flops, transcendentals=0, bytes_accessed=bytes_accessed),
    )(x, w1t, b1, w2, b2, w3, b3)


def _fc_call(g, w4, b4, w5, b5, w6, b6, *, vmem_limit):
    B = g.shape[0]
    out_w = w6.shape[1]
    flops = int(2 * B * (1024 * 512 + 512 * 256 + 256 * out_w))
    bytes_accessed = int(g.size * g.dtype.itemsize
                         + sum(a.size * a.dtype.itemsize
                               for a in (w4, b4, w5, b5, w6, b6))
                         + B * out_w * 4)
    args = (g, w4, b4, w5, b5, w6, b6)
    return pl.pallas_call(
        _fc_kernel,
        out_shape=jax.ShapeDtypeStruct((B, out_w), jnp.float32),
        grid_spec=pltpu.PrefetchScalarGridSpec(
            num_scalar_prefetch=0,
            grid=(1,),
            in_specs=[pl.BlockSpec(a.shape, lambda i: (0, 0)) for a in args],
            out_specs=pl.BlockSpec((B, out_w), lambda i: (0, 0)),
        ),
        compiler_params=pltpu.CompilerParams(
            dimension_semantics=("arbitrary",),
            vmem_limit_bytes=vmem_limit),
        cost_estimate=pl.CostEstimate(
            flops=flops, transcendentals=0, bytes_accessed=bytes_accessed),
    )(*args)


@functools.partial(jax.jit, static_argnames=("k",))
def tnet_forward(x_bkn, params, k=3):
    """x_bkn: (B, k, N) float32 in torch NCW layout.  Returns (B, k, k)."""
    B, kk_, N = x_bkn.shape
    assert kk_ == k

    # Keep NCW layout (lane-dense blocks, no wrapper transpose); bf16 DMA.
    x = x_bkn.astype(jnp.bfloat16)

    vmem_limit = _vmem_limit_bytes()
    n_tile = _choose_n_tile(N, vmem_limit)

    (w1, b1), (w2, b2), (w3, b3), (w4, b4), (w5, b5), (w6, b6) = params

    # conv stage operands: w1 transposed to channel-major, b1 as a column.
    w1t = jnp.transpose(w1).astype(jnp.bfloat16)          # (64, k)
    b1c = b1.reshape(-1, 1).astype(jnp.float32)           # (64, 1)

    g = _conv_pool_call(
        x, w1t, b1c,
        w2.astype(jnp.bfloat16), b2.astype(jnp.float32),
        w3.astype(jnp.bfloat16), b3.astype(jnp.float32),
        n_tile=n_tile, vmem_limit=vmem_limit)
    g = g.reshape(B, 1024)                                 # pooled features

    # fc3: fold identity into the bias, pad to a lane-dense output width.
    kk = k * k
    out_w = max(128, ((kk + 127) // 128) * 128)
    b6i = b6.reshape(1, kk).astype(jnp.float32) + \
        jnp.eye(k, dtype=jnp.float32).reshape(1, kk)
    w6p = jnp.zeros((w6.shape[0], out_w), jnp.bfloat16).at[:, :kk].set(
        w6.astype(jnp.bfloat16))
    b6p = jnp.zeros((1, out_w), jnp.float32).at[:, :kk].set(b6i)

    out = _fc_call(
        g,
        w4.astype(jnp.bfloat16), b4.astype(jnp.float32),
        w5.astype(jnp.bfloat16), b5.astype(jnp.float32),
        w6p, b6p, vmem_limit=vmem_limit)

    return out[:, :kk].reshape(B, k, k)


# ---------------------------------------------------------------------------
# Pure-JAX reference (mirrors the kernel's bf16-operand / f32-accumulate math).
# ---------------------------------------------------------------------------
def _reference_forward(x_bkn, params, k=3):
    B, _, N = x_bkn.shape
    x = jnp.transpose(x_bkn, (0, 2, 1)).astype(jnp.float32).reshape(B * N, k)
    h = x
    for (w, b) in params[:3]:
        h = jnp.dot(h.astype(jnp.bfloat16), w.astype(jnp.bfloat16),
                    preferred_element_type=jnp.float32) + b
        h = jnp.maximum(h, 0.0)
    g = jnp.max(h.reshape(B, N, -1), axis=1)               # (B, 1024)
    f = g
    for (w, b) in params[3:5]:
        f = jnp.dot(f.astype(jnp.bfloat16), w.astype(jnp.bfloat16),
                    preferred_element_type=jnp.float32) + b
        f = jnp.maximum(f, 0.0)
    w, b = params[5]
    out = jnp.dot(f.astype(jnp.bfloat16), w.astype(jnp.bfloat16),
                  preferred_element_type=jnp.float32) + b
    out = out + jnp.eye(k, dtype=jnp.float32).reshape(1, k * k)
    return out.reshape(B, k, k)


if __name__ == "__main__":
    B, k, N = 2, 3, 256
    key = jax.random.PRNGKey(0)
    x = jax.random.normal(key, (B, k, N), jnp.float32)     # torch NCW layout

    params = make_tnet_params(k=k, seed=0)

    y = tnet_forward(x, params, k=k)
    y = jax.block_until_ready(y)

    y_ref = _reference_forward(x, params, k=k)
    assert y.shape == (B, k, k)
    assert jnp.allclose(y, y_ref, atol=1e-3, rtol=1e-3), "mismatch vs reference"

    print("KERNEL_OK")
</pallas_src>

<mosaic_0001>
module attributes {stable_mosaic.version = 11 : i64} {
  func.func @_conv_pool_kernel(%arg0: i32, %arg1: i32, %arg2: memref<1x3x256xbf16, #tpu.memory_space<vmem>>, %arg3: memref<64x3xbf16, #tpu.memory_space<vmem>>, %arg4: memref<64x1xf32, #tpu.memory_space<vmem>>, %arg5: memref<64x128xbf16, #tpu.memory_space<vmem>>, %arg6: memref<1x128xf32, #tpu.memory_space<vmem>>, %arg7: memref<128x1024xbf16, #tpu.memory_space<vmem>>, %arg8: memref<1x1024xf32, #tpu.memory_space<vmem>>, %arg9: memref<1x1x1024xf32, #tpu.memory_space<vmem>>) attributes {dimension_semantics = [#tpu.dimension_semantics<parallel>, #tpu.dimension_semantics<arbitrary>], iteration_bounds = array<i64: 2, 1>, scalar_prefetch = 0 : i64, scratch_operands = 0 : i64, tpu.core_type = #tpu.core_type<tc>, window_params = [{transform_indices = @transform_0, window_bounds = array<i64: 1, 3, 256>}, {pipeline_mode = #tpu.pipeline_mode<synchronous>, transform_indices = @transform_1, window_bounds = array<i64: 64, 3>}, {pipeline_mode = #tpu.pipeline_mode<synchronous>, transform_indices = @transform_2, window_bounds = array<i64: 64, 1>}, {pipeline_mode = #tpu.pipeline_mode<synchronous>, transform_indices = @transform_3, window_bounds = array<i64: 64, 128>}, {pipeline_mode = #tpu.pipeline_mode<synchronous>, transform_indices = @transform_4, window_bounds = array<i64: 1, 128>}, {pipeline_mode = #tpu.pipeline_mode<synchronous>, transform_indices = @transform_5, window_bounds = array<i64: 128, 1024>}, {pipeline_mode = #tpu.pipeline_mode<synchronous>, transform_indices = @transform_6, window_bounds = array<i64: 1, 1024>}, {transform_indices = @transform_7, window_bounds = array<i64: 1, 1, 1024>}]} {
    %c0 = arith.constant 0 : index
    %c0_0 = arith.constant 0 : index
    %c0_1 = arith.constant 0 : index
    %0 = vector.load %arg2[%c0, %c0_0, %c0_1] : memref<1x3x256xbf16, #tpu.memory_space<vmem>>, vector<1x3x256xbf16>
    %1 = vector.shape_cast %0 : vector<1x3x256xbf16> to vector<3x256xbf16>
    %c0_2 = arith.constant 0 : index
    %c0_3 = arith.constant 0 : index
    %2 = vector.load %arg3[%c0_2, %c0_3] : memref<64x3xbf16, #tpu.memory_space<vmem>>, vector<64x3xbf16>
    %cst = arith.constant dense<0.000000e+00> : vector<64x256xf32>
    %3 = tpu.matmul %2, %1, %cst {dimension_numbers = #tpu.dot_dimension_numbers<[1], [0], [0], [1], [0, 0, 1, 1], [], []>} : vector<64x3xbf16>, vector<3x256xbf16>, vector<64x256xf32> -> vector<64x256xf32>
    %c0_4 = arith.constant 0 : index
    %c0_5 = arith.constant 0 : index
    %4 = vector.load %arg4[%c0_4, %c0_5] : memref<64x1xf32, #tpu.memory_space<vmem>>, vector<64x1xf32>
    %5 = vector.broadcast %4 : vector<64x1xf32> to vector<64x256xf32>
    %6 = arith.addf %3, %5 : vector<64x256xf32>
    %cst_6 = arith.constant 0.000000e+00 : f32
    %7 = vector.broadcast %cst_6 : f32 to vector<64x256xf32>
    %8 = arith.maximumf %6, %7 : vector<64x256xf32>
    %9 = arith.truncf %8 : vector<64x256xf32> to vector<64x256xbf16>
    %10 = tpu.transpose %9, [1, 0] : vector<64x256xbf16> -> vector<256x64xbf16>
    %c0_7 = arith.constant 0 : index
    %c0_8 = arith.constant 0 : index
    %11 = vector.load %arg5[%c0_7, %c0_8] : memref<64x128xbf16, #tpu.memory_space<vmem>>, vector<64x128xbf16>
    %cst_9 = arith.constant dense<0.000000e+00> : vector<256x128xf32>
    %12 = tpu.matmul %10, %11, %cst_9 {dimension_numbers = #tpu.dot_dimension_numbers<[1], [0], [0], [1], [0, 0, 1, 1], [], []>} : vector<256x64xbf16>, vector<64x128xbf16>, vector<256x128xf32> -> vector<256x128xf32>
    %c0_10 = arith.constant 0 : index
    %c0_11 = arith.constant 0 : index
    %13 = vector.load %arg6[%c0_10, %c0_11] : memref<1x128xf32, #tpu.memory_space<vmem>>, vector<1x128xf32>
    %14 = vector.broadcast %13 : vector<1x128xf32> to vector<256x128xf32>
    %15 = arith.addf %12, %14 : vector<256x128xf32>
    %cst_12 = arith.constant 0.000000e+00 : f32
    %16 = vector.broadcast %cst_12 : f32 to vector<256x128xf32>
    %17 = arith.maximumf %15, %16 : vector<256x128xf32>
    %18 = arith.truncf %17 : vector<256x128xf32> to vector<256x128xbf16>
    %c0_13 = arith.constant 0 : index
    %c0_14 = arith.constant 0 : index
    %19 = vector.load %arg7[%c0_13, %c0_14] : memref<128x1024xbf16, #tpu.memory_space<vmem>>, vector<128x1024xbf16>
    %cst_15 = arith.constant dense<0.000000e+00> : vector<256x1024xf32>
    %20 = tpu.matmul %18, %19, %cst_15 {dimension_numbers = #tpu.dot_dimension_numbers<[1], [0], [0], [1], [0, 0, 1, 1], [], []>} : vector<256x128xbf16>, vector<128x1024xbf16>, vector<256x1024xf32> -> vector<256x1024xf32>
    %c0_16 = arith.constant 0 : index
    %c0_17 = arith.constant 0 : index
    %21 = vector.load %arg8[%c0_16, %c0_17] : memref<1x1024xf32, #tpu.memory_space<vmem>>, vector<1x1024xf32>
    %22 = vector.broadcast %21 : vector<1x1024xf32> to vector<256x1024xf32>
    %23 = arith.addf %20, %22 : vector<256x1024xf32>
    %cst_18 = arith.constant 0.000000e+00 : f32
    %24 = vector.broadcast %cst_18 : f32 to vector<256x1024xf32>
    %25 = arith.maximumf %23, %24 : vector<256x1024xf32>
    %cst_19 = arith.constant dense<0xFF800000> : vector<1024xf32>
    %26 = vector.multi_reduction <maximumf>, %25, %cst_19 [0] : vector<256x1024xf32> to vector<1024xf32>
    %27 = vector.shape_cast %26 : vector<1024xf32> to vector<1x1024xf32>
    %28 = vector.shape_cast %27 : vector<1x1024xf32> to vector<1x1x1024xf32>
    %c0_i32 = arith.constant 0 : i32
    %29 = arith.cmpi eq, %arg1, %c0_i32 : i32
    %30 = arith.extui %29 : i1 to i32
    %c0_i32_20 = arith.constant 0 : i32
    %31 = arith.cmpi ne, %30, %c0_i32_20 : i32
    scf.if %31 {
      %c0_23 = arith.constant 0 : index
      %c0_24 = arith.constant 0 : index
      %c0_25 = arith.constant 0 : index
      %35 = vector.load %arg9[%c0_23, %c0_24, %c0_25] : memref<1x1x1024xf32, #tpu.memory_space<vmem>>, vector<1x1x1024xf32>
      tpu.vector_store %arg9[%c0_23, %c0_24, %c0_25], %28 {strides = array<i32>} : memref<1x1x1024xf32, #tpu.memory_space<vmem>>, vector<1x1x1024xf32>,
    } else {
    }
    %c0_i32_21 = arith.constant 0 : i32
    %32 = arith.cmpi sgt, %arg1, %c0_i32_21 : i32
    %33 = arith.extui %32 : i1 to i32
    %c0_i32_22 = arith.constant 0 : i32
    %34 = arith.cmpi ne, %33, %c0_i32_22 : i32
    scf.if %34 {
      %c0_23 = arith.constant 0 : index
      %c0_24 = arith.constant 0 : index
      %c0_25 = arith.constant 0 : index
      %35 = vector.load %arg9[%c0_23, %c0_24, %c0_25] : memref<1x1x1024xf32, #tpu.memory_space<vmem>>, vector<1x1x1024xf32>
      %36 = arith.maximumf %35, %28 : vector<1x1x1024xf32>
      %c0_26 = arith.constant 0 : index
      %c0_27 = arith.constant 0 : index
      %c0_28 = arith.constant 0 : index
      %37 = vector.load %arg9[%c0_26, %c0_27, %c0_28] : memref<1x1x1024xf32, #tpu.memory_space<vmem>>, vector<1x1x1024xf32>
      tpu.vector_store %arg9[%c0_26, %c0_27, %c0_28], %36 {strides = array<i32>} : memref<1x1x1024xf32, #tpu.memory_space<vmem>>, vector<1x1x1024xf32>,
    } else {
    }
    return
  }
  func.func @transform_0(%arg0: i32, %arg1: i32) -> (i32, i32, i32) {
    %c0_i32 = arith.constant 0 : i32
    %c0_i32_0 = arith.constant 0 : i32
    return %arg0, %c0_i32, %arg1 : i32, i32, i32
  }
  func.func @transform_1(%arg0: i32, %arg1: i32) -> (i32, i32) {
    %c0_i32 = arith.constant 0 : i32
    %c0_i32_0 = arith.constant 0 : i32
    %c0_i32_1 = arith.constant 0 : i32
    return %c0_i32, %c0_i32_0 : i32, i32
  }
  func.func @transform_2(%arg0: i32, %arg1: i32) -> (i32, i32) {
    %c0_i32 = arith.constant 0 : i32
    %c0_i32_0 = arith.constant 0 : i32
    %c0_i32_1 = arith.constant 0 : i32
    return %c0_i32, %c0_i32_0 : i32, i32
  }
  func.func @transform_3(%arg0: i32, %arg1: i32) -> (i32, i32) {
    %c0_i32 = arith.constant 0 : i32
    %c0_i32_0 = arith.constant 0 : i32
    %c0_i32_1 = arith.constant 0 : i32
    return %c0_i32, %c0_i32_0 : i32, i32
  }
  func.func @transform_4(%arg0: i32, %arg1: i32) -> (i32, i32) {
    %c0_i32 = arith.constant 0 : i32
    %c0_i32_0 = arith.constant 0 : i32
    %c0_i32_1 = arith.constant 0 : i32
    return %c0_i32, %c0_i32_0 : i32, i32
  }
  func.func @transform_5(%arg0: i32, %arg1: i32) -> (i32, i32) {
    %c0_i32 = arith.constant 0 : i32
    %c0_i32_0 = arith.constant 0 : i32
    %c0_i32_1 = arith.constant 0 : i32
    return %c0_i32, %c0_i32_0 : i32, i32
  }
  func.func @transform_6(%arg0: i32, %arg1: i32) -> (i32, i32) {
    %c0_i32 = arith.constant 0 : i32
    %c0_i32_0 = arith.constant 0 : i32
    %c0_i32_1 = arith.constant 0 : i32
    return %c0_i32, %c0_i32_0 : i32, i32
  }
  func.func @transform_7(%arg0: i32, %arg1: i32) -> (i32, i32, i32) {
    %c0_i32 = arith.constant 0 : i32
    %c0_i32_0 = arith.constant 0 : i32
    %c0_i32_1 = arith.constant 0 : i32
    return %arg0, %c0_i32, %c0_i32_0 : i32, i32, i32
  }
}

module attributes {stable_mosaic.version = 11 : i64} {
  func.func @_fc_kernel(%arg0: i32, %arg1: memref<2x1024xf32, #tpu.memory_space<vmem>>, %arg2: memref<1024x512xbf16, #tpu.memory_space<vmem>>, %arg3: memref<1x512xf32, #tpu.memory_space<vmem>>, %arg4: memref<512x256xbf16, #tpu.memory_space<vmem>>, %arg5: memref<1x256xf32, #tpu.memory_space<vmem>>, %arg6: memref<256x128xbf16, #tpu.memory_space<vmem>>, %arg7: memref<1x128xf32, #tpu.memory_space<vmem>>, %arg8: memref<2x128xf32, #tpu.memory_space<vmem>>) attributes {dimension_semantics = [#tpu.dimension_semantics<arbitrary>], iteration_bounds = array<i64: 1>, scalar_prefetch = 0 : i64, scratch_operands = 0 : i64, tpu.core_type = #tpu.core_type<tc>, window_params = [{pipeline_mode = #tpu.pipeline_mode<synchronous>, transform_indices = @transform_0, window_bounds = array<i64: 2, 1024>}, {pipeline_mode = #tpu.pipeline_mode<synchronous>, transform_indices = @transform_1, window_bounds = array<i64: 1024, 512>}, {pipeline_mode = #tpu.pipeline_mode<synchronous>, transform_indices = @transform_2, window_bounds = array<i64: 1, 512>}, {pipeline_mode = #tpu.pipeline_mode<synchronous>, transform_indices = @transform_3, window_bounds = array<i64: 512, 256>}, {pipeline_mode = #tpu.pipeline_mode<synchronous>, transform_indices = @transform_4, window_bounds = array<i64: 1, 256>}, {pipeline_mode = #tpu.pipeline_mode<synchronous>, transform_indices = @transform_5, window_bounds = array<i64: 256, 128>}, {pipeline_mode = #tpu.pipeline_mode<synchronous>, transform_indices = @transform_6, window_bounds = array<i64: 1, 128>}, {pipeline_mode = #tpu.pipeline_mode<synchronous>, transform_indices = @transform_7, window_bounds = array<i64: 2, 128>}]} {
    %c0 = arith.constant 0 : index
    %c0_0 = arith.constant 0 : index
    %0 = vector.load %arg1[%c0, %c0_0] : memref<2x1024xf32, #tpu.memory_space<vmem>>, vector<2x1024xf32>
    %1 = arith.truncf %0 : vector<2x1024xf32> to vector<2x1024xbf16>
    %c0_1 = arith.constant 0 : index
    %c0_2 = arith.constant 0 : index
    %2 = vector.load %arg2[%c0_1, %c0_2] : memref<1024x512xbf16, #tpu.memory_space<vmem>>, vector<1024x512xbf16>
    %cst = arith.constant dense<0.000000e+00> : vector<2x512xf32>
    %3 = tpu.matmul %1, %2, %cst {dimension_numbers = #tpu.dot_dimension_numbers<[1], [0], [0], [1], [0, 0, 1, 1], [], []>} : vector<2x1024xbf16>, vector<1024x512xbf16>, vector<2x512xf32> -> vector<2x512xf32>
    %c0_3 = arith.constant 0 : index
    %c0_4 = arith.constant 0 : index
    %4 = vector.load %arg3[%c0_3, %c0_4] : memref<1x512xf32, #tpu.memory_space<vmem>>, vector<1x512xf32>
    %5 = vector.broadcast %4 : vector<1x512xf32> to vector<2x512xf32>
    %6 = arith.addf %3, %5 : vector<2x512xf32>
    %cst_5 = arith.constant 0.000000e+00 : f32
    %7 = vector.broadcast %cst_5 : f32 to vector<2x512xf32>
    %8 = arith.maximumf %6, %7 : vector<2x512xf32>
    %9 = arith.truncf %8 : vector<2x512xf32> to vector<2x512xbf16>
    %c0_6 = arith.constant 0 : index
    %c0_7 = arith.constant 0 : index
    %10 = vector.load %arg4[%c0_6, %c0_7] : memref<512x256xbf16, #tpu.memory_space<vmem>>, vector<512x256xbf16>
    %cst_8 = arith.constant dense<0.000000e+00> : vector<2x256xf32>
    %11 = tpu.matmul %9, %10, %cst_8 {dimension_numbers = #tpu.dot_dimension_numbers<[1], [0], [0], [1], [0, 0, 1, 1], [], []>} : vector<2x512xbf16>, vector<512x256xbf16>, vector<2x256xf32> -> vector<2x256xf32>
    %c0_9 = arith.constant 0 : index
    %c0_10 = arith.constant 0 : index
    %12 = vector.load %arg5[%c0_9, %c0_10] : memref<1x256xf32, #tpu.memory_space<vmem>>, vector<1x256xf32>
    %13 = vector.broadcast %12 : vector<1x256xf32> to vector<2x256xf32>
    %14 = arith.addf %11, %13 : vector<2x256xf32>
    %cst_11 = arith.constant 0.000000e+00 : f32
    %15 = vector.broadcast %cst_11 : f32 to vector<2x256xf32>
    %16 = arith.maximumf %14, %15 : vector<2x256xf32>
    %17 = arith.truncf %16 : vector<2x256xf32> to vector<2x256xbf16>
    %c0_12 = arith.constant 0 : index
    %c0_13 = arith.constant 0 : index
    %18 = vector.load %arg6[%c0_12, %c0_13] : memref<256x128xbf16, #tpu.memory_space<vmem>>, vector<256x128xbf16>
    %cst_14 = arith.constant dense<0.000000e+00> : vector<2x128xf32>
    %19 = tpu.matmul %17, %18, %cst_14 {dimension_numbers = #tpu.dot_dimension_numbers<[1], [0], [0], [1], [0, 0, 1, 1], [], []>} : vector<2x256xbf16>, vector<256x128xbf16>, vector<2x128xf32> -> vector<2x128xf32>
    %c0_15 = arith.constant 0 : index
    %c0_16 = arith.constant 0 : index
    %20 = vector.load %arg7[%c0_15, %c0_16] : memref<1x128xf32, #tpu.memory_space<vmem>>, vector<1x128xf32>
    %21 = vector.broadcast %20 : vector<1x128xf32> to vector<2x128xf32>
    %22 = arith.addf %19, %21 : vector<2x128xf32>
    %c0_17 = arith.constant 0 : index
    %c0_18 = arith.constant 0 : index
    %23 = vector.load %arg8[%c0_17, %c0_18] : memref<2x128xf32, #tpu.memory_space<vmem>>, vector<2x128xf32>
    tpu.vector_store %arg8[%c0_17, %c0_18], %22 {strides = array<i32>} : memref<2x128xf32, #tpu.memory_space<vmem>>, vector<2x128xf32>,
    return
  }
  func.func @transform_0(%arg0: i32) -> (i32, i32) {
    %c0_i32 = arith.constant 0 : i32
    %c0_i32_0 = arith.constant 0 : i32
    %c0_i32_1 = arith.constant 0 : i32
    return %c0_i32, %c0_i32_0 : i32, i32
  }
  func.func @transform_1(%arg0: i32) -> (i32, i32) {
    %c0_i32 = arith.constant 0 : i32
    %c0_i32_0 = arith.constant 0 : i32
    %c0_i32_1 = arith.constant 0 : i32
    return %c0_i32, %c0_i32_0 : i32, i32
  }
  func.func @transform_2(%arg0: i32) -> (i32, i32) {
    %c0_i32 = arith.constant 0 : i32
    %c0_i32_0 = arith.constant 0 : i32
    %c0_i32_1 = arith.constant 0 : i32
    return %c0_i32, %c0_i32_0 : i32, i32
  }
  func.func @transform_3(%arg0: i32) -> (i32, i32) {
    %c0_i32 = arith.constant 0 : i32
    %c0_i32_0 = arith.constant 0 : i32
    %c0_i32_1 = arith.constant 0 : i32
    return %c0_i32, %c0_i32_0 : i32, i32
  }
  func.func @transform_4(%arg0: i32) -> (i32, i32) {
    %c0_i32 = arith.constant 0 : i32
    %c0_i32_0 = arith.constant 0 : i32
    %c0_i32_1 = arith.constant 0 : i32
    return %c0_i32, %c0_i32_0 : i32, i32
  }
  func.func @transform_5(%arg0: i32) -> (i32, i32) {
    %c0_i32 = arith.constant 0 : i32
    %c0_i32_0 = arith.constant 0 : i32
    %c0_i32_1 = arith.constant 0 : i32
    return %c0_i32, %c0_i32_0 : i32, i32
  }
  func.func @transform_6(%arg0: i32) -> (i32, i32) {
    %c0_i32 = arith.constant 0 : i32
    %c0_i32_0 = arith.constant 0 : i32
    %c0_i32_1 = arith.constant 0 : i32
    return %c0_i32, %c0_i32_0 : i32, i32
  }
  func.func @transform_7(%arg0: i32) -> (i32, i32) {
    %c0_i32 = arith.constant 0 : i32
    %c0_i32_0 = arith.constant 0 : i32
    %c0_i32_1 = arith.constant 0 : i32
    return %c0_i32, %c0_i32_0 : i32, i32
  }
}

</mosaic_0001>

<llo_original>
// kernel: tnet_forward.2
$region0: #{tnet_forward.2}
  #allocation0 [shape = 'u32[]', space=smem, size = 0x4, offset = 0x4, fixed_abs, tag = 'smem constant byte address 0x4 - core index']
  #allocation1 [shape = 'u32[144,128]{1,0:T(1,128)}', space=vmem, size = 0x12000, scoped, tag = 'internal scratch']
  %s0 = inlined_call_operand.vmem [shape: bf16[2,3,256], index: 0, kind: input, shape index: {}]
  %s1 = inlined_call_operand.vmem [shape: bf16[64,3], index: 1, kind: input, shape index: {}]
  %s2 = inlined_call_operand.vmem [shape: f32[64,1], index: 2, kind: input, shape index: {}]
  %s3 = inlined_call_operand.vmem [shape: bf16[64,128], index: 3, kind: input, shape index: {}]
  %s4 = inlined_call_operand.hbm [shape: f32[1,128], index: 4, kind: input, shape index: {}]
  %s5 = inlined_call_operand.vmem [shape: bf16[128,1024], index: 5, kind: input, shape index: {}]
  %s6 = inlined_call_operand.hbm [shape: f32[1,1024], index: 6, kind: input, shape index: {}]
  %s7 = inlined_call_operand.vmem [shape: f32[2,1,1024], index: 7, kind: output, shape index: {}]
  %s8 = sld [smem:[#allocation0]]
  $region77: #{tnet_forward.2} parent=0
    _
  %s10 = ssub.s32 1, %s8
  %s11 = scalar_select 0, %s10, %s8
  $region1: #{tnet_forward.2} parent=0
    #allocation2 [shape = 'u8[512]{0}', space=vmem, size = 0x400, scoped, tag = 'input window, operand 4, single buffered']
    #allocation3 [shape = 's32[2]{0}', space=sflag, size = 0x8, scoped, tag = 'scoped memory for tnet_forward.2']
    #allocation4 [shape = 'u8[4096]{0}', space=vmem, size = 0x1000, scoped, tag = 'input window, operand 6, single buffered']
    #allocation5 [shape = 's32[1]{0}', space=sflag, size = 0x4, scoped, tag = 'scoped memory for tnet_forward.2']
    %12 = vsyncpa [#allocation3], 0
    %13 = vsyncpa [#allocation5], 0
    loop: start=0, step=1, limit=4
    $region2: #{tnet_forward.2} parent=1 // loop_pre_header
      _
    $region3: #{tnet_forward.2} parent=1 // loop_header
      %s15 = sphi 0, %s19
      %p16 = scmp.ge.s32.totalorder %s15, 4
      %s22 = sphi 0, %s34
      %s23 = sphi 0, %s30
      %s24 = sphi 0, %s22
      %s25 = sphi 0, %s23
      %s26 = sphi 0, %s24
      %s27 = sphi 0, %s25
      %s39 = sphi 0, %s41
      %s42 = sphi 0, %s39
      %s43 = sphi 0, %s42
      %s59 = sphi 0, %s43
      %s63 = sphi 0, %s63
      %s65 = sphi 0, %s63
      %s66 = sphi 0, %s65
      %s80 = sphi 0, %s66
      %s84 = sphi 0, %s84
      %s86 = sphi 0, %s84
      %s87 = sphi 0, %s86
      %s101 = sphi 0, %s87
      %s105 = sphi 0, %s105
      %s107 = sphi 0, %s105
      %s108 = sphi 0, %s107
      %s122 = sphi 0, %s108
      %s126 = sphi 0, %s126
      %s128 = sphi 0, %s126
      %s129 = sphi 0, %s128
      %s143 = sphi 0, %s129
      %s147 = sphi 0, %s147
      %s149 = sphi 0, %s147
      %s150 = sphi 0, %s149
      %s164 = sphi 0, %s150
      %s168 = sphi 0, %s168
      %s170 = sphi 0, %s168
      %s171 = sphi 0, %s170
      %s185 = sphi 0, %s171
      %s191 = sphi 0, %s193
      %s194 = sphi 0, %s191
      %s195 = sphi 0, %s194
      %s211 = sphi 0, %s195
    $region4: #{tnet_forward.2} parent=1 // loop_header_branch
      %18 = sbr.rel (%p16) target = $region8
    $region5: #{tnet_forward.2} parent=1 // loop_body
      %s20 = ssub.s32 %s15, 1
      %s21 = ssub.s32 %s15, 2
      %s28 = sadd.s32 1, %s23
      %p29 = scmp.ge.s32.totalorder %s28, 1
      %s30 = scalar_select %p29, 0, %s28
      %s31 = sadd.s32 1, %s22
      %s32 = scalar_select %p29, %s31, %s22
      %p33 = scmp.ge.s32.totalorder %s32, 2
      %s34 = scalar_select %p33, 0, %s32
      %s35 = ssub.s32 %s22, %s34
      %s36 = ssub.s32 %s23, %s30
      %s37 = sor.u32 %s35, %s36
      %p38 = scmp.eq.s32.totalorder %s37, 0
      %s40 = sadd.s32 %s39, 1
      %s41 = scalar_select %p38, %s39, %s40
      %p44 = pneg %p38
      %p45 = scmp.eq.s32.totalorder %s15, 1
      %p46 = por %p44, %p45
      %p47 = scmp.ne.s32.totalorder %s39, %s42
      %p48 = scmp.eq.s32.totalorder %s15, 0
      %p49 = por %p47, %p48
      %p50 = scmp.ne.s32.totalorder %s39, %s42
      %p51 = scmp.eq.s32.totalorder %s20, 1
      %p52 = por %p50, %p51
      %p53 = scmp.ne.s32.totalorder %s42, %s43
      %p54 = scmp.eq.s32.totalorder %s20, 0
      %p55 = por %p53, %p54
      %p56 = scmp.ne.s32.totalorder %s42, %s43
      %p57 = scmp.eq.s32.totalorder %s21, 1
      %p58 = por %p56, %p57
      %p60 = scmp.ne.s32.totalorder %s43, %s59
      %p61 = scmp.eq.s32.totalorder %s21, 0
      %p62 = por %p60, %p61
      %s64 = sadd.s32 %s63, 1
      %p67 = scmp.eq.s32.totalorder %s15, 1
      %p68 = scmp.ne.s32.totalorder %s63, %s65
      %p69 = scmp.eq.s32.totalorder %s15, 0
      %p70 = por %p68, %p69
      %p71 = scmp.ne.s32.totalorder %s63, %s65
      %p72 = scmp.eq.s32.totalorder %s20, 1
      %p73 = por %p71, %p72
      %p74 = scmp.ne.s32.totalorder %s65, %s66
      %p75 = scmp.eq.s32.totalorder %s20, 0
      %p76 = por %p74, %p75
      %p77 = scmp.ne.s32.totalorder %s65, %s66
      %p78 = scmp.eq.s32.totalorder %s21, 1
      %p79 = por %p77, %p78
      %p81 = scmp.ne.s32.totalorder %s66, %s80
      %p82 = scmp.eq.s32.totalorder %s21, 0
      %p83 = por %p81, %p82
      %s85 = sadd.s32 %s84, 1
      %p88 = scmp.eq.s32.totalorder %s15, 1
      %p89 = scmp.ne.s32.totalorder %s84, %s86
      %p90 = scmp.eq.s32.totalorder %s15, 0
      %p91 = por %p89, %p90
      %p92 = scmp.ne.s32.totalorder %s84, %s86
      %p93 = scmp.eq.s32.totalorder %s20, 1
      %p94 = por %p92, %p93
      %p95 = scmp.ne.s32.totalorder %s86, %s87
      %p96 = scmp.eq.s32.totalorder %s20, 0
      %p97 = por %p95, %p96
      %p98 = scmp.ne.s32.totalorder %s86, %s87
      %p99 = scmp.eq.s32.totalorder %s21, 1
      %p100 = por %p98, %p99
      %p102 = scmp.ne.s32.totalorder %s87, %s101
      %p103 = scmp.eq.s32.totalorder %s21, 0
      %p104 = por %p102, %p103
      %s106 = sadd.s32 %s105, 1
      %p109 = scmp.eq.s32.totalorder %s15, 1
      %p110 = scmp.ne.s32.totalorder %s105, %s107
      %p111 = scmp.eq.s32.totalorder %s15, 0
      %p112 = por %p110, %p111
      %p113 = scmp.ne.s32.totalorder %s105, %s107
      %p114 = scmp.eq.s32.totalorder %s20, 1
      %p115 = por %p113, %p114
      %p116 = scmp.ne.s32.totalorder %s107, %s108
      %p117 = scmp.eq.s32.totalorder %s20, 0
      %p118 = por %p116, %p117
      %p119 = scmp.ne.s32.totalorder %s107, %s108
      %p120 = scmp.eq.s32.totalorder %s21, 1
      %p121 = por %p119, %p120
      %p123 = scmp.ne.s32.totalorder %s108, %s122
      %p124 = scmp.eq.s32.totalorder %s21, 0
      %p125 = por %p123, %p124
      %s127 = sadd.s32 %s126, 1
      %p130 = scmp.eq.s32.totalorder %s15, 1
      %p131 = scmp.ne.s32.totalorder %s126, %s128
      %p132 = scmp.eq.s32.totalorder %s15, 0
      %p133 = por %p131, %p132
      %p134 = scmp.ne.s32.totalorder %s126, %s128
      %p135 = scmp.eq.s32.totalorder %s20, 1
      %p136 = por %p134, %p135
      %p137 = scmp.ne.s32.totalorder %s128, %s129
      %p138 = scmp.eq.s32.totalorder %s20, 0
      %p139 = por %p137, %p138
      %p140 = scmp.ne.s32.totalorder %s128, %s129
      %p141 = scmp.eq.s32.totalorder %s21, 1
      %p142 = por %p140, %p141
      %p144 = scmp.ne.s32.totalorder %s129, %s143
      %p145 = scmp.eq.s32.totalorder %s21, 0
      %p146 = por %p144, %p145
      %s148 = sadd.s32 %s147, 1
      %p151 = scmp.eq.s32.totalorder %s15, 1
      %p152 = scmp.ne.s32.totalorder %s147, %s149
      %p153 = scmp.eq.s32.totalorder %s15, 0
      %p154 = por %p152, %p153
      %p155 = scmp.ne.s32.totalorder %s147, %s149
      %p156 = scmp.eq.s32.totalorder %s20, 1
      %p157 = por %p155, %p156
      %p158 = scmp.ne.s32.totalorder %s149, %s150
      %p159 = scmp.eq.s32.totalorder %s20, 0
      %p160 = por %p158, %p159
      %p161 = scmp.ne.s32.totalorder %s149, %s150
      %p162 = scmp.eq.s32.totalorder %s21, 1
      %p163 = por %p161, %p162
      %p165 = scmp.ne.s32.totalorder %s150, %s164
      %p166 = scmp.eq.s32.totalorder %s21, 0
      %p167 = por %p165, %p166
      %s169 = sadd.s32 %s168, 1
      %p172 = scmp.eq.s32.totalorder %s15, 1
      %p173 = scmp.ne.s32.totalorder %s168, %s170
      %p174 = scmp.eq.s32.totalorder %s15, 0
      %p175 = por %p173, %p174
      %p176 = scmp.ne.s32.totalorder %s168, %s170
      %p177 = scmp.eq.s32.totalorder %s20, 1
      %p178 = por %p176, %p177
      %p179 = scmp.ne.s32.totalorder %s170, %s171
      %p180 = scmp.eq.s32.totalorder %s20, 0
      %p181 = por %p179, %p180
      %p182 = scmp.ne.s32.totalorder %s170, %s171
      %p183 = scmp.eq.s32.totalorder %s21, 1
      %p184 = por %p182, %p183
      %p186 = scmp.ne.s32.totalorder %s171, %s185
      %p187 = scmp.eq.s32.totalorder %s21, 0
      %p188 = por %p186, %p187
      %s189 = ssub.s32 %s22, %s34
      %p190 = scmp.eq.s32.totalorder %s189, 0
      %s192 = sadd.s32 %s191, 1
      %s193 = scalar_select %p190, %s191, %s192
      %p196 = pneg %p190
      %p197 = scmp.eq.s32.totalorder %s15, 1
      %p198 = por %p196, %p197
      %p199 = scmp.ne.s32.totalorder %s191, %s194
      %p200 = scmp.eq.s32.totalorder %s15, 0
      %p201 = por %p199, %p200
      %p202 = scmp.ne.s32.totalorder %s191, %s194
      %p203 = scmp.eq.s32.totalorder %s20, 1
      %p204 = por %p202, %p203
      %p205 = scmp.ne.s32.totalorder %s194, %s195
      %p206 = scmp.eq.s32.totalorder %s20, 0
      %p207 = por %p205, %p206
      %p208 = scmp.ne.s32.totalorder %s194, %s195
      %p209 = scmp.eq.s32.totalorder %s21, 1
      %p210 = por %p208, %p209
      %p212 = scmp.ne.s32.totalorder %s195, %s211
      %p213 = scmp.eq.s32.totalorder %s21, 0
      %p214 = por %p212, %p213
      %p215 = scmp.le.s32.totalorder 1, %s15
      %p216 = scmp.lt.s32.totalorder %s15, 3
      %p217 = pnand %p215, %p216
      %p218 = pneg %p217
      // Predicated region
      $region9: #{tnet_forward.2} parent=5 // pred_check
        _
      $region10: #{tnet_forward.2} parent=5 // pred_check_branch
        %220 = sbr.rel (%p217) target = $region12
      $region11: #{tnet_forward.2} parent=5 // pred_region
        %s221 = ssub.s32 %s15, 1
        // Predicated region
        $region13: #{tnet_forward.2} parent=11 // pred_check
          %p222 = pneg %p76
        $region14: #{tnet_forward.2} parent=11 // pred_check_branch
          %224 = sbr.rel (%p222) target = $region16
        $region15: #{tnet_forward.2} parent=11 // pred_region
          _
        $region16: #{tnet_forward.2} parent=11 // pred_fallthru
          _
        // Predicated region
        $region17: #{tnet_forward.2} parent=11 // pred_check
          %p225 = pneg %p97
        $region18: #{tnet_forward.2} parent=11 // pred_check_branch
          %227 = sbr.rel (%p225) target = $region20
        $region19: #{tnet_forward.2} parent=11 // pred_region
          _
        $region20: #{tnet_forward.2} parent=11 // pred_fallthru
          _
        // Predicated region
        $region21: #{tnet_forward.2} parent=11 // pred_check
          %p228 = pneg %p118
        $region22: #{tnet_forward.2} parent=11 // pred_check_branch
          %230 = sbr.rel (%p228) target = $region24
        $region23: #{tnet_forward.2} parent=11 // pred_region
          _
        $region24: #{tnet_forward.2} parent=11 // pred_fallthru
          _
        // Predicated region
        $region25: #{tnet_forward.2} parent=11 // pred_check
          %p231 = pneg %p139
        $region26: #{tnet_forward.2} parent=11 // pred_check_branch
          %233 = sbr.rel (%p231) target = $region28
        $region27: #{tnet_forward.2} parent=11 // pred_region
          %s235 = ssub.s32 16, 16
          %236 = vsyncadd [#allocation3], %s235
          %s238 = sshll.u32 [#allocation2], 4
          %s239 = int_to_ptr.vmem [resolvable:$true] %s238
          %241 = dma.hbm_to_vmem [thread:$0]  %s4, 16, %s239, [#allocation3]
        $region28: #{tnet_forward.2} parent=11 // pred_fallthru
          _
        // Predicated region
        $region29: #{tnet_forward.2} parent=11 // pred_check
          %p242 = pneg %p160
        $region30: #{tnet_forward.2} parent=11 // pred_check_branch
          %244 = sbr.rel (%p242) target = $region32
        $region31: #{tnet_forward.2} parent=11 // pred_region
          _
        $region32: #{tnet_forward.2} parent=11 // pred_fallthru
          _
        // Predicated region
        $region33: #{tnet_forward.2} parent=11 // pred_check
          %p245 = pneg %p181
        $region34: #{tnet_forward.2} parent=11 // pred_check_branch
          %247 = sbr.rel (%p245) target = $region36
        $region35: #{tnet_forward.2} parent=11 // pred_region
          %s249 = ssub.s32 128, 128
          %250 = vsyncadd [#allocation5], %s249
          %s252 = sshll.u32 [#allocation4], 4
          %s253 = int_to_ptr.vmem [resolvable:$true] %s252
          %255 = dma.hbm_to_vmem [thread:$0]  %s6, 128, %s253, [#allocation5]
        $region36: #{tnet_forward.2} parent=11 // pred_fallthru
          _
      $region12: #{tnet_forward.2} parent=5 // pred_fallthru
        _
      %p256 = scmp.lt.s32.totalorder %s15, 2
      // Predicated region
      $region37: #{tnet_forward.2} parent=5 // pred_check
        %p257 = pneg %p256
      $region38: #{tnet_forward.2} parent=5 // pred_check_branch
        %259 = sbr.rel (%p257) target = $region40
      $region39: #{tnet_forward.2} parent=5 // pred_region
        // Predicated region
        $region41: #{tnet_forward.2} parent=39 // pred_check
          %p260 = pneg %p49
        $region42: #{tnet_forward.2} parent=39 // pred_check_branch
          %262 = sbr.rel (%p260) target = $region44
        $region43: #{tnet_forward.2} parent=39 // pred_region
          %s263 = smul.u32 2, %s23
          %p264 = scmp.lt.s32.totalorder %s22, 1
          %s265 = scalar_select %p264, %s22, 1
          %p266 = scmp.lt.s32.totalorder %s263, 1
          %s267 = scalar_select %p266, %s263, 1
          %s268 = smul.addr %s265, 2
          %s269 = sadd.s32 %s267, %s268
          %s270 = smul.addr %s269, 2
          %s271 = scalar_lea.vmem %s0, %s270
          %s272 = smul.u32 2, %s23
        $region44: #{tnet_forward.2} parent=39 // pred_fallthru
          _
      $region40: #{tnet_forward.2} parent=5 // pred_fallthru
        _
      %p273 = scmp.le.s32.totalorder 1, %s15
      %p274 = scmp.lt.s32.totalorder %s15, 3
      %p275 = pnand %p273, %p274
      %p276 = pneg %p275
      // Predicated region
      $region45: #{tnet_forward.2} parent=5 // pred_check
        _
      $region46: #{tnet_forward.2} parent=5 // pred_check_branch
        %278 = sbr.rel (%p275) target = $region48
      $region47: #{tnet_forward.2} parent=5 // pred_region
        %s279 = ssub.s32 %s15, 1
        // Predicated region
        $region49: #{tnet_forward.2} parent=47 // pred_check
          %p280 = pneg %p139
        $region50: #{tnet_forward.2} parent=47 // pred_check_branch
          %282 = sbr.rel (%p280) target = $region52
        $region51: #{tnet_forward.2} parent=47 // pred_region
          %283 = dma.done [#allocation3], 16
        $region52: #{tnet_forward.2} parent=47 // pred_fallthru
          _
        // Predicated region
        $region53: #{tnet_forward.2} parent=47 // pred_check
          %p284 = pneg %p181
        $region54: #{tnet_forward.2} parent=47 // pred_check_branch
          %286 = sbr.rel (%p284) target = $region56
        $region55: #{tnet_forward.2} parent=47 // pred_region
          %287 = dma.done [#allocation5], 128
        $region56: #{tnet_forward.2} parent=47 // pred_fallthru
          _
        %s288 = smul.u32 2, %s25
        %p289 = scmp.lt.s32.totalorder %s24, 1
        %s290 = scalar_select %p289, %s24, 1
        %p291 = scmp.lt.s32.totalorder %s288, 1
        %s292 = scalar_select %p291, %s288, 1
        %s293 = smul.addr %s290, 2
        %s294 = sadd.s32 %s292, %s293
        %s295 = smul.addr %s294, 2
        %s296 = scalar_lea.vmem %s0, %s295
        %p297 = pneg %p55
        %p298 = pneg %p52
        %p299 = pneg %p76
        %p300 = pneg %p73
        %p301 = pneg %p97
        %p302 = pneg %p94
        %p303 = pneg %p118
        %p304 = pneg %p115
        %p305 = pneg %p139
        %p306 = pneg %p136
        %p307 = pneg %p160
        %p308 = pneg %p157
        %p309 = pneg %p181
        %p310 = pneg %p178
        %p311 = pneg %p207
        %p312 = pneg %p204
        %p313 = scmp.lt.s32.totalorder %s24, 1
        %s314 = scalar_select %p313, %s24, 1
        %s315 = smul.addr %s314, 8
        %s316 = scalar_lea.vmem %s7, %s315
        %s317 = smul.u32 2, %s25
        %p318 = scmp.lt.s32.totalorder %s24, 1
        %s319 = scalar_select %p318, %s24, 1
        %p320 = scmp.lt.s32.totalorder %s317, 1
        %s321 = scalar_select %p320, %s317, 1
        %s322 = smul.addr %s319, 2
        %s323 = sadd.s32 %s321, %s322
        %s324 = smul.addr %s323, 2
        %s325 = scalar_lea.vmem %s0, %s324
        %s326 = smul.u32 2, %s25
        %p327 = scmp.lt.s32.totalorder %s24, 1
        %s328 = scalar_select %p327, %s24, 1
        %s329 = smul.addr %s328, 8
        %s330 = scalar_lea.vmem %s7, %s329
        %v332 = vld [vmem:[%s325] sm:$0xf]
        %v333 = vld [vmem:[%s1] sm:$0xf]
        %v334 = vld [vmem:[%s1 + $0x4] sm:$0xf]
        %v335 = vld [vmem:[%s1 + $0x8] sm:$0xf]
        %v336 = vld [vmem:[%s1 + $0xc] sm:$0xf]
        %v337 = vld [vmem:[%s1 + $0x10] sm:$0xf]
        %v338 = vld [vmem:[%s1 + $0x14] sm:$0xf]
        %v339 = vld [vmem:[%s1 + $0x18] sm:$0xf]
        %v340 = vld [vmem:[%s1 + $0x1c] sm:$0xf]
        %v341 = vld [vmem:[%s2] sm:$0xff]
        %v342 = vld [vmem:[%s2 + $0x8] sm:$0xff]
        %v343 = vld [vmem:[%s2 + $0x10] sm:$0xff]
        %v344 = vld [vmem:[%s2 + $0x18] sm:$0xff]
        %v345 = vld [vmem:[%s2 + $0x20] sm:$0xff]
        %v346 = vld [vmem:[%s2 + $0x28] sm:$0xff]
        %v347 = vld [vmem:[%s2 + $0x30] sm:$0xff]
        %v348 = vld [vmem:[%s2 + $0x38] sm:$0xff]
        %350 = vset.pattern.permute.xlu0 0
        %351 = vperm.xlu0 %350, %v341
        %v352 = vpop.permute.xlu0 %351
        %355 = vset.pattern.permute.xlu0 0
        %356 = vperm.xlu0 %355, %v342
        %v357 = vpop.permute.xlu0 %356
        %360 = vset.pattern.permute.xlu0 0
        %361 = vperm.xlu0 %360, %v343
        %v362 = vpop.permute.xlu0 %361
        %365 = vset.pattern.permute.xlu0 0
        %366 = vperm.xlu0 %365, %v344
        %v367 = vpop.permute.xlu0 %366
        %370 = vset.pattern.permute.xlu0 0
        %371 = vperm.xlu0 %370, %v345
        %v372 = vpop.permute.xlu0 %371
        %375 = vset.pattern.permute.xlu0 0
        %376 = vperm.xlu0 %375, %v346
        %v377 = vpop.permute.xlu0 %376
        %380 = vset.pattern.permute.xlu0 0
        %381 = vperm.xlu0 %380, %v347
        %v382 = vpop.permute.xlu0 %381
        %385 = vset.pattern.permute.xlu0 0
        %386 = vperm.xlu0 %385, %v348
        %v387 = vpop.permute.xlu0 %386
        %v397 = vunpack.c.l.b16 %v333
        %v398 = vunpack.c.l.b16 %v334
        %v399 = vunpack.c.l.b16 %v335
        %v400 = vunpack.c.l.b16 %v336
        %v401 = vunpack.c.l.b16 %v337
        %v402 = vunpack.c.l.b16 %v338
        %v403 = vunpack.c.l.b16 %v339
        %v404 = vunpack.c.l.b16 %v340
        %v405 = vpack.c.b16 %v398, %v397
        %v406 = vpack.c.b16 %v400, %v399
        %v407 = vpack.c.b16 %v402, %v401
        %v408 = vpack.c.b16 %v404, %v403
        %v411 = vunpack.c.l.s4 1983009808
        %v412 = vunpack.c.0.s8 %v411
        %v413 = vlaneseq
        %v414 = vshrl.u32 %v413, 7
        %v415 = vsub.s32 %v412, %v414
        %v416 = vrot.slane %v332, %v415
        %v417 = vcombine.high %v416, %v416
        %vm418 = vcmask 23552
        %v420 = vsel %vm418, %v405, 0
        %v423 = vsel %vm418, %v406, 0
        %v426 = vsel %vm418, %v407, 0
        %v429 = vsel %vm418, %v408, 0
        %vm431 = vcmask 1040384
        %vm432 = vcmask 1041408
        %v433 = vsel %vm431, 4294967295, 65535
        %v434 = vsel %vm432, %v433, 0
        %v436 = vand.u32 %v416, %v434
        %v439 = vand.u32 %v417, %v434
        %441 = vmatprep.subr.bf16.mxu0 %v439
        %442 = vmatpush1.bf16.msra.mxu0 %v436
        %443 = vmatprep.subr.bf16.mxu0 0
        %444 = vmatpush1.bf16.msra.mxu0 0
        %445 = vmatprep.subr.bf16.mxu0 0
        %446 = vmatpush1.bf16.msra.mxu0 0
        %447 = vmatprep.subr.bf16.mxu0 0
        %448 = vmatpush1.bf16.msra.mxu0 0
        %449 = vmatprep.subr.bf16.mxu0 0
        %450 = vmatpush1.bf16.msra.mxu0 0
        %451 = vmatprep.subr.bf16.mxu0 0
        %452 = vmatpush1.bf16.msra.mxu0 0
        %453 = vmatprep.subr.bf16.mxu0 0
        %454 = vmatpush1.bf16.msra.mxu0 0
        %455 = vmatprep.subr.bf16.mxu0 0
        %456 = vmatpush1.bf16.msra.mxu0 0
        %457 = vmatprep.subr.bf16.mxu0 0
        %458 = vmatpush1.bf16.msra.mxu0 0
        %459 = vmatprep.subr.bf16.mxu0 0
        %460 = vmatpush1.bf16.msra.mxu0 0
        %461 = vmatprep.subr.bf16.mxu0 0
        %462 = vmatpush1.bf16.msra.mxu0 0
        %463 = vmatprep.subr.bf16.mxu0 0
        %464 = vmatpush1.bf16.msra.mxu0 0
        %465 = vmatprep.subr.bf16.mxu0 0
        %466 = vmatpush1.bf16.msra.mxu0 0
        %467 = vmatprep.subr.bf16.mxu0 0
        %468 = vmatpush1.bf16.msra.mxu0 0
        %469 = vmatprep.subr.bf16.mxu0 0
        %470 = vmatpush1.bf16.msra.mxu0 0
        %471 = vmatprep.subr.bf16.mxu0 0
        %472 = vmatpush1.bf16.msra.mxu0 0
        %473 = vmatprep.mubr.bf16.mxu0 0
        %474 = vmatmul.mubr.bf16.gmra.mrb[0].mxu0 %v420
        %v475 = vpop.f32.mrb[0].mxu0
        %v476 = vadd.f32 %v352, %v475
        %v477 = vpop.f32.mrb[0].mxu0
        %v478 = vadd.f32 %v352, %v477
        %v479 = vpop.f32.mrb[0].mxu0
        %v480 = vadd.f32 %v357, %v479
        %v481 = vpop.f32.mrb[0].mxu0
        %v482 = vadd.f32 %v357, %v481
        %483 = vmatprep.mubr.bf16.mxu0 0
        %484 = vmatmul.mubr.bf16.gmra.mrb[0].mxu0 %v423
        %v485 = vpop.f32.mrb[0].mxu0
        %v486 = vadd.f32 %v362, %v485
        %v487 = vpop.f32.mrb[0].mxu0
        %v488 = vadd.f32 %v362, %v487
        %v489 = vpop.f32.mrb[0].mxu0
        %v490 = vadd.f32 %v367, %v489
        %v491 = vpop.f32.mrb[0].mxu0
        %v492 = vadd.f32 %v367, %v491
        %493 = vmatprep.mubr.bf16.mxu0 0
        %494 = vmatmul.mubr.bf16.gmra.mrb[0].mxu0 %v426
        %v495 = vpop.f32.mrb[0].mxu0
        %v496 = vadd.f32 %v372, %v495
        %v497 = vpop.f32.mrb[0].mxu0
        %v498 = vadd.f32 %v372, %v497
        %v499 = vpop.f32.mrb[0].mxu0
        %v500 = vadd.f32 %v377, %v499
        %v501 = vpop.f32.mrb[0].mxu0
        %v502 = vadd.f32 %v377, %v501
        %503 = vmatprep.mubr.bf16.mxu0 0
        %504 = vmatmul.mubr.bf16.gmra.mrb[0].mxu0 %v429
        %v505 = vpop.f32.mrb[0].mxu0
        %v506 = vadd.f32 %v382, %v505
        %v507 = vpop.f32.mrb[0].mxu0
        %v508 = vadd.f32 %v382, %v507
        %v509 = vpop.f32.mrb[0].mxu0
        %v510 = vadd.f32 %v387, %v509
        %v511 = vpop.f32.mrb[0].mxu0
        %v512 = vadd.f32 %v387, %v511
        %513 = vdwg.mxu0
        %v514 = vmax.f32 %v476, 0.0
        %v515 = vmax.f32 %v478, 0.0
        %v516 = vmax.f32 %v480, 0.0
        %v517 = vmax.f32 %v482, 0.0
        %v518 = vmax.f32 %v486, 0.0
        %v519 = vmax.f32 %v488, 0.0
        %v520 = vmax.f32 %v490, 0.0
        %v521 = vmax.f32 %v492, 0.0
        %v522 = vmax.f32 %v496, 0.0
        %v523 = vmax.f32 %v498, 0.0
        %v524 = vmax.f32 %v500, 0.0
        %v525 = vmax.f32 %v502, 0.0
        %v526 = vmax.f32 %v506, 0.0
        %v527 = vmax.f32 %v508, 0.0
        %v528 = vmax.f32 %v510, 0.0
        %v529 = vmax.f32 %v512, 0.0
        %v530 = vpack.c.bf16 %v516, %v514
        %v531 = vpack.c.bf16 %v517, %v515
        %v532 = vpack.c.bf16 %v520, %v518
        %v533 = vpack.c.bf16 %v521, %v519
        %v534 = vpack.c.bf16 %v524, %v522
        %v535 = vpack.c.bf16 %v525, %v523
        %v536 = vpack.c.bf16 %v528, %v526
        %v537 = vpack.c.bf16 %v529, %v527
        %538 = vxpose.xlu0.c.b16.start [1/8] %v530, 128
        %539 = vxpose.xlu0.c.b16.cont [2/8] %v532, 128
        %540 = vxpose.xlu0.c.b16.cont [3/8] %v534, 128
        %541 = vxpose.xlu0.c.b16.cont [4/8] %v536, 128
        %542 = vxpose.xlu0.c.b16.cont [5/8] 0, 128
        %543 = vxpose.xlu0.c.b16.cont [6/8] 0, 128
        %544 = vxpose.xlu0.c.b16.cont [7/8] 0, 128
        %545 = vxpose.xlu0.c.b16.end [8/8] 0, 128
        %v546 = vpop.trf.xlu0
        %v547 = vpop.trf.xlu0
        %v548 = vpop.trf.xlu0
        %v549 = vpop.trf.xlu0
        %v550 = vpop.trf.xlu0
        %v551 = vpop.trf.xlu0
        %v552 = vpop.trf.xlu0
        %v553 = vpop.trf.xlu0
        %554 = vxpose.xlu0.c.b16.start [1/8] %v531, 128
        %555 = vxpose.xlu0.c.b16.cont [2/8] %v533, 128
        %556 = vxpose.xlu0.c.b16.cont [3/8] %v535, 128
        %557 = vxpose.xlu0.c.b16.cont [4/8] %v537, 128
        %558 = vxpose.xlu0.c.b16.cont [5/8] 0, 128
        %559 = vxpose.xlu0.c.b16.cont [6/8] 0, 128
        %560 = vxpose.xlu0.c.b16.cont [7/8] 0, 128
        %561 = vxpose.xlu0.c.b16.end [8/8] 0, 128
        %v562 = vpop.trf.xlu0
        %v563 = vpop.trf.xlu0
        %v564 = vpop.trf.xlu0
        %v565 = vpop.trf.xlu0
        %v566 = vpop.trf.xlu0
        %v567 = vpop.trf.xlu0
        %v568 = vpop.trf.xlu0
        %v569 = vpop.trf.xlu0
        %v570 = vld [vmem:[%s3] sm:$0xf]
        %v571 = vld [vmem:[%s3 + $0x4] sm:$0xf]
        %v572 = vld [vmem:[%s3 + $0x8] sm:$0xf]
        %v573 = vld [vmem:[%s3 + $0xc] sm:$0xf]
        %v574 = vld [vmem:[%s3 + $0x10] sm:$0xf]
        %v575 = vld [vmem:[%s3 + $0x14] sm:$0xf]
        %v576 = vld [vmem:[%s3 + $0x18] sm:$0xf]
        %v577 = vld [vmem:[%s3 + $0x1c] sm:$0xf]
        %v578 = vld [vmem:[#allocation2] sm:$0x1]
        %v580 = vlaneseq
        %v581 = vshrl.u32 %v580, 7
        %v582 = vsub.s32 0, %v581
        %v583 = vrot.slane %v578, %v582
        %v593 = vunpack.c.l.b16 %v570
        %v594 = vunpack.c.l.b16 %v571
        %v595 = vunpack.c.l.b16 %v572
        %v596 = vunpack.c.l.b16 %v573
        %v597 = vunpack.c.l.b16 %v574
        %v598 = vunpack.c.l.b16 %v575
        %v599 = vunpack.c.l.b16 %v576
        %v600 = vunpack.c.l.b16 %v577
        %v601 = vpack.c.b16 %v594, %v593
        %v602 = vpack.c.b16 %v596, %v595
        %v603 = vpack.c.b16 %v598, %v597
        %v604 = vpack.c.b16 %v600, %v599
        %vm609 = vcmask 523264
        %v611 = vsel %vm609, %v546, 0
        %v614 = vsel %vm609, %v547, 0
        %v617 = vsel %vm609, %v548, 0
        %v620 = vsel %vm609, %v549, 0
        %v623 = vsel %vm609, %v550, 0
        %v626 = vsel %vm609, %v551, 0
        %v629 = vsel %vm609, %v552, 0
        %v632 = vsel %vm609, %v553, 0
        %v635 = vsel %vm609, %v562, 0
        %v638 = vsel %vm609, %v563, 0
        %v641 = vsel %vm609, %v564, 0
        %v644 = vsel %vm609, %v565, 0
        %v647 = vsel %vm609, %v566, 0
        %v650 = vsel %vm609, %v567, 0
        %v653 = vsel %vm609, %v568, 0
        %v656 = vsel %vm609, %v569, 0
        %658 = vmatprep.subr.bf16.mxu0 0
        %659 = vmatpush1.bf16.msra.mxu0 %v601
        %660 = vmatprep.subr.bf16.mxu0 0
        %661 = vmatpush1.bf16.msra.mxu0 %v602
        %662 = vmatprep.subr.bf16.mxu0 0
        %663 = vmatpush1.bf16.msra.mxu0 %v603
        %664 = vmatprep.subr.bf16.mxu0 0
        %665 = vmatpush1.bf16.msra.mxu0 %v604
        %666 = vmatprep.subr.bf16.mxu0 0
        %667 = vmatpush1.bf16.msra.mxu0 0
        %668 = vmatprep.subr.bf16.mxu0 0
        %669 = vmatpush1.bf16.msra.mxu0 0
        %670 = vmatprep.subr.bf16.mxu0 0
        %671 = vmatpush1.bf16.msra.mxu0 0
        %672 = vmatprep.subr.bf16.mxu0 0
        %673 = vmatpush1.bf16.msra.mxu0 0
        %674 = vmatprep.subr.bf16.mxu0 0
        %675 = vmatpush1.bf16.msra.mxu0 0
        %676 = vmatprep.subr.bf16.mxu0 0
        %677 = vmatpush1.bf16.msra.mxu0 0
        %678 = vmatprep.subr.bf16.mxu0 0
        %679 = vmatpush1.bf16.msra.mxu0 0
        %680 = vmatprep.subr.bf16.mxu0 0
        %681 = vmatpush1.bf16.msra.mxu0 0
        %682 = vmatprep.subr.bf16.mxu0 0
        %683 = vmatpush1.bf16.msra.mxu0 0
        %684 = vmatprep.subr.bf16.mxu0 0
        %685 = vmatpush1.bf16.msra.mxu0 0
        %686 = vmatprep.subr.bf16.mxu0 0
        %687 = vmatpush1.bf16.msra.mxu0 0
        %688 = vmatprep.subr.bf16.mxu0 0
        %689 = vmatpush1.bf16.msra.mxu0 0
        %690 = vmatprep.mubr.bf16.mxu0 0
        %691 = vmatmul.mubr.bf16.gmra.mrb[0].mxu0 %v611
        %v692 = vpop.f32.mrb[0].mxu0
        %v693 = vadd.f32 %v583, %v692
        %v694 = vpop.f32.mrb[0].mxu0
        %v695 = vpop.f32.mrb[0].mxu0
        %v696 = vadd.f32 %v583, %v695
        %v697 = vpop.f32.mrb[0].mxu0
        %698 = vmatprep.mubr.bf16.mxu0 0
        %699 = vmatmul.mubr.bf16.gmra.mrb[0].mxu0 %v614
        %v700 = vpop.f32.mrb[0].mxu0
        %v701 = vadd.f32 %v583, %v700
        %v702 = vpop.f32.mrb[0].mxu0
        %v703 = vpop.f32.mrb[0].mxu0
        %v704 = vadd.f32 %v583, %v703
        %v705 = vpop.f32.mrb[0].mxu0
        %706 = vmatprep.mubr.bf16.mxu0 0
        %707 = vmatmul.mubr.bf16.gmra.mrb[0].mxu0 %v617
        %v708 = vpop.f32.mrb[0].mxu0
        %v709 = vadd.f32 %v583, %v708
        %v710 = vpop.f32.mrb[0].mxu0
        %v711 = vpop.f32.mrb[0].mxu0
        %v712 = vadd.f32 %v583, %v711
        %v713 = vpop.f32.mrb[0].mxu0
        %714 = vmatprep.mubr.bf16.mxu0 0
        %715 = vmatmul.mubr.bf16.gmra.mrb[0].mxu0 %v620
        %v716 = vpop.f32.mrb[0].mxu0
        %v717 = vadd.f32 %v583, %v716
        %v718 = vpop.f32.mrb[0].mxu0
        %v719 = vpop.f32.mrb[0].mxu0
        %v720 = vadd.f32 %v583, %v719
        %v721 = vpop.f32.mrb[0].mxu0
        %722 = vmatprep.mubr.bf16.mxu0 0
        %723 = vmatmul.mubr.bf16.gmra.mrb[0].mxu0 %v623
        %v724 = vpop.f32.mrb[0].mxu0
        %v725 = vadd.f32 %v583, %v724
        %v726 = vpop.f32.mrb[0].mxu0
        %v727 = vpop.f32.mrb[0].mxu0
        %v728 = vadd.f32 %v583, %v727
        %v729 = vpop.f32.mrb[0].mxu0
        %730 = vmatprep.mubr.bf16.mxu0 0
        %731 = vmatmul.mubr.bf16.gmra.mrb[0].mxu0 %v626
        %v732 = vpop.f32.mrb[0].mxu0
        %v733 = vadd.f32 %v583, %v732
        %v734 = vpop.f32.mrb[0].mxu0
        %v735 = vpop.f32.mrb[0].mxu0
        %v736 = vadd.f32 %v583, %v735
        %v737 = vpop.f32.mrb[0].mxu0
        %738 = vmatprep.mubr.bf16.mxu0 0
        %739 = vmatmul.mubr.bf16.gmra.mrb[0].mxu0 %v629
        %v740 = vpop.f32.mrb[0].mxu0
        %v741 = vadd.f32 %v583, %v740
        %v742 = vpop.f32.mrb[0].mxu0
        %v743 = vpop.f32.mrb[0].mxu0
        %v744 = vadd.f32 %v583, %v743
        %v745 = vpop.f32.mrb[0].mxu0
        %746 = vmatprep.mubr.bf16.mxu0 0
        %747 = vmatmul.mubr.bf16.gmra.mrb[0].mxu0 %v632
        %v748 = vpop.f32.mrb[0].mxu0
        %v749 = vadd.f32 %v583, %v748
        %v750 = vpop.f32.mrb[0].mxu0
        %v751 = vpop.f32.mrb[0].mxu0
        %v752 = vadd.f32 %v583, %v751
        %v753 = vpop.f32.mrb[0].mxu0
        %754 = vmatprep.mubr.bf16.mxu0 0
        %755 = vmatmul.mubr.bf16.gmra.mrb[0].mxu0 %v635
        %v756 = vpop.f32.mrb[0].mxu0
        %v757 = vadd.f32 %v583, %v756
        %v758 = vpop.f32.mrb[0].mxu0
        %v759 = vpop.f32.mrb[0].mxu0
        %v760 = vadd.f32 %v583, %v759
        %v761 = vpop.f32.mrb[0].mxu0
        %762 = vmatprep.mubr.bf16.mxu0 0
        %763 = vmatmul.mubr.bf16.gmra.mrb[0].mxu0 %v638
        %v764 = vpop.f32.mrb[0].mxu0
        %v765 = vadd.f32 %v583, %v764
        %v766 = vpop.f32.mrb[0].mxu0
        %v767 = vpop.f32.mrb[0].mxu0
        %v768 = vadd.f32 %v583, %v767
        %v769 = vpop.f32.mrb[0].mxu0
        %770 = vmatprep.mubr.bf16.mxu0 0
        %771 = vmatmul.mubr.bf16.gmra.mrb[0].mxu0 %v641
        %v772 = vpop.f32.mrb[0].mxu0
        %v773 = vadd.f32 %v583, %v772
        %v774 = vpop.f32.mrb[0].mxu0
        %v775 = vpop.f32.mrb[0].mxu0
        %v776 = vadd.f32 %v583, %v775
        %v777 = vpop.f32.mrb[0].mxu0
        %778 = vmatprep.mubr.bf16.mxu0 0
        %779 = vmatmul.mubr.bf16.gmra.mrb[0].mxu0 %v644
        %v780 = vpop.f32.mrb[0].mxu0
        %v781 = vadd.f32 %v583, %v780
        %v782 = vpop.f32.mrb[0].mxu0
        %v783 = vpop.f32.mrb[0].mxu0
        %v784 = vadd.f32 %v583, %v783
        %v785 = vpop.f32.mrb[0].mxu0
        %786 = vmatprep.mubr.bf16.mxu0 0
        %787 = vmatmul.mubr.bf16.gmra.mrb[0].mxu0 %v647
        %v788 = vpop.f32.mrb[0].mxu0
        %v789 = vadd.f32 %v583, %v788
        %v790 = vpop.f32.mrb[0].mxu0
        %v791 = vpop.f32.mrb[0].mxu0
        %v792 = vadd.f32 %v583, %v791
        %v793 = vpop.f32.mrb[0].mxu0
        %794 = vmatprep.mubr.bf16.mxu0 0
        %795 = vmatmul.mubr.bf16.gmra.mrb[0].mxu0 %v650
        %v796 = vpop.f32.mrb[0].mxu0
        %v797 = vadd.f32 %v583, %v796
        %v798 = vpop.f32.mrb[0].mxu0
        %v799 = vpop.f32.mrb[0].mxu0
        %v800 = vadd.f32 %v583, %v799
        %v801 = vpop.f32.mrb[0].mxu0
        %802 = vmatprep.mubr.bf16.mxu0 0
        %803 = vmatmul.mubr.bf16.gmra.mrb[0].mxu0 %v653
        %v804 = vpop.f32.mrb[0].mxu0
        %v805 = vadd.f32 %v583, %v804
        %v806 = vpop.f32.mrb[0].mxu0
        %v807 = vpop.f32.mrb[0].mxu0
        %v808 = vadd.f32 %v583, %v807
        %v809 = vpop.f32.mrb[0].mxu0
        %810 = vmatprep.mubr.bf16.mxu0 0
        %811 = vmatmul.mubr.bf16.gmra.mrb[0].mxu0 %v656
        %v812 = vpop.f32.mrb[0].mxu0
        %v813 = vadd.f32 %v583, %v812
        %v814 = vpop.f32.mrb[0].mxu0
        %v815 = vpop.f32.mrb[0].mxu0
        %v816 = vadd.f32 %v583, %v815
        %v817 = vpop.f32.mrb[0].mxu0
        %818 = vdwg.mxu0
        %v819 = vmax.f32 %v693, 0.0
        %v820 = vmax.f32 %v696, 0.0
        %v821 = vmax.f32 %v701, 0.0
        %v822 = vmax.f32 %v704, 0.0
        %v823 = vmax.f32 %v709, 0.0
        %v824 = vmax.f32 %v712, 0.0
        %v825 = vmax.f32 %v717, 0.0
        %v826 = vmax.f32 %v720, 0.0
        %v827 = vmax.f32 %v725, 0.0
        %v828 = vmax.f32 %v728, 0.0
        %v829 = vmax.f32 %v733, 0.0
        %v830 = vmax.f32 %v736, 0.0
        %v831 = vmax.f32 %v741, 0.0
        %v832 = vmax.f32 %v744, 0.0
        %v833 = vmax.f32 %v749, 0.0
        %v834 = vmax.f32 %v752, 0.0
        %v835 = vmax.f32 %v757, 0.0
        %v836 = vmax.f32 %v760, 0.0
        %v837 = vmax.f32 %v765, 0.0
        %v838 = vmax.f32 %v768, 0.0
        %v839 = vmax.f32 %v773, 0.0
        %v840 = vmax.f32 %v776, 0.0
        %v841 = vmax.f32 %v781, 0.0
        %v842 = vmax.f32 %v784, 0.0
        %v843 = vmax.f32 %v789, 0.0
        %v844 = vmax.f32 %v792, 0.0
        %v845 = vmax.f32 %v797, 0.0
        %v846 = vmax.f32 %v800, 0.0
        %v847 = vmax.f32 %v805, 0.0
        %v848 = vmax.f32 %v808, 0.0
        %v849 = vmax.f32 %v813, 0.0
        %v850 = vmax.f32 %v816, 0.0
        %v851 = vpack.c.bf16 %v820, %v819
        %v852 = vpack.c.bf16 %v822, %v821
        %v853 = vpack.c.bf16 %v824, %v823
        %v854 = vpack.c.bf16 %v826, %v825
        %v855 = vpack.c.bf16 %v828, %v827
        %v856 = vpack.c.bf16 %v830, %v829
        %v857 = vpack.c.bf16 %v832, %v831
        %v858 = vpack.c.bf16 %v834, %v833
        %v859 = vpack.c.bf16 %v836, %v835
        %v860 = vpack.c.bf16 %v838, %v837
        %v861 = vpack.c.bf16 %v840, %v839
        %v862 = vpack.c.bf16 %v842, %v841
        %v863 = vpack.c.bf16 %v844, %v843
        %v864 = vpack.c.bf16 %v846, %v845
        %v865 = vpack.c.bf16 %v848, %v847
        %v866 = vpack.c.bf16 %v850, %v849
        %v867 = vld [vmem:[%s5] sm:$0xff]
        %v868 = vld [vmem:[%s5 + $0x8] sm:$0xff]
        %v869 = vld [vmem:[%s5 + $0x10] sm:$0xff]
        %v870 = vld [vmem:[%s5 + $0x18] sm:$0xff]
        %v871 = vld [vmem:[%s5 + $0x20] sm:$0xff]
        %v872 = vld [vmem:[%s5 + $0x28] sm:$0xff]
        %v873 = vld [vmem:[%s5 + $0x30] sm:$0xff]
        %v874 = vld [vmem:[%s5 + $0x38] sm:$0xff]
        %v875 = vld [vmem:[%s5 + $0x40] sm:$0xff]
        %v876 = vld [vmem:[%s5 + $0x48] sm:$0xff]
        %v877 = vld [vmem:[%s5 + $0x50] sm:$0xff]
        %v878 = vld [vmem:[%s5 + $0x58] sm:$0xff]
        %v879 = vld [vmem:[%s5 + $0x60] sm:$0xff]
        %v880 = vld [vmem:[%s5 + $0x68] sm:$0xff]
        %v881 = vld [vmem:[%s5 + $0x70] sm:$0xff]
        %v882 = vld [vmem:[%s5 + $0x78] sm:$0xff]
        %v883 = vld [vmem:[%s5 + $0x80] sm:$0xff]
        %v884 = vld [vmem:[%s5 + $0x88] sm:$0xff]
        %v885 = vld [vmem:[%s5 + $0x90] sm:$0xff]
        %v886 = vld [vmem:[%s5 + $0x98] sm:$0xff]
        %v887 = vld [vmem:[%s5 + $0xa0] sm:$0xff]
        %v888 = vld [vmem:[%s5 + $0xa8] sm:$0xff]
        %v889 = vld [vmem:[%s5 + $0xb0] sm:$0xff]
        %v890 = vld [vmem:[%s5 + $0xb8] sm:$0xff]
        %v891 = vld [vmem:[%s5 + $0xc0] sm:$0xff]
        %v892 = vld [vmem:[%s5 + $0xc8] sm:$0xff]
        %v893 = vld [vmem:[%s5 + $0xd0] sm:$0xff]
        %v894 = vld [vmem:[%s5 + $0xd8] sm:$0xff]
        %v895 = vld [vmem:[%s5 + $0xe0] sm:$0xff]
        %v896 = vld [vmem:[%s5 + $0xe8] sm:$0xff]
        %v897 = vld [vmem:[%s5 + $0xf0] sm:$0xff]
        %v898 = vld [vmem:[%s5 + $0xf8] sm:$0xff]
        %v899 = vld [vmem:[%s5 + $0x100] sm:$0xff]
        %v900 = vld [vmem:[%s5 + $0x108] sm:$0xff]
        %v901 = vld [vmem:[%s5 + $0x110] sm:$0xff]
        %v902 = vld [vmem:[%s5 + $0x118] sm:$0xff]
        %v903 = vld [vmem:[%s5 + $0x120] sm:$0xff]
        %v904 = vld [vmem:[%s5 + $0x128] sm:$0xff]
        %v905 = vld [vmem:[%s5 + $0x130] sm:$0xff]
        %v906 = vld [vmem:[%s5 + $0x138] sm:$0xff]
        %v907 = vld [vmem:[%s5 + $0x140] sm:$0xff]
        %v908 = vld [vmem:[%s5 + $0x148] sm:$0xff]
        %v909 = vld [vmem:[%s5 + $0x150] sm:$0xff]
        %v910 = vld [vmem:[%s5 + $0x158] sm:$0xff]
        %v911 = vld [vmem:[%s5 + $0x160] sm:$0xff]
        %v912 = vld [vmem:[%s5 + $0x168] sm:$0xff]
        %v913 = vld [vmem:[%s5 + $0x170] sm:$0xff]
        %v914 = vld [vmem:[%s5 + $0x178] sm:$0xff]
        %v915 = vld [vmem:[%s5 + $0x180] sm:$0xff]
        %v916 = vld [vmem:[%s5 + $0x188] sm:$0xff]
        %v917 = vld [vmem:[%s5 + $0x190] sm:$0xff]
        %v918 = vld [vmem:[%s5 + $0x198] sm:$0xff]
        %v919 = vld [vmem:[%s5 + $0x1a0] sm:$0xff]
        %v920 = vld [vmem:[%s5 + $0x1a8] sm:$0xff]
        %v921 = vld [vmem:[%s5 + $0x1b0] sm:$0xff]
        %v922 = vld [vmem:[%s5 + $0x1b8] sm:$0xff]
        %v923 = vld [vmem:[%s5 + $0x1c0] sm:$0xff]
        %v924 = vld [vmem:[%s5 + $0x1c8] sm:$0xff]
        %v925 = vld [vmem:[%s5 + $0x1d0] sm:$0xff]
        %v926 = vld [vmem:[%s5 + $0x1d8] sm:$0xff]
        %v927 = vld [vmem:[%s5 + $0x1e0] sm:$0xff]
        %v928 = vld [vmem:[%s5 + $0x1e8] sm:$0xff]
        %v929 = vld [vmem:[%s5 + $0x1f0] sm:$0xff]
        %v930 = vld [vmem:[%s5 + $0x1f8] sm:$0xff]
        %v931 = vld [vmem:[#allocation4] sm:$0xff]
        %v933 = vlaneseq
        %v934 = vshrl.u32 %v933, 7
        %v935 = vsub.s32 0, %v934
        %v936 = vrot.slane %v931, %v935
        %v937 = vlaneseq
        %v938 = vshrl.u32 %v937, 7
        %v939 = vsub.s32 1, %v938
        %v940 = vrot.slane %v931, %v939
        %v941 = vlaneseq
        %v942 = vshrl.u32 %v941, 7
        %v943 = vsub.s32 2, %v942
        %v944 = vrot.slane %v931, %v943
        %v945 = vlaneseq
        %v946 = vshrl.u32 %v945, 7
        %v947 = vsub.s32 3, %v946
        %v948 = vrot.slane %v931, %v947
        %v949 = vlaneseq
        %v950 = vshrl.u32 %v949, 7
        %v951 = vsub.s32 4, %v950
        %v952 = vrot.slane %v931, %v951
        %v953 = vlaneseq
        %v954 = vshrl.u32 %v953, 7
        %v955 = vsub.s32 5, %v954
        %v956 = vrot.slane %v931, %v955
        %v957 = vlaneseq
        %v958 = vshrl.u32 %v957, 7
        %v959 = vsub.s32 6, %v958
        %v960 = vrot.slane %v931, %v959
        %v961 = vlaneseq
        %v962 = vshrl.u32 %v961, 7
        %v963 = vsub.s32 7, %v962
        %v964 = vrot.slane %v931, %v963
        %v1037 = vunpack.c.l.b16 %v867
        %v1038 = vunpack.c.h.b16 %v867
        %v1039 = vunpack.c.l.b16 %v868
        %v1040 = vunpack.c.h.b16 %v868
        %v1041 = vunpack.c.l.b16 %v869
        %v1042 = vunpack.c.h.b16 %v869
        %v1043 = vunpack.c.l.b16 %v870
        %v1044 = vunpack.c.h.b16 %v870
        %v1045 = vunpack.c.l.b16 %v871
        %v1046 = vunpack.c.h.b16 %v871
        %v1047 = vunpack.c.l.b16 %v872
        %v1048 = vunpack.c.h.b16 %v872
        %v1049 = vunpack.c.l.b16 %v873
        %v1050 = vunpack.c.h.b16 %v873
        %v1051 = vunpack.c.l.b16 %v874
        %v1052 = vunpack.c.h.b16 %v874
        %v1053 = vunpack.c.l.b16 %v875
        %v1054 = vunpack.c.h.b16 %v875
        %v1055 = vunpack.c.l.b16 %v876
        %v1056 = vunpack.c.h.b16 %v876
        %v1057 = vunpack.c.l.b16 %v877
        %v1058 = vunpack.c.h.b16 %v877
        %v1059 = vunpack.c.l.b16 %v878
        %v1060 = vunpack.c.h.b16 %v878
        %v1061 = vunpack.c.l.b16 %v879
        %v1062 = vunpack.c.h.b16 %v879
        %v1063 = vunpack.c.l.b16 %v880
        %v1064 = vunpack.c.h.b16 %v880
        %v1065 = vunpack.c.l.b16 %v881
        %v1066 = vunpack.c.h.b16 %v881
        %v1067 = vunpack.c.l.b16 %v882
        %v1068 = vunpack.c.h.b16 %v882
        %v1069 = vunpack.c.l.b16 %v883
        %v1070 = vunpack.c.h.b16 %v883
        %v1071 = vunpack.c.l.b16 %v884
        %v1072 = vunpack.c.h.b16 %v884
        %v1073 = vunpack.c.l.b16 %v885
        %v1074 = vunpack.c.h.b16 %v885
        %v1075 = vunpack.c.l.b16 %v886
        %v1076 = vunpack.c.h.b16 %v886
        %v1077 = vunpack.c.l.b16 %v887
        %v1078 = vunpack.c.h.b16 %v887
        %v1079 = vunpack.c.l.b16 %v888
        %v1080 = vunpack.c.h.b16 %v888
        %v1081 = vunpack.c.l.b16 %v889
        %v1082 = vunpack.c.h.b16 %v889
        %v1083 = vunpack.c.l.b16 %v890
        %v1084 = vunpack.c.h.b16 %v890
        %v1085 = vunpack.c.l.b16 %v891
        %v1086 = vunpack.c.h.b16 %v891
        %v1087 = vunpack.c.l.b16 %v892
        %v1088 = vunpack.c.h.b16 %v892
        %v1089 = vunpack.c.l.b16 %v893
        %v1090 = vunpack.c.h.b16 %v893
        %v1091 = vunpack.c.l.b16 %v894
        %v1092 = vunpack.c.h.b16 %v894
        %v1093 = vunpack.c.l.b16 %v895
        %v1094 = vunpack.c.h.b16 %v895
        %v1095 = vunpack.c.l.b16 %v896
        %v1096 = vunpack.c.h.b16 %v896
        %v1097 = vunpack.c.l.b16 %v897
        %v1098 = vunpack.c.h.b16 %v897
        %v1099 = vunpack.c.l.b16 %v898
        %v1100 = vunpack.c.h.b16 %v898
        %v1101 = vunpack.c.l.b16 %v899
        %v1102 = vunpack.c.h.b16 %v899
        %v1103 = vunpack.c.l.b16 %v900
        %v1104 = vunpack.c.h.b16 %v900
        %v1105 = vunpack.c.l.b16 %v901
        %v1106 = vunpack.c.h.b16 %v901
        %v1107 = vunpack.c.l.b16 %v902
        %v1108 = vunpack.c.h.b16 %v902
        %v1109 = vunpack.c.l.b16 %v903
        %v1110 = vunpack.c.h.b16 %v903
        %v1111 = vunpack.c.l.b16 %v904
        %v1112 = vunpack.c.h.b16 %v904
        %v1113 = vunpack.c.l.b16 %v905
        %v1114 = vunpack.c.h.b16 %v905
        %v1115 = vunpack.c.l.b16 %v906
        %v1116 = vunpack.c.h.b16 %v906
        %v1117 = vunpack.c.l.b16 %v907
        %v1118 = vunpack.c.h.b16 %v907
        %v1119 = vunpack.c.l.b16 %v908
        %v1120 = vunpack.c.h.b16 %v908
        %v1121 = vunpack.c.l.b16 %v909
        %v1122 = vunpack.c.h.b16 %v909
        %v1123 = vunpack.c.l.b16 %v910
        %v1124 = vunpack.c.h.b16 %v910
        %v1125 = vunpack.c.l.b16 %v911
        %v1126 = vunpack.c.h.b16 %v911
        %v1127 = vunpack.c.l.b16 %v912
        %v1128 = vunpack.c.h.b16 %v912
        %v1129 = vunpack.c.l.b16 %v913
        %v1130 = vunpack.c.h.b16 %v913
        %v1131 = vunpack.c.l.b16 %v914
        %v1132 = vunpack.c.h.b16 %v914
        %v1133 = vunpack.c.l.b16 %v915
        %v1134 = vunpack.c.h.b16 %v915
        %v1135 = vunpack.c.l.b16 %v916
        %v1136 = vunpack.c.h.b16 %v916
        %v1137 = vunpack.c.l.b16 %v917
        %v1138 = vunpack.c.h.b16 %v917
        %v1139 = vunpack.c.l.b16 %v918
        %v1140 = vunpack.c.h.b16 %v918
        %v1141 = vunpack.c.l.b16 %v919
        %v1142 = vunpack.c.h.b16 %v919
        %v1143 = vunpack.c.l.b16 %v920
        %v1144 = vunpack.c.h.b16 %v920
        %v1145 = vunpack.c.l.b16 %v921
        %v1146 = vunpack.c.h.b16 %v921
        %v1147 = vunpack.c.l.b16 %v922
        %v1148 = vunpack.c.h.b16 %v922
        %v1149 = vunpack.c.l.b16 %v923
        %v1150 = vunpack.c.h.b16 %v923
        %v1151 = vunpack.c.l.b16 %v924
        %v1152 = vunpack.c.h.b16 %v924
        %v1153 = vunpack.c.l.b16 %v925
        %v1154 = vunpack.c.h.b16 %v925
        %v1155 = vunpack.c.l.b16 %v926
        %v1156 = vunpack.c.h.b16 %v926
        %v1157 = vunpack.c.l.b16 %v927
        %v1158 = vunpack.c.h.b16 %v927
        %v1159 = vunpack.c.l.b16 %v928
        %v1160 = vunpack.c.h.b16 %v928
        %v1161 = vunpack.c.l.b16 %v929
        %v1162 = vunpack.c.h.b16 %v929
        %v1163 = vunpack.c.l.b16 %v930
        %v1164 = vunpack.c.h.b16 %v930
        %v1165 = vpack.c.b16 %v1045, %v1037
        %v1166 = vpack.c.b16 %v1046, %v1038
        %v1167 = vpack.c.b16 %v1047, %v1039
        %v1168 = vpack.c.b16 %v1048, %v1040
        %v1169 = vpack.c.b16 %v1049, %v1041
        %v1170 = vpack.c.b16 %v1050, %v1042
        %v1171 = vpack.c.b16 %v1051, %v1043
        %v1172 = vpack.c.b16 %v1052, %v1044
        %v1173 = vpack.c.b16 %v1061, %v1053
        %v1174 = vpack.c.b16 %v1062, %v1054
        %v1175 = vpack.c.b16 %v1063, %v1055
        %v1176 = vpack.c.b16 %v1064, %v1056
        %v1177 = vpack.c.b16 %v1065, %v1057
        %v1178 = vpack.c.b16 %v1066, %v1058
        %v1179 = vpack.c.b16 %v1067, %v1059
        %v1180 = vpack.c.b16 %v1068, %v1060
        %v1181 = vpack.c.b16 %v1077, %v1069
        %v1182 = vpack.c.b16 %v1078, %v1070
        %v1183 = vpack.c.b16 %v1079, %v1071
        %v1184 = vpack.c.b16 %v1080, %v1072
        %v1185 = vpack.c.b16 %v1081, %v1073
        %v1186 = vpack.c.b16 %v1082, %v1074
        %v1187 = vpack.c.b16 %v1083, %v1075
        %v1188 = vpack.c.b16 %v1084, %v1076
        %v1189 = vpack.c.b16 %v1093, %v1085
        %v1190 = vpack.c.b16 %v1094, %v1086
        %v1191 = vpack.c.b16 %v1095, %v1087
        %v1192 = vpack.c.b16 %v1096, %v1088
        %v1193 = vpack.c.b16 %v1097, %v1089
        %v1194 = vpack.c.b16 %v1098, %v1090
        %v1195 = vpack.c.b16 %v1099, %v1091
        %v1196 = vpack.c.b16 %v1100, %v1092
        %v1197 = vpack.c.b16 %v1109, %v1101
        %v1198 = vpack.c.b16 %v1110, %v1102
        %v1199 = vpack.c.b16 %v1111, %v1103
        %v1200 = vpack.c.b16 %v1112, %v1104
        %v1201 = vpack.c.b16 %v1113, %v1105
        %v1202 = vpack.c.b16 %v1114, %v1106
        %v1203 = vpack.c.b16 %v1115, %v1107
        %v1204 = vpack.c.b16 %v1116, %v1108
        %v1205 = vpack.c.b16 %v1125, %v1117
        %v1206 = vpack.c.b16 %v1126, %v1118
        %v1207 = vpack.c.b16 %v1127, %v1119
        %v1208 = vpack.c.b16 %v1128, %v1120
        %v1209 = vpack.c.b16 %v1129, %v1121
        %v1210 = vpack.c.b16 %v1130, %v1122
        %v1211 = vpack.c.b16 %v1131, %v1123
        %v1212 = vpack.c.b16 %v1132, %v1124
        %v1213 = vpack.c.b16 %v1141, %v1133
        %v1214 = vpack.c.b16 %v1142, %v1134
        %v1215 = vpack.c.b16 %v1143, %v1135
        %v1216 = vpack.c.b16 %v1144, %v1136
        %v1217 = vpack.c.b16 %v1145, %v1137
        %v1218 = vpack.c.b16 %v1146, %v1138
        %v1219 = vpack.c.b16 %v1147, %v1139
        %v1220 = vpack.c.b16 %v1148, %v1140
        %v1221 = vpack.c.b16 %v1157, %v1149
        %v1222 = vpack.c.b16 %v1158, %v1150
        %v1223 = vpack.c.b16 %v1159, %v1151
        %v1224 = vpack.c.b16 %v1160, %v1152
        %v1225 = vpack.c.b16 %v1161, %v1153
        %v1226 = vpack.c.b16 %v1162, %v1154
        %v1227 = vpack.c.b16 %v1163, %v1155
        %v1228 = vpack.c.b16 %v1164, %v1156
        %1293 = vmatprep.subr.bf16.mxu0 %v1166
        %1294 = vmatpush1.bf16.msra.mxu0 %v1165
        %1295 = vmatprep.subr.bf16.mxu0 %v1174
        %1296 = vmatpush1.bf16.msra.mxu0 %v1173
        %1297 = vmatprep.subr.bf16.mxu0 %v1182
        %1298 = vmatpush1.bf16.msra.mxu0 %v1181
        %1299 = vmatprep.subr.bf16.mxu0 %v1190
        %1300 = vmatpush1.bf16.msra.mxu0 %v1189
        %1301 = vmatprep.subr.bf16.mxu0 %v1198
        %1302 = vmatpush1.bf16.msra.mxu0 %v1197
        %1303 = vmatprep.subr.bf16.mxu0 %v1206
        %1304 = vmatpush1.bf16.msra.mxu0 %v1205
        %1305 = vmatprep.subr.bf16.mxu0 %v1214
        %1306 = vmatpush1.bf16.msra.mxu0 %v1213
        %1307 = vmatprep.subr.bf16.mxu0 %v1222
        %1308 = vmatpush1.bf16.msra.mxu0 %v1221
        %1309 = vmatprep.subr.bf16.mxu0 0
        %1310 = vmatpush1.bf16.msra.mxu0 0
        %1311 = vmatprep.subr.bf16.mxu0 0
        %1312 = vmatpush1.bf16.msra.mxu0 0
        %1313 = vmatprep.subr.bf16.mxu0 0
        %1314 = vmatpush1.bf16.msra.mxu0 0
        %1315 = vmatprep.subr.bf16.mxu0 0
        %1316 = vmatpush1.bf16.msra.mxu0 0
        %1317 = vmatprep.subr.bf16.mxu0 0
        %1318 = vmatpush1.bf16.msra.mxu0 0
        %1319 = vmatprep.subr.bf16.mxu0 0
        %1320 = vmatpush1.bf16.msra.mxu0 0
        %1321 = vmatprep.subr.bf16.mxu0 0
        %1322 = vmatpush1.bf16.msra.mxu0 0
        %1323 = vmatprep.subr.bf16.mxu0 0
        %1324 = vmatpush1.bf16.msra.mxu0 0
        %1325 = vmatprep.mubr.bf16.mxu0 0
        %1326 = vmatmul.mubr.bf16.gmra.mrb[0].mxu0 %v851
        %v1327 = vpop.f32.mrb[0].mxu0
        %v1328 = vadd.f32 %v936, %v1327
        %v1329 = vpop.f32.mrb[0].mxu0
        %v1330 = vadd.f32 %v940, %v1329
        %v1331 = vpop.f32.mrb[0].mxu0
        %v1332 = vadd.f32 %v936, %v1331
        %v1333 = vpop.f32.mrb[0].mxu0
        %v1334 = vadd.f32 %v940, %v1333
        %1335 = vmatprep.mubr.bf16.mxu0 0
        %1336 = vmatmul.mubr.bf16.gmra.mrb[0].mxu0 %v852
        %v1337 = vpop.f32.mrb[0].mxu0
        %v1338 = vadd.f32 %v936, %v1337
        %v1339 = vpop.f32.mrb[0].mxu0
        %v1340 = vadd.f32 %v940, %v1339
        %v1341 = vpop.f32.mrb[0].mxu0
        %v1342 = vadd.f32 %v936, %v1341
        %v1343 = vpop.f32.mrb[0].mxu0
        %v1344 = vadd.f32 %v940, %v1343
        %1345 = vmatprep.mubr.bf16.mxu0 0
        %1346 = vmatmul.mubr.bf16.gmra.mrb[0].mxu0 %v853
        %v1347 = vpop.f32.mrb[0].mxu0
        %v1348 = vadd.f32 %v936, %v1347
        %v1349 = vpop.f32.mrb[0].mxu0
        %v1350 = vadd.f32 %v940, %v1349
        %v1351 = vpop.f32.mrb[0].mxu0
        %v1352 = vadd.f32 %v936, %v1351
        %v1353 = vpop.f32.mrb[0].mxu0
        %v1354 = vadd.f32 %v940, %v1353
        %1355 = vmatprep.mubr.bf16.mxu0 0
        %1356 = vmatmul.mubr.bf16.gmra.mrb[0].mxu0 %v854
        %v1357 = vpop.f32.mrb[0].mxu0
        %v1358 = vadd.f32 %v936, %v1357
        %v1359 = vpop.f32.mrb[0].mxu0
        %v1360 = vadd.f32 %v940, %v1359
        %v1361 = vpop.f32.mrb[0].mxu0
        %v1362 = vadd.f32 %v936, %v1361
        %v1363 = vpop.f32.mrb[0].mxu0
        %v1364 = vadd.f32 %v940, %v1363
        %1365 = vmatprep.mubr.bf16.mxu0 0
        %1366 = vmatmul.mubr.bf16.gmra.mrb[0].mxu0 %v855
        %v1367 = vpop.f32.mrb[0].mxu0
        %v1368 = vadd.f32 %v936, %v1367
        %v1369 = vpop.f32.mrb[0].mxu0
        %v1370 = vadd.f32 %v940, %v1369
        %v1371 = vpop.f32.mrb[0].mxu0
        %v1372 = vadd.f32 %v936, %v1371
        %v1373 = vpop.f32.mrb[0].mxu0
        %v1374 = vadd.f32 %v940, %v1373
        %1375 = vmatprep.mubr.bf16.mxu0 0
        %1376 = vmatmul.mubr.bf16.gmra.mrb[0].mxu0 %v856
        %v1377 = vpop.f32.mrb[0].mxu0
        %v1378 = vadd.f32 %v936, %v1377
        %v1379 = vpop.f32.mrb[0].mxu0
        %v1380 = vadd.f32 %v940, %v1379
        %v1381 = vpop.f32.mrb[0].mxu0
        %v1382 = vadd.f32 %v936, %v1381
        %v1383 = vpop.f32.mrb[0].mxu0
        %v1384 = vadd.f32 %v940, %v1383
        %1385 = vmatprep.mubr.bf16.mxu0 0
        %1386 = vmatmul.mubr.bf16.gmra.mrb[0].mxu0 %v857
        %v1387 = vpop.f32.mrb[0].mxu0
        %v1388 = vadd.f32 %v936, %v1387
        %v1389 = vpop.f32.mrb[0].mxu0
        %v1390 = vadd.f32 %v940, %v1389
        %v1391 = vpop.f32.mrb[0].mxu0
        %v1392 = vadd.f32 %v936, %v1391
        %v1393 = vpop.f32.mrb[0].mxu0
        %v1394 = vadd.f32 %v940, %v1393
        %1395 = vmatprep.mubr.bf16.mxu0 0
        %1396 = vmatmul.mubr.bf16.gmra.mrb[0].mxu0 %v858
        %v1397 = vpop.f32.mrb[0].mxu0
        %v1398 = vadd.f32 %v936, %v1397
        %v1399 = vpop.f32.mrb[0].mxu0
        %v1400 = vadd.f32 %v940, %v1399
        %v1401 = vpop.f32.mrb[0].mxu0
        %v1402 = vadd.f32 %v936, %v1401
        %v1403 = vpop.f32.mrb[0].mxu0
        %v1404 = vadd.f32 %v940, %v1403
        %1405 = vmatprep.mubr.bf16.mxu0 0
        %1406 = vmatmul.mubr.bf16.gmra.mrb[0].mxu0 %v859
        %v1407 = vpop.f32.mrb[0].mxu0
        %v1408 = vadd.f32 %v936, %v1407
        %v1409 = vpop.f32.mrb[0].mxu0
        %v1410 = vadd.f32 %v940, %v1409
        %v1411 = vpop.f32.mrb[0].mxu0
        %v1412 = vadd.f32 %v936, %v1411
        %v1413 = vpop.f32.mrb[0].mxu0
        %v1414 = vadd.f32 %v940, %v1413
        %1415 = vmatprep.mubr.bf16.mxu0 0
        %1416 = vmatmul.mubr.bf16.gmra.mrb[0].mxu0 %v860
        %v1417 = vpop.f32.mrb[0].mxu0
        %v1418 = vadd.f32 %v936, %v1417
        %v1419 = vpop.f32.mrb[0].mxu0
        %v1420 = vadd.f32 %v940, %v1419
        %v1421 = vpop.f32.mrb[0].mxu0
        %v1422 = vadd.f32 %v936, %v1421
        %v1423 = vpop.f32.mrb[0].mxu0
        %v1424 = vadd.f32 %v940, %v1423
        %1425 = vmatprep.mubr.bf16.mxu0 0
        %1426 = vmatmul.mubr.bf16.gmra.mrb[0].mxu0 %v861
        %v1427 = vpop.f32.mrb[0].mxu0
        %v1428 = vadd.f32 %v936, %v1427
        %v1429 = vpop.f32.mrb[0].mxu0
        %v1430 = vadd.f32 %v940, %v1429
        %v1431 = vpop.f32.mrb[0].mxu0
        %v1432 = vadd.f32 %v936, %v1431
        %v1433 = vpop.f32.mrb[0].mxu0
        %v1434 = vadd.f32 %v940, %v1433
        %1435 = vmatprep.mubr.bf16.mxu0 0
        %1436 = vmatmul.mubr.bf16.gmra.mrb[0].mxu0 %v862
        %v1437 = vpop.f32.mrb[0].mxu0
        %v1438 = vadd.f32 %v936, %v1437
        %v1439 = vpop.f32.mrb[0].mxu0
        %v1440 = vadd.f32 %v940, %v1439
        %v1441 = vpop.f32.mrb[0].mxu0
        %v1442 = vadd.f32 %v936, %v1441
        %v1443 = vpop.f32.mrb[0].mxu0
        %v1444 = vadd.f32 %v940, %v1443
        %1445 = vmatprep.mubr.bf16.mxu0 0
        %1446 = vmatmul.mubr.bf16.gmra.mrb[0].mxu0 %v863
        %v1447 = vpop.f32.mrb[0].mxu0
        %v1448 = vadd.f32 %v936, %v1447
        %v1449 = vpop.f32.mrb[0].mxu0
        %v1450 = vadd.f32 %v940, %v1449
        %v1451 = vpop.f32.mrb[0].mxu0
        %v1452 = vadd.f32 %v936, %v1451
        %v1453 = vpop.f32.mrb[0].mxu0
        %v1454 = vadd.f32 %v940, %v1453
        %1455 = vmatprep.mubr.bf16.mxu0 0
        %1456 = vmatmul.mubr.bf16.gmra.mrb[0].mxu0 %v864
        %v1457 = vpop.f32.mrb[0].mxu0
        %v1458 = vadd.f32 %v936, %v1457
        %v1459 = vpop.f32.mrb[0].mxu0
        %v1460 = vadd.f32 %v940, %v1459
        %v1461 = vpop.f32.mrb[0].mxu0
        %v1462 = vadd.f32 %v936, %v1461
        %v1463 = vpop.f32.mrb[0].mxu0
        %v1464 = vadd.f32 %v940, %v1463
        %1465 = vmatprep.mubr.bf16.mxu0 0
        %1466 = vmatmul.mubr.bf16.gmra.mrb[0].mxu0 %v865
        %v1467 = vpop.f32.mrb[0].mxu0
        %v1468 = vadd.f32 %v936, %v1467
        %v1469 = vpop.f32.mrb[0].mxu0
        %v1470 = vadd.f32 %v940, %v1469
        %v1471 = vpop.f32.mrb[0].mxu0
        %v1472 = vadd.f32 %v936, %v1471
        %v1473 = vpop.f32.mrb[0].mxu0
        %v1474 = vadd.f32 %v940, %v1473
        %1475 = vmatprep.mubr.bf16.mxu0 0
        %1476 = vmatmul.mubr.bf16.gmra.mrb[0].mxu0 %v866
        %v1477 = vpop.f32.mrb[0].mxu0
        %v1478 = vadd.f32 %v936, %v1477
        %v1479 = vpop.f32.mrb[0].mxu0
        %v1480 = vadd.f32 %v940, %v1479
        %v1481 = vpop.f32.mrb[0].mxu0
        %v1482 = vadd.f32 %v936, %v1481
        %v1483 = vpop.f32.mrb[0].mxu0
        %v1484 = vadd.f32 %v940, %v1483
        %1485 = vdwg.mxu0
        %1486 = vmatprep.subr.bf16.mxu0 %v1168
        %1487 = vmatpush1.bf16.msra.mxu0 %v1167
        %1488 = vmatprep.subr.bf16.mxu0 %v1176
        %1489 = vmatpush1.bf16.msra.mxu0 %v1175
        %1490 = vmatprep.subr.bf16.mxu0 %v1184
        %1491 = vmatpush1.bf16.msra.mxu0 %v1183
        %1492 = vmatprep.subr.bf16.mxu0 %v1192
        %1493 = vmatpush1.bf16.msra.mxu0 %v1191
        %1494 = vmatprep.subr.bf16.mxu0 %v1200
        %1495 = vmatpush1.bf16.msra.mxu0 %v1199
        %1496 = vmatprep.subr.bf16.mxu0 %v1208
        %1497 = vmatpush1.bf16.msra.mxu0 %v1207
        %1498 = vmatprep.subr.bf16.mxu0 %v1216
        %1499 = vmatpush1.bf16.msra.mxu0 %v1215
        %1500 = vmatprep.subr.bf16.mxu0 %v1224
        %1501 = vmatpush1.bf16.msra.mxu0 %v1223
        %1502 = vmatprep.subr.bf16.mxu0 0
        %1503 = vmatpush1.bf16.msra.mxu0 0
        %1504 = vmatprep.subr.bf16.mxu0 0
        %1505 = vmatpush1.bf16.msra.mxu0 0
        %1506 = vmatprep.subr.bf16.mxu0 0
        %1507 = vmatpush1.bf16.msra.mxu0 0
        %1508 = vmatprep.subr.bf16.mxu0 0
        %1509 = vmatpush1.bf16.msra.mxu0 0
        %1510 = vmatprep.subr.bf16.mxu0 0
        %1511 = vmatpush1.bf16.msra.mxu0 0
        %1512 = vmatprep.subr.bf16.mxu0 0
        %1513 = vmatpush1.bf16.msra.mxu0 0
        %1514 = vmatprep.subr.bf16.mxu0 0
        %1515 = vmatpush1.bf16.msra.mxu0 0
        %1516 = vmatprep.subr.bf16.mxu0 0
        %1517 = vmatpush1.bf16.msra.mxu0 0
        %1518 = vmatprep.mubr.bf16.mxu0 0
        %1519 = vmatmul.mubr.bf16.gmra.mrb[0].mxu0 %v851
        %v1520 = vpop.f32.mrb[0].mxu0
        %v1521 = vadd.f32 %v944, %v1520
        %v1522 = vpop.f32.mrb[0].mxu0
        %v1523 = vadd.f32 %v948, %v1522
        %v1524 = vpop.f32.mrb[0].mxu0
        %v1525 = vadd.f32 %v944, %v1524
        %v1526 = vpop.f32.mrb[0].mxu0
        %v1527 = vadd.f32 %v948, %v1526
        %1528 = vmatprep.mubr.bf16.mxu0 0
        %1529 = vmatmul.mubr.bf16.gmra.mrb[0].mxu0 %v852
        %v1530 = vpop.f32.mrb[0].mxu0
        %v1531 = vadd.f32 %v944, %v1530
        %v1532 = vpop.f32.mrb[0].mxu0
        %v1533 = vadd.f32 %v948, %v1532
        %v1534 = vpop.f32.mrb[0].mxu0
        %v1535 = vadd.f32 %v944, %v1534
        %v1536 = vpop.f32.mrb[0].mxu0
        %v1537 = vadd.f32 %v948, %v1536
        %1538 = vmatprep.mubr.bf16.mxu0 0
        %1539 = vmatmul.mubr.bf16.gmra.mrb[0].mxu0 %v853
        %v1540 = vpop.f32.mrb[0].mxu0
        %v1541 = vadd.f32 %v944, %v1540
        %v1542 = vpop.f32.mrb[0].mxu0
        %v1543 = vadd.f32 %v948, %v1542
        %v1544 = vpop.f32.mrb[0].mxu0
        %v1545 = vadd.f32 %v944, %v1544
        %v1546 = vpop.f32.mrb[0].mxu0
        %v1547 = vadd.f32 %v948, %v1546
        %1548 = vmatprep.mubr.bf16.mxu0 0
        %1549 = vmatmul.mubr.bf16.gmra.mrb[0].mxu0 %v854
        %v1550 = vpop.f32.mrb[0].mxu0
        %v1551 = vadd.f32 %v944, %v1550
        %v1552 = vpop.f32.mrb[0].mxu0
        %v1553 = vadd.f32 %v948, %v1552
        %v1554 = vpop.f32.mrb[0].mxu0
        %v1555 = vadd.f32 %v944, %v1554
        %v1556 = vpop.f32.mrb[0].mxu0
        %v1557 = vadd.f32 %v948, %v1556
        %1558 = vmatprep.mubr.bf16.mxu0 0
        %1559 = vmatmul.mubr.bf16.gmra.mrb[0].mxu0 %v855
        %v1560 = vpop.f32.mrb[0].mxu0
        %v1561 = vadd.f32 %v944, %v1560
        %v1562 = vpop.f32.mrb[0].mxu0
        %v1563 = vadd.f32 %v948, %v1562
        %v1564 = vpop.f32.mrb[0].mxu0
        %v1565 = vadd.f32 %v944, %v1564
        %v1566 = vpop.f32.mrb[0].mxu0
        %v1567 = vadd.f32 %v948, %v1566
        %1568 = vmatprep.mubr.bf16.mxu0 0
        %1569 = vmatmul.mubr.bf16.gmra.mrb[0].mxu0 %v856
        %v1570 = vpop.f32.mrb[0].mxu0
        %v1571 = vadd.f32 %v944, %v1570
        %v1572 = vpop.f32.mrb[0].mxu0
        %v1573 = vadd.f32 %v948, %v1572
        %v1574 = vpop.f32.mrb[0].mxu0
        %v1575 = vadd.f32 %v944, %v1574
        %v1576 = vpop.f32.mrb[0].mxu0
        %v1577 = vadd.f32 %v948, %v1576
        %1578 = vmatprep.mubr.bf16.mxu0 0
        %1579 = vmatmul.mubr.bf16.gmra.mrb[0].mxu0 %v857
        %v1580 = vpop.f32.mrb[0].mxu0
        %v1581 = vadd.f32 %v944, %v1580
        %v1582 = vpop.f32.mrb[0].mxu0
        %v1583 = vadd.f32 %v948, %v1582
        %v1584 = vpop.f32.mrb[0].mxu0
        %v1585 = vadd.f32 %v944, %v1584
        %v1586 = vpop.f32.mrb[0].mxu0
        %v1587 = vadd.f32 %v948, %v1586
        %1588 = vmatprep.mubr.bf16.mxu0 0
        %1589 = vmatmul.mubr.bf16.gmra.mrb[0].mxu0 %v858
        %v1590 = vpop.f32.mrb[0].mxu0
        %v1591 = vadd.f32 %v944, %v1590
        %v1592 = vpop.f32.mrb[0].mxu0
        %v1593 = vadd.f32 %v948, %v1592
        %v1594 = vpop.f32.mrb[0].mxu0
        %v1595 = vadd.f32 %v944, %v1594
        %v1596 = vpop.f32.mrb[0].mxu0
        %v1597 = vadd.f32 %v948, %v1596
        %1598 = vmatprep.mubr.bf16.mxu0 0
        %1599 = vmatmul.mubr.bf16.gmra.mrb[0].mxu0 %v859
        %v1600 = vpop.f32.mrb[0].mxu0
        %v1601 = vadd.f32 %v944, %v1600
        %v1602 = vpop.f32.mrb[0].mxu0
        %v1603 = vadd.f32 %v948, %v1602
        %v1604 = vpop.f32.mrb[0].mxu0
        %v1605 = vadd.f32 %v944, %v1604
        %v1606 = vpop.f32.mrb[0].mxu0
        %v1607 = vadd.f32 %v948, %v1606
        %1608 = vmatprep.mubr.bf16.mxu0 0
        %1609 = vmatmul.mubr.bf16.gmra.mrb[0].mxu0 %v860
        %v1610 = vpop.f32.mrb[0].mxu0
        %v1611 = vadd.f32 %v944, %v1610
        %v1612 = vpop.f32.mrb[0].mxu0
        %v1613 = vadd.f32 %v948, %v1612
        %v1614 = vpop.f32.mrb[0].mxu0
        %v1615 = vadd.f32 %v944, %v1614
        %v1616 = vpop.f32.mrb[0].mxu0
        %v1617 = vadd.f32 %v948, %v1616
        %1618 = vmatprep.mubr.bf16.mxu0 0
        %1619 = vmatmul.mubr.bf16.gmra.mrb[0].mxu0 %v861
        %v1620 = vpop.f32.mrb[0].mxu0
        %v1621 = vadd.f32 %v944, %v1620
        %v1622 = vpop.f32.mrb[0].mxu0
        %v1623 = vadd.f32 %v948, %v1622
        %v1624 = vpop.f32.mrb[0].mxu0
        %v1625 = vadd.f32 %v944, %v1624
        %v1626 = vpop.f32.mrb[0].mxu0
        %v1627 = vadd.f32 %v948, %v1626
        %1628 = vmatprep.mubr.bf16.mxu0 0
        %1629 = vmatmul.mubr.bf16.gmra.mrb[0].mxu0 %v862
        %v1630 = vpop.f32.mrb[0].mxu0
        %v1631 = vadd.f32 %v944, %v1630
        %v1632 = vpop.f32.mrb[0].mxu0
        %v1633 = vadd.f32 %v948, %v1632
        %v1634 = vpop.f32.mrb[0].mxu0
        %v1635 = vadd.f32 %v944, %v1634
        %v1636 = vpop.f32.mrb[0].mxu0
        %v1637 = vadd.f32 %v948, %v1636
        %1638 = vmatprep.mubr.bf16.mxu0 0
        %1639 = vmatmul.mubr.bf16.gmra.mrb[0].mxu0 %v863
        %v1640 = vpop.f32.mrb[0].mxu0
        %v1641 = vadd.f32 %v944, %v1640
        %v1642 = vpop.f32.mrb[0].mxu0
        %v1643 = vadd.f32 %v948, %v1642
        %v1644 = vpop.f32.mrb[0].mxu0
        %v1645 = vadd.f32 %v944, %v1644
        %v1646 = vpop.f32.mrb[0].mxu0
        %v1647 = vadd.f32 %v948, %v1646
        %1648 = vmatprep.mubr.bf16.mxu0 0
        %1649 = vmatmul.mubr.bf16.gmra.mrb[0].mxu0 %v864
        %v1650 = vpop.f32.mrb[0].mxu0
        %v1651 = vadd.f32 %v944, %v1650
        %v1652 = vpop.f32.mrb[0].mxu0
        %v1653 = vadd.f32 %v948, %v1652
        %v1654 = vpop.f32.mrb[0].mxu0
        %v1655 = vadd.f32 %v944, %v1654
        %v1656 = vpop.f32.mrb[0].mxu0
        %v1657 = vadd.f32 %v948, %v1656
        %1658 = vmatprep.mubr.bf16.mxu0 0
        %1659 = vmatmul.mubr.bf16.gmra.mrb[0].mxu0 %v865
        %v1660 = vpop.f32.mrb[0].mxu0
        %v1661 = vadd.f32 %v944, %v1660
        %v1662 = vpop.f32.mrb[0].mxu0
        %v1663 = vadd.f32 %v948, %v1662
        %v1664 = vpop.f32.mrb[0].mxu0
        %v1665 = vadd.f32 %v944, %v1664
        %v1666 = vpop.f32.mrb[0].mxu0
        %v1667 = vadd.f32 %v948, %v1666
        %1668 = vmatprep.mubr.bf16.mxu0 0
        %1669 = vmatmul.mubr.bf16.gmra.mrb[0].mxu0 %v866
        %v1670 = vpop.f32.mrb[0].mxu0
        %v1671 = vadd.f32 %v944, %v1670
        %v1672 = vpop.f32.mrb[0].mxu0
        %v1673 = vadd.f32 %v948, %v1672
        %v1674 = vpop.f32.mrb[0].mxu0
        %v1675 = vadd.f32 %v944, %v1674
        %v1676 = vpop.f32.mrb[0].mxu0
        %v1677 = vadd.f32 %v948, %v1676
        %1678 = vdwg.mxu0
        %1679 = vmatprep.subr.bf16.mxu0 %v1170
        %1680 = vmatpush1.bf16.msra.mxu0 %v1169
        %1681 = vmatprep.subr.bf16.mxu0 %v1178
        %1682 = vmatpush1.bf16.msra.mxu0 %v1177
        %1683 = vmatprep.subr.bf16.mxu0 %v1186
        %1684 = vmatpush1.bf16.msra.mxu0 %v1185
        %1685 = vmatprep.subr.bf16.mxu0 %v1194
        %1686 = vmatpush1.bf16.msra.mxu0 %v1193
        %1687 = vmatprep.subr.bf16.mxu0 %v1202
        %1688 = vmatpush1.bf16.msra.mxu0 %v1201
        %1689 = vmatprep.subr.bf16.mxu0 %v1210
        %1690 = vmatpush1.bf16.msra.mxu0 %v1209
        %1691 = vmatprep.subr.bf16.mxu0 %v1218
        %1692 = vmatpush1.bf16.msra.mxu0 %v1217
        %1693 = vmatprep.subr.bf16.mxu0 %v1226
        %1694 = vmatpush1.bf16.msra.mxu0 %v1225
        %1695 = vmatprep.subr.bf16.mxu0 0
        %1696 = vmatpush1.bf16.msra.mxu0 0
        %1697 = vmatprep.subr.bf16.mxu0 0
        %1698 = vmatpush1.bf16.msra.mxu0 0
        %1699 = vmatprep.subr.bf16.mxu0 0
        %1700 = vmatpush1.bf16.msra.mxu0 0
        %1701 = vmatprep.subr.bf16.mxu0 0
        %1702 = vmatpush1.bf16.msra.mxu0 0
        %1703 = vmatprep.subr.bf16.mxu0 0
        %1704 = vmatpush1.bf16.msra.mxu0 0
        %1705 = vmatprep.subr.bf16.mxu0 0
        %1706 = vmatpush1.bf16.msra.mxu0 0
        %1707 = vmatprep.subr.bf16.mxu0 0
        %1708 = vmatpush1.bf16.msra.mxu0 0
        %1709 = vmatprep.subr.bf16.mxu0 0
        %1710 = vmatpush1.bf16.msra.mxu0 0
        %1711 = vmatprep.mubr.bf16.mxu0 0
        %1712 = vmatmul.mubr.bf16.gmra.mrb[0].mxu0 %v851
        %v1713 = vpop.f32.mrb[0].mxu0
        %v1714 = vadd.f32 %v952, %v1713
        %v1715 = vpop.f32.mrb[0].mxu0
        %v1716 = vadd.f32 %v956, %v1715
        %v1717 = vpop.f32.mrb[0].mxu0
        %v1718 = vadd.f32 %v952, %v1717
        %v1719 = vpop.f32.mrb[0].mxu0
        %v1720 = vadd.f32 %v956, %v1719
        %1721 = vmatprep.mubr.bf16.mxu0 0
        %1722 = vmatmul.mubr.bf16.gmra.mrb[0].mxu0 %v852
        %v1723 = vpop.f32.mrb[0].mxu0
        %v1724 = vadd.f32 %v952, %v1723
        %v1725 = vpop.f32.mrb[0].mxu0
        %v1726 = vadd.f32 %v956, %v1725
        %v1727 = vpop.f32.mrb[0].mxu0
        %v1728 = vadd.f32 %v952, %v1727
        %v1729 = vpop.f32.mrb[0].mxu0
        %v1730 = vadd.f32 %v956, %v1729
        %1731 = vmatprep.mubr.bf16.mxu0 0
        %1732 = vmatmul.mubr.bf16.gmra.mrb[0].mxu0 %v853
        %v1733 = vpop.f32.mrb[0].mxu0
        %v1734 = vadd.f32 %v952, %v1733
        %v1735 = vpop.f32.mrb[0].mxu0
        %v1736 = vadd.f32 %v956, %v1735
        %v1737 = vpop.f32.mrb[0].mxu0
        %v1738 = vadd.f32 %v952, %v1737
        %v1739 = vpop.f32.mrb[0].mxu0
        %v1740 = vadd.f32 %v956, %v1739
        %1741 = vmatprep.mubr.bf16.mxu0 0
        %1742 = vmatmul.mubr.bf16.gmra.mrb[0].mxu0 %v854
        %v1743 = vpop.f32.mrb[0].mxu0
        %v1744 = vadd.f32 %v952, %v1743
        %v1745 = vpop.f32.mrb[0].mxu0
        %v1746 = vadd.f32 %v956, %v1745
        %v1747 = vpop.f32.mrb[0].mxu0
        %v1748 = vadd.f32 %v952, %v1747
        %v1749 = vpop.f32.mrb[0].mxu0
        %v1750 = vadd.f32 %v956, %v1749
        %1751 = vmatprep.mubr.bf16.mxu0 0
        %1752 = vmatmul.mubr.bf16.gmra.mrb[0].mxu0 %v855
        %v1753 = vpop.f32.mrb[0].mxu0
        %v1754 = vadd.f32 %v952, %v1753
        %v1755 = vpop.f32.mrb[0].mxu0
        %v1756 = vadd.f32 %v956, %v1755
        %v1757 = vpop.f32.mrb[0].mxu0
        %v1758 = vadd.f32 %v952, %v1757
        %v1759 = vpop.f32.mrb[0].mxu0
        %v1760 = vadd.f32 %v956, %v1759
        %1761 = vmatprep.mubr.bf16.mxu0 0
        %1762 = vmatmul.mubr.bf16.gmra.mrb[0].mxu0 %v856
        %v1763 = vpop.f32.mrb[0].mxu0
        %v1764 = vadd.f32 %v952, %v1763
        %v1765 = vpop.f32.mrb[0].mxu0
        %v1766 = vadd.f32 %v956, %v1765
        %v1767 = vpop.f32.mrb[0].mxu0
        %v1768 = vadd.f32 %v952, %v1767
        %v1769 = vpop.f32.mrb[0].mxu0
        %v1770 = vadd.f32 %v956, %v1769
        %1771 = vmatprep.mubr.bf16.mxu0 0
        %1772 = vmatmul.mubr.bf16.gmra.mrb[0].mxu0 %v857
        %v1773 = vpop.f32.mrb[0].mxu0
        %v1774 = vadd.f32 %v952, %v1773
        %v1775 = vpop.f32.mrb[0].mxu0
        %v1776 = vadd.f32 %v956, %v1775
        %v1777 = vpop.f32.mrb[0].mxu0
        %v1778 = vadd.f32 %v952, %v1777
        %v1779 = vpop.f32.mrb[0].mxu0
        %v1780 = vadd.f32 %v956, %v1779
        %1781 = vmatprep.mubr.bf16.mxu0 0
        %1782 = vmatmul.mubr.bf16.gmra.mrb[0].mxu0 %v858
        %v1783 = vpop.f32.mrb[0].mxu0
        %v1784 = vadd.f32 %v952, %v1783
        %v1785 = vpop.f32.mrb[0].mxu0
        %v1786 = vadd.f32 %v956, %v1785
        %v1787 = vpop.f32.mrb[0].mxu0
        %v1788 = vadd.f32 %v952, %v1787
        %v1789 = vpop.f32.mrb[0].mxu0
        %v1790 = vadd.f32 %v956, %v1789
        %1791 = vmatprep.mubr.bf16.mxu0 0
        %1792 = vmatmul.mubr.bf16.gmra.mrb[0].mxu0 %v859
        %v1793 = vpop.f32.mrb[0].mxu0
        %v1794 = vadd.f32 %v952, %v1793
        %v1795 = vpop.f32.mrb[0].mxu0
        %v1796 = vadd.f32 %v956, %v1795
        %v1797 = vpop.f32.mrb[0].mxu0
        %v1798 = vadd.f32 %v952, %v1797
        %v1799 = vpop.f32.mrb[0].mxu0
        %v1800 = vadd.f32 %v956, %v1799
        %1801 = vmatprep.mubr.bf16.mxu0 0
        %1802 = vmatmul.mubr.bf16.gmra.mrb[0].mxu0 %v860
        %v1803 = vpop.f32.mrb[0].mxu0
        %v1804 = vadd.f32 %v952, %v1803
        %v1805 = vpop.f32.mrb[0].mxu0
        %v1806 = vadd.f32 %v956, %v1805
        %v1807 = vpop.f32.mrb[0].mxu0
        %v1808 = vadd.f32 %v952, %v1807
        %v1809 = vpop.f32.mrb[0].mxu0
        %v1810 = vadd.f32 %v956, %v1809
        %1811 = vmatprep.mubr.bf16.mxu0 0
        %1812 = vmatmul.mubr.bf16.gmra.mrb[0].mxu0 %v861
        %v1813 = vpop.f32.mrb[0].mxu0
        %v1814 = vadd.f32 %v952, %v1813
        %v1815 = vpop.f32.mrb[0].mxu0
        %v1816 = vadd.f32 %v956, %v1815
        %v1817 = vpop.f32.mrb[0].mxu0
        %v1818 = vadd.f32 %v952, %v1817
        %v1819 = vpop.f32.mrb[0].mxu0
        %v1820 = vadd.f32 %v956, %v1819
        %1821 = vmatprep.mubr.bf16.mxu0 0
        %1822 = vmatmul.mubr.bf16.gmra.mrb[0].mxu0 %v862
        %v1823 = vpop.f32.mrb[0].mxu0
        %v1824 = vadd.f32 %v952, %v1823
        %v1825 = vpop.f32.mrb[0].mxu0
        %v1826 = vadd.f32 %v956, %v1825
        %v1827 = vpop.f32.mrb[0].mxu0
        %v1828 = vadd.f32 %v952, %v1827
        %v1829 = vpop.f32.mrb[0].mxu0
        %v1830 = vadd.f32 %v956, %v1829
        %1831 = vmatprep.mubr.bf16.mxu0 0
        %1832 = vmatmul.mubr.bf16.gmra.mrb[0].mxu0 %v863
        %v1833 = vpop.f32.mrb[0].mxu0
        %v1834 = vadd.f32 %v952, %v1833
        %v1835 = vpop.f32.mrb[0].mxu0
        %v1836 = vadd.f32 %v956, %v1835
        %v1837 = vpop.f32.mrb[0].mxu0
        %v1838 = vadd.f32 %v952, %v1837
        %v1839 = vpop.f32.mrb[0].mxu0
        %v1840 = vadd.f32 %v956, %v1839
        %1841 = vmatprep.mubr.bf16.mxu0 0
        %1842 = vmatmul.mubr.bf16.gmra.mrb[0].mxu0 %v864
        %v1843 = vpop.f32.mrb[0].mxu0
        %v1844 = vadd.f32 %v952, %v1843
        %v1845 = vpop.f32.mrb[0].mxu0
        %v1846 = vadd.f32 %v956, %v1845
        %v1847 = vpop.f32.mrb[0].mxu0
        %v1848 = vadd.f32 %v952, %v1847
        %v1849 = vpop.f32.mrb[0].mxu0
        %v1850 = vadd.f32 %v956, %v1849
        %1851 = vmatprep.mubr.bf16.mxu0 0
        %1852 = vmatmul.mubr.bf16.gmra.mrb[0].mxu0 %v865
        %v1853 = vpop.f32.mrb[0].mxu0
        %v1854 = vadd.f32 %v952, %v1853
        %v1855 = vpop.f32.mrb[0].mxu0
        %v1856 = vadd.f32 %v956, %v1855
        %v1857 = vpop.f32.mrb[0].mxu0
        %v1858 = vadd.f32 %v952, %v1857
        %v1859 = vpop.f32.mrb[0].mxu0
        %v1860 = vadd.f32 %v956, %v1859
        %1861 = vmatprep.mubr.bf16.mxu0 0
        %1862 = vmatmul.mubr.bf16.gmra.mrb[0].mxu0 %v866
        %v1863 = vpop.f32.mrb[0].mxu0
        %v1864 = vadd.f32 %v952, %v1863
        %v1865 = vpop.f32.mrb[0].mxu0
        %v1866 = vadd.f32 %v956, %v1865
        %v1867 = vpop.f32.mrb[0].mxu0
        %v1868 = vadd.f32 %v952, %v1867
        %v1869 = vpop.f32.mrb[0].mxu0
        %v1870 = vadd.f32 %v956, %v1869
        %1871 = vdwg.mxu0
        %1872 = vmatprep.subr.bf16.mxu0 %v1172
        %1873 = vmatpush1.bf16.msra.mxu0 %v1171
        %1874 = vmatprep.subr.bf16.mxu0 %v1180
        %1875 = vmatpush1.bf16.msra.mxu0 %v1179
        %1876 = vmatprep.subr.bf16.mxu0 %v1188
        %1877 = vmatpush1.bf16.msra.mxu0 %v1187
        %1878 = vmatprep.subr.bf16.mxu0 %v1196
        %1879 = vmatpush1.bf16.msra.mxu0 %v1195
        %1880 = vmatprep.subr.bf16.mxu0 %v1204
        %1881 = vmatpush1.bf16.msra.mxu0 %v1203
        %1882 = vmatprep.subr.bf16.mxu0 %v1212
        %1883 = vmatpush1.bf16.msra.mxu0 %v1211
        %1884 = vmatprep.subr.bf16.mxu0 %v1220
        %1885 = vmatpush1.bf16.msra.mxu0 %v1219
        %1886 = vmatprep.subr.bf16.mxu0 %v1228
        %1887 = vmatpush1.bf16.msra.mxu0 %v1227
        %1888 = vmatprep.subr.bf16.mxu0 0
        %1889 = vmatpush1.bf16.msra.mxu0 0
        %1890 = vmatprep.subr.bf16.mxu0 0
        %1891 = vmatpush1.bf16.msra.mxu0 0
        %1892 = vmatprep.subr.bf16.mxu0 0
        %1893 = vmatpush1.bf16.msra.mxu0 0
        %1894 = vmatprep.subr.bf16.mxu0 0
        %1895 = vmatpush1.bf16.msra.mxu0 0
        %1896 = vmatprep.subr.bf16.mxu0 0
        %1897 = vmatpush1.bf16.msra.mxu0 0
        %1898 = vmatprep.subr.bf16.mxu0 0
        %1899 = vmatpush1.bf16.msra.mxu0 0
        %1900 = vmatprep.subr.bf16.mxu0 0
        %1901 = vmatpush1.bf16.msra.mxu0 0
        %1902 = vmatprep.subr.bf16.mxu0 0
        %1903 = vmatpush1.bf16.msra.mxu0 0
        %1904 = vmatprep.mubr.bf16.mxu0 0
        %1905 = vmatmul.mubr.bf16.gmra.mrb[0].mxu0 %v851
        %v1906 = vpop.f32.mrb[0].mxu0
        %v1907 = vadd.f32 %v960, %v1906
        %v1908 = vpop.f32.mrb[0].mxu0
        %v1909 = vadd.f32 %v964, %v1908
        %v1910 = vpop.f32.mrb[0].mxu0
        %v1911 = vadd.f32 %v960, %v1910
        %v1912 = vpop.f32.mrb[0].mxu0
        %v1913 = vadd.f32 %v964, %v1912
        %1914 = vmatprep.mubr.bf16.mxu0 0
        %1915 = vmatmul.mubr.bf16.gmra.mrb[0].mxu0 %v852
        %v1916 = vpop.f32.mrb[0].mxu0
        %v1917 = vadd.f32 %v960, %v1916
        %v1918 = vpop.f32.mrb[0].mxu0
        %v1919 = vadd.f32 %v964, %v1918
        %v1920 = vpop.f32.mrb[0].mxu0
        %v1921 = vadd.f32 %v960, %v1920
        %v1922 = vpop.f32.mrb[0].mxu0
        %v1923 = vadd.f32 %v964, %v1922
        %1924 = vmatprep.mubr.bf16.mxu0 0
        %1925 = vmatmul.mubr.bf16.gmra.mrb[0].mxu0 %v853
        %v1926 = vpop.f32.mrb[0].mxu0
        %v1927 = vadd.f32 %v960, %v1926
        %v1928 = vpop.f32.mrb[0].mxu0
        %v1929 = vadd.f32 %v964, %v1928
        %v1930 = vpop.f32.mrb[0].mxu0
        %v1931 = vadd.f32 %v960, %v1930
        %v1932 = vpop.f32.mrb[0].mxu0
        %v1933 = vadd.f32 %v964, %v1932
        %1934 = vmatprep.mubr.bf16.mxu0 0
        %1935 = vmatmul.mubr.bf16.gmra.mrb[0].mxu0 %v854
        %v1936 = vpop.f32.mrb[0].mxu0
        %v1937 = vadd.f32 %v960, %v1936
        %v1938 = vpop.f32.mrb[0].mxu0
        %v1939 = vadd.f32 %v964, %v1938
        %v1940 = vpop.f32.mrb[0].mxu0
        %v1941 = vadd.f32 %v960, %v1940
        %v1942 = vpop.f32.mrb[0].mxu0
        %v1943 = vadd.f32 %v964, %v1942
        %1944 = vmatprep.mubr.bf16.mxu0 0
        %1945 = vmatmul.mubr.bf16.gmra.mrb[0].mxu0 %v855
        %v1946 = vpop.f32.mrb[0].mxu0
        %v1947 = vadd.f32 %v960, %v1946
        %v1948 = vpop.f32.mrb[0].mxu0
        %v1949 = vadd.f32 %v964, %v1948
        %v1950 = vpop.f32.mrb[0].mxu0
        %v1951 = vadd.f32 %v960, %v1950
        %v1952 = vpop.f32.mrb[0].mxu0
        %v1953 = vadd.f32 %v964, %v1952
        %1954 = vmatprep.mubr.bf16.mxu0 0
        %1955 = vmatmul.mubr.bf16.gmra.mrb[0].mxu0 %v856
        %v1956 = vpop.f32.mrb[0].mxu0
        %v1957 = vadd.f32 %v960, %v1956
        %v1958 = vpop.f32.mrb[0].mxu0
        %v1959 = vadd.f32 %v964, %v1958
        %v1960 = vpop.f32.mrb[0].mxu0
        %v1961 = vadd.f32 %v960, %v1960
        %v1962 = vpop.f32.mrb[0].mxu0
        %v1963 = vadd.f32 %v964, %v1962
        %1964 = vmatprep.mubr.bf16.mxu0 0
        %1965 = vmatmul.mubr.bf16.gmra.mrb[0].mxu0 %v857
        %v1966 = vpop.f32.mrb[0].mxu0
        %v1967 = vadd.f32 %v960, %v1966
        %v1968 = vpop.f32.mrb[0].mxu0
        %v1969 = vadd.f32 %v964, %v1968
        %v1970 = vpop.f32.mrb[0].mxu0
        %v1971 = vadd.f32 %v960, %v1970
        %v1972 = vpop.f32.mrb[0].mxu0
        %v1973 = vadd.f32 %v964, %v1972
        %1974 = vmatprep.mubr.bf16.mxu0 0
        %1975 = vmatmul.mubr.bf16.gmra.mrb[0].mxu0 %v858
        %v1976 = vpop.f32.mrb[0].mxu0
        %v1977 = vadd.f32 %v960, %v1976
        %v1978 = vpop.f32.mrb[0].mxu0
        %v1979 = vadd.f32 %v964, %v1978
        %v1980 = vpop.f32.mrb[0].mxu0
        %v1981 = vadd.f32 %v960, %v1980
        %v1982 = vpop.f32.mrb[0].mxu0
        %v1983 = vadd.f32 %v964, %v1982
        %1984 = vmatprep.mubr.bf16.mxu0 0
        %1985 = vmatmul.mubr.bf16.gmra.mrb[0].mxu0 %v859
        %v1986 = vpop.f32.mrb[0].mxu0
        %v1987 = vadd.f32 %v960, %v1986
        %v1988 = vpop.f32.mrb[0].mxu0
        %v1989 = vadd.f32 %v964, %v1988
        %v1990 = vpop.f32.mrb[0].mxu0
        %v1991 = vadd.f32 %v960, %v1990
        %v1992 = vpop.f32.mrb[0].mxu0
        %v1993 = vadd.f32 %v964, %v1992
        %1994 = vmatprep.mubr.bf16.mxu0 0
        %1995 = vmatmul.mubr.bf16.gmra.mrb[0].mxu0 %v860
        %v1996 = vpop.f32.mrb[0].mxu0
        %v1997 = vadd.f32 %v960, %v1996
        %v1998 = vpop.f32.mrb[0].mxu0
        %v1999 = vadd.f32 %v964, %v1998
        %v2000 = vpop.f32.mrb[0].mxu0
        %v2001 = vadd.f32 %v960, %v2000
        %v2002 = vpop.f32.mrb[0].mxu0
        %v2003 = vadd.f32 %v964, %v2002
        %2004 = vmatprep.mubr.bf16.mxu0 0
        %2005 = vmatmul.mubr.bf16.gmra.mrb[0].mxu0 %v861
        %v2006 = vpop.f32.mrb[0].mxu0
        %v2007 = vadd.f32 %v960, %v2006
        %v2008 = vpop.f32.mrb[0].mxu0
        %v2009 = vadd.f32 %v964, %v2008
        %v2010 = vpop.f32.mrb[0].mxu0
        %v2011 = vadd.f32 %v960, %v2010
        %v2012 = vpop.f32.mrb[0].mxu0
        %v2013 = vadd.f32 %v964, %v2012
        %2014 = vmatprep.mubr.bf16.mxu0 0
        %2015 = vmatmul.mubr.bf16.gmra.mrb[0].mxu0 %v862
        %v2016 = vpop.f32.mrb[0].mxu0
        %v2017 = vadd.f32 %v960, %v2016
        %v2018 = vpop.f32.mrb[0].mxu0
        %v2019 = vadd.f32 %v964, %v2018
        %v2020 = vpop.f32.mrb[0].mxu0
        %v2021 = vadd.f32 %v960, %v2020
        %v2022 = vpop.f32.mrb[0].mxu0
        %v2023 = vadd.f32 %v964, %v2022
        %2024 = vmatprep.mubr.bf16.mxu0 0
        %2025 = vmatmul.mubr.bf16.gmra.mrb[0].mxu0 %v863
        %v2026 = vpop.f32.mrb[0].mxu0
        %v2027 = vadd.f32 %v960, %v2026
        %v2028 = vpop.f32.mrb[0].mxu0
        %v2029 = vadd.f32 %v964, %v2028
        %v2030 = vpop.f32.mrb[0].mxu0
        %v2031 = vadd.f32 %v960, %v2030
        %v2032 = vpop.f32.mrb[0].mxu0
        %v2033 = vadd.f32 %v964, %v2032
        %2034 = vmatprep.mubr.bf16.mxu0 0
        %2035 = vmatmul.mubr.bf16.gmra.mrb[0].mxu0 %v864
        %v2036 = vpop.f32.mrb[0].mxu0
        %v2037 = vadd.f32 %v960, %v2036
        %v2038 = vpop.f32.mrb[0].mxu0
        %v2039 = vadd.f32 %v964, %v2038
        %v2040 = vpop.f32.mrb[0].mxu0
        %v2041 = vadd.f32 %v960, %v2040
        %v2042 = vpop.f32.mrb[0].mxu0
        %v2043 = vadd.f32 %v964, %v2042
        %2044 = vmatprep.mubr.bf16.mxu0 0
        %2045 = vmatmul.mubr.bf16.gmra.mrb[0].mxu0 %v865
        %v2046 = vpop.f32.mrb[0].mxu0
        %v2047 = vadd.f32 %v960, %v2046
        %v2048 = vpop.f32.mrb[0].mxu0
        %v2049 = vadd.f32 %v964, %v2048
        %v2050 = vpop.f32.mrb[0].mxu0
        %v2051 = vadd.f32 %v960, %v2050
        %v2052 = vpop.f32.mrb[0].mxu0
        %v2053 = vadd.f32 %v964, %v2052
        %2054 = vmatprep.mubr.bf16.mxu0 0
        %2055 = vmatmul.mubr.bf16.gmra.mrb[0].mxu0 %v866
        %v2056 = vpop.f32.mrb[0].mxu0
        %v2057 = vadd.f32 %v960, %v2056
        %v2058 = vpop.f32.mrb[0].mxu0
        %v2059 = vadd.f32 %v964, %v2058
        %v2060 = vpop.f32.mrb[0].mxu0
        %v2061 = vadd.f32 %v960, %v2060
        %v2062 = vpop.f32.mrb[0].mxu0
        %v2063 = vadd.f32 %v964, %v2062
        %2064 = vdwg.mxu0
        %v2065 = vmax.f32 %v1328, 0.0
        %v2066 = vmax.f32 %v1330, 0.0
        %v2067 = vmax.f32 %v1521, 0.0
        %v2068 = vmax.f32 %v1523, 0.0
        %v2069 = vmax.f32 %v1714, 0.0
        %v2070 = vmax.f32 %v1716, 0.0
        %v2071 = vmax.f32 %v1907, 0.0
        %v2072 = vmax.f32 %v1909, 0.0
        %v2073 = vmax.f32 %v1332, 0.0
        %v2074 = vmax.f32 %v1334, 0.0
        %v2075 = vmax.f32 %v1525, 0.0
        %v2076 = vmax.f32 %v1527, 0.0
        %v2077 = vmax.f32 %v1718, 0.0
        %v2078 = vmax.f32 %v1720, 0.0
        %v2079 = vmax.f32 %v1911, 0.0
        %v2080 = vmax.f32 %v1913, 0.0
        %v2081 = vmax.f32 %v1338, 0.0
        %v2082 = vmax.f32 %v1340, 0.0
        %v2083 = vmax.f32 %v1531, 0.0
        %v2084 = vmax.f32 %v1533, 0.0
        %v2085 = vmax.f32 %v1724, 0.0
        %v2086 = vmax.f32 %v1726, 0.0
        %v2087 = vmax.f32 %v1917, 0.0
        %v2088 = vmax.f32 %v1919, 0.0
        %v2089 = vmax.f32 %v1342, 0.0
        %v2090 = vmax.f32 %v1344, 0.0
        %v2091 = vmax.f32 %v1535, 0.0
        %v2092 = vmax.f32 %v1537, 0.0
        %v2093 = vmax.f32 %v1728, 0.0
        %v2094 = vmax.f32 %v1730, 0.0
        %v2095 = vmax.f32 %v1921, 0.0
        %v2096 = vmax.f32 %v1923, 0.0
        %v2097 = vmax.f32 %v1348, 0.0
        %v2098 = vmax.f32 %v1350, 0.0
        %v2099 = vmax.f32 %v1541, 0.0
        %v2100 = vmax.f32 %v1543, 0.0
        %v2101 = vmax.f32 %v1734, 0.0
        %v2102 = vmax.f32 %v1736, 0.0
        %v2103 = vmax.f32 %v1927, 0.0
        %v2104 = vmax.f32 %v1929, 0.0
        %v2105 = vmax.f32 %v1352, 0.0
        %v2106 = vmax.f32 %v1354, 0.0
        %v2107 = vmax.f32 %v1545, 0.0
        %v2108 = vmax.f32 %v1547, 0.0
        %v2109 = vmax.f32 %v1738, 0.0
        %v2110 = vmax.f32 %v1740, 0.0
        %v2111 = vmax.f32 %v1931, 0.0
        %v2112 = vmax.f32 %v1933, 0.0
        %v2113 = vmax.f32 %v1358, 0.0
        %v2114 = vmax.f32 %v1360, 0.0
        %v2115 = vmax.f32 %v1551, 0.0
        %v2116 = vmax.f32 %v1553, 0.0
        %v2117 = vmax.f32 %v1744, 0.0
        %v2118 = vmax.f32 %v1746, 0.0
        %v2119 = vmax.f32 %v1937, 0.0
        %v2120 = vmax.f32 %v1939, 0.0
        %v2121 = vmax.f32 %v1362, 0.0
        %v2122 = vmax.f32 %v1364, 0.0
        %v2123 = vmax.f32 %v1555, 0.0
        %v2124 = vmax.f32 %v1557, 0.0
        %v2125 = vmax.f32 %v1748, 0.0
        %v2126 = vmax.f32 %v1750, 0.0
        %v2127 = vmax.f32 %v1941, 0.0
        %v2128 = vmax.f32 %v1943, 0.0
        %v2129 = vmax.f32 %v1368, 0.0
        %v2130 = vmax.f32 %v1370, 0.0
        %v2131 = vmax.f32 %v1561, 0.0
        %v2132 = vmax.f32 %v1563, 0.0
        %v2133 = vmax.f32 %v1754, 0.0
        %v2134 = vmax.f32 %v1756, 0.0
        %v2135 = vmax.f32 %v1947, 0.0
        %v2136 = vmax.f32 %v1949, 0.0
        %v2137 = vmax.f32 %v1372, 0.0
        %v2138 = vmax.f32 %v1374, 0.0
        %v2139 = vmax.f32 %v1565, 0.0
        %v2140 = vmax.f32 %v1567, 0.0
        %v2141 = vmax.f32 %v1758, 0.0
        %v2142 = vmax.f32 %v1760, 0.0
        %v2143 = vmax.f32 %v1951, 0.0
        %v2144 = vmax.f32 %v1953, 0.0
        %v2145 = vmax.f32 %v1378, 0.0
        %v2146 = vmax.f32 %v1380, 0.0
        %v2147 = vmax.f32 %v1571, 0.0
        %v2148 = vmax.f32 %v1573, 0.0
        %v2149 = vmax.f32 %v1764, 0.0
        %v2150 = vmax.f32 %v1766, 0.0
        %v2151 = vmax.f32 %v1957, 0.0
        %v2152 = vmax.f32 %v1959, 0.0
        %v2153 = vmax.f32 %v1382, 0.0
        %v2154 = vmax.f32 %v1384, 0.0
        %v2155 = vmax.f32 %v1575, 0.0
        %v2156 = vmax.f32 %v1577, 0.0
        %v2157 = vmax.f32 %v1768, 0.0
        %v2158 = vmax.f32 %v1770, 0.0
        %v2159 = vmax.f32 %v1961, 0.0
        %v2160 = vmax.f32 %v1963, 0.0
        %v2161 = vmax.f32 %v1388, 0.0
        %v2162 = vmax.f32 %v1390, 0.0
        %v2163 = vmax.f32 %v1581, 0.0
        %v2164 = vmax.f32 %v1583, 0.0
        %v2165 = vmax.f32 %v1774, 0.0
        %v2166 = vmax.f32 %v1776, 0.0
        %v2167 = vmax.f32 %v1967, 0.0
        %v2168 = vmax.f32 %v1969, 0.0
        %v2169 = vmax.f32 %v1392, 0.0
        %v2170 = vmax.f32 %v1394, 0.0
        %v2171 = vmax.f32 %v1585, 0.0
        %v2172 = vmax.f32 %v1587, 0.0
        %v2173 = vmax.f32 %v1778, 0.0
        %v2174 = vmax.f32 %v1780, 0.0
        %v2175 = vmax.f32 %v1971, 0.0
        %v2176 = vmax.f32 %v1973, 0.0
        %v2177 = vmax.f32 %v1398, 0.0
        %v2178 = vmax.f32 %v1400, 0.0
        %v2179 = vmax.f32 %v1591, 0.0
        %v2180 = vmax.f32 %v1593, 0.0
        %v2181 = vmax.f32 %v1784, 0.0
        %v2182 = vmax.f32 %v1786, 0.0
        %v2183 = vmax.f32 %v1977, 0.0
        %v2184 = vmax.f32 %v1979, 0.0
        %v2185 = vmax.f32 %v1402, 0.0
        %v2186 = vmax.f32 %v1404, 0.0
        %v2187 = vmax.f32 %v1595, 0.0
        %v2188 = vmax.f32 %v1597, 0.0
        %v2189 = vmax.f32 %v1788, 0.0
        %v2190 = vmax.f32 %v1790, 0.0
        %v2191 = vmax.f32 %v1981, 0.0
        %v2192 = vmax.f32 %v1983, 0.0
        %v2193 = vmax.f32 %v1408, 0.0
        %v2194 = vmax.f32 %v1410, 0.0
        %v2195 = vmax.f32 %v1601, 0.0
        %v2196 = vmax.f32 %v1603, 0.0
        %v2197 = vmax.f32 %v1794, 0.0
        %v2198 = vmax.f32 %v1796, 0.0
        %v2199 = vmax.f32 %v1987, 0.0
        %v2200 = vmax.f32 %v1989, 0.0
        %v2201 = vmax.f32 %v1412, 0.0
        %v2202 = vmax.f32 %v1414, 0.0
        %v2203 = vmax.f32 %v1605, 0.0
        %v2204 = vmax.f32 %v1607, 0.0
        %v2205 = vmax.f32 %v1798, 0.0
        %v2206 = vmax.f32 %v1800, 0.0
        %v2207 = vmax.f32 %v1991, 0.0
        %v2208 = vmax.f32 %v1993, 0.0
        %v2209 = vmax.f32 %v1418, 0.0
        %v2210 = vmax.f32 %v1420, 0.0
        %v2211 = vmax.f32 %v1611, 0.0
        %v2212 = vmax.f32 %v1613, 0.0
        %v2213 = vmax.f32 %v1804, 0.0
        %v2214 = vmax.f32 %v1806, 0.0
        %v2215 = vmax.f32 %v1997, 0.0
        %v2216 = vmax.f32 %v1999, 0.0
        %v2217 = vmax.f32 %v1422, 0.0
        %v2218 = vmax.f32 %v1424, 0.0
        %v2219 = vmax.f32 %v1615, 0.0
        %v2220 = vmax.f32 %v1617, 0.0
        %v2221 = vmax.f32 %v1808, 0.0
        %v2222 = vmax.f32 %v1810, 0.0
        %v2223 = vmax.f32 %v2001, 0.0
        %v2224 = vmax.f32 %v2003, 0.0
        %v2225 = vmax.f32 %v1428, 0.0
        %v2226 = vmax.f32 %v1430, 0.0
        %v2227 = vmax.f32 %v1621, 0.0
        %v2228 = vmax.f32 %v1623, 0.0
        %v2229 = vmax.f32 %v1814, 0.0
        %v2230 = vmax.f32 %v1816, 0.0
        %v2231 = vmax.f32 %v2007, 0.0
        %v2232 = vmax.f32 %v2009, 0.0
        %v2233 = vmax.f32 %v1432, 0.0
        %v2234 = vmax.f32 %v1434, 0.0
        %v2235 = vmax.f32 %v1625, 0.0
        %v2236 = vmax.f32 %v1627, 0.0
        %v2237 = vmax.f32 %v1818, 0.0
        %v2238 = vmax.f32 %v1820, 0.0
        %v2239 = vmax.f32 %v2011, 0.0
        %v2240 = vmax.f32 %v2013, 0.0
        %v2241 = vmax.f32 %v1438, 0.0
        %v2242 = vmax.f32 %v1440, 0.0
        %v2243 = vmax.f32 %v1631, 0.0
        %v2244 = vmax.f32 %v1633, 0.0
        %v2245 = vmax.f32 %v1824, 0.0
        %v2246 = vmax.f32 %v1826, 0.0
        %v2247 = vmax.f32 %v2017, 0.0
        %v2248 = vmax.f32 %v2019, 0.0
        %v2249 = vmax.f32 %v1442, 0.0
        %v2250 = vmax.f32 %v1444, 0.0
        %v2251 = vmax.f32 %v1635, 0.0
        %v2252 = vmax.f32 %v1637, 0.0
        %v2253 = vmax.f32 %v1828, 0.0
        %v2254 = vmax.f32 %v1830, 0.0
        %v2255 = vmax.f32 %v2021, 0.0
        %v2256 = vmax.f32 %v2023, 0.0
        %v2257 = vmax.f32 %v1448, 0.0
        %v2258 = vmax.f32 %v1450, 0.0
        %v2259 = vmax.f32 %v1641, 0.0
        %v2260 = vmax.f32 %v1643, 0.0
        %v2261 = vmax.f32 %v1834, 0.0
        %v2262 = vmax.f32 %v1836, 0.0
        %v2263 = vmax.f32 %v2027, 0.0
        %v2264 = vmax.f32 %v2029, 0.0
        %v2265 = vmax.f32 %v1452, 0.0
        %v2266 = vmax.f32 %v1454, 0.0
        %v2267 = vmax.f32 %v1645, 0.0
        %v2268 = vmax.f32 %v1647, 0.0
        %v2269 = vmax.f32 %v1838, 0.0
        %v2270 = vmax.f32 %v1840, 0.0
        %v2271 = vmax.f32 %v2031, 0.0
        %v2272 = vmax.f32 %v2033, 0.0
        %v2273 = vmax.f32 %v1458, 0.0
        %v2274 = vmax.f32 %v1460, 0.0
        %v2275 = vmax.f32 %v1651, 0.0
        %v2276 = vmax.f32 %v1653, 0.0
        %v2277 = vmax.f32 %v1844, 0.0
        %v2278 = vmax.f32 %v1846, 0.0
        %v2279 = vmax.f32 %v2037, 0.0
        %v2280 = vmax.f32 %v2039, 0.0
        %v2281 = vmax.f32 %v1462, 0.0
        %v2282 = vmax.f32 %v1464, 0.0
        %v2283 = vmax.f32 %v1655, 0.0
        %v2284 = vmax.f32 %v1657, 0.0
        %v2285 = vmax.f32 %v1848, 0.0
        %v2286 = vmax.f32 %v1850, 0.0
        %v2287 = vmax.f32 %v2041, 0.0
        %v2288 = vmax.f32 %v2043, 0.0
        %v2289 = vmax.f32 %v1468, 0.0
        %v2290 = vmax.f32 %v1470, 0.0
        %v2291 = vmax.f32 %v1661, 0.0
        %v2292 = vmax.f32 %v1663, 0.0
        %v2293 = vmax.f32 %v1854, 0.0
        %v2294 = vmax.f32 %v1856, 0.0
        %v2295 = vmax.f32 %v2047, 0.0
        %v2296 = vmax.f32 %v2049, 0.0
        %v2297 = vmax.f32 %v1472, 0.0
        %v2298 = vmax.f32 %v1474, 0.0
        %v2299 = vmax.f32 %v1665, 0.0
        %v2300 = vmax.f32 %v1667, 0.0
        %v2301 = vmax.f32 %v1858, 0.0
        %v2302 = vmax.f32 %v1860, 0.0
        %v2303 = vmax.f32 %v2051, 0.0
        %v2304 = vmax.f32 %v2053, 0.0
        %v2305 = vmax.f32 %v1478, 0.0
        %v2306 = vmax.f32 %v1480, 0.0
        %v2307 = vmax.f32 %v1671, 0.0
        %v2308 = vmax.f32 %v1673, 0.0
        %v2309 = vmax.f32 %v1864, 0.0
        %v2310 = vmax.f32 %v1866, 0.0
        %v2311 = vmax.f32 %v2057, 0.0
        %v2312 = vmax.f32 %v2059, 0.0
        %v2313 = vmax.f32 %v1482, 0.0
        %v2314 = vmax.f32 %v1484, 0.0
        %v2315 = vmax.f32 %v1675, 0.0
        %v2316 = vmax.f32 %v1677, 0.0
        %v2317 = vmax.f32 %v1868, 0.0
        %v2318 = vmax.f32 %v1870, 0.0
        %v2319 = vmax.f32 %v2061, 0.0
        %v2320 = vmax.f32 %v2063, 0.0
        %v2321 = vmax.f32 %v2065, %v2073
        %v2322 = vmax.f32 %v2321, %v2081
        %v2323 = vmax.f32 %v2322, %v2089
        %v2324 = vmax.f32 %v2323, %v2097
        %v2325 = vmax.f32 %v2324, %v2105
        %v2326 = vmax.f32 %v2325, %v2113
        %v2327 = vmax.f32 %v2326, %v2121
        %v2328 = vmax.f32 %v2327, %v2129
        %v2329 = vmax.f32 %v2328, %v2137
        %v2330 = vmax.f32 %v2329, %v2145
        %v2331 = vmax.f32 %v2330, %v2153
        %v2332 = vmax.f32 %v2331, %v2161
        %v2333 = vmax.f32 %v2332, %v2169
        %v2334 = vmax.f32 %v2333, %v2177
        %v2335 = vmax.f32 %v2334, %v2185
        %v2336 = vmax.f32 %v2335, %v2193
        %v2337 = vmax.f32 %v2336, %v2201
        %v2338 = vmax.f32 %v2337, %v2209
        %v2339 = vmax.f32 %v2338, %v2217
        %v2340 = vmax.f32 %v2339, %v2225
        %v2341 = vmax.f32 %v2340, %v2233
        %v2342 = vmax.f32 %v2341, %v2241
        %v2343 = vmax.f32 %v2342, %v2249
        %v2344 = vmax.f32 %v2343, %v2257
        %v2345 = vmax.f32 %v2344, %v2265
        %v2346 = vmax.f32 %v2345, %v2273
        %v2347 = vmax.f32 %v2346, %v2281
        %v2348 = vmax.f32 %v2347, %v2289
        %v2349 = vmax.f32 %v2348, %v2297
        %v2350 = vmax.f32 %v2349, %v2305
        %v2351 = vmax.f32 %v2350, %v2313
        %v2352 = vrot.slane %v2351, 4
        %v2353 = vmax.f32 %v2351, %v2352
        %v2354 = vrot.slane %v2353, 2
        %v2355 = vmax.f32 %v2353, %v2354
        %v2356 = vrot.slane %v2355, 1
        %v2357 = vmax.f32 %v2355, %v2356
        %v2358 = vmax.f32 %v2066, %v2074
        %v2359 = vmax.f32 %v2358, %v2082
        %v2360 = vmax.f32 %v2359, %v2090
        %v2361 = vmax.f32 %v2360, %v2098
        %v2362 = vmax.f32 %v2361, %v2106
        %v2363 = vmax.f32 %v2362, %v2114
        %v2364 = vmax.f32 %v2363, %v2122
        %v2365 = vmax.f32 %v2364, %v2130
        %v2366 = vmax.f32 %v2365, %v2138
        %v2367 = vmax.f32 %v2366, %v2146
        %v2368 = vmax.f32 %v2367, %v2154
        %v2369 = vmax.f32 %v2368, %v2162
        %v2370 = vmax.f32 %v2369, %v2170
        %v2371 = vmax.f32 %v2370, %v2178
        %v2372 = vmax.f32 %v2371, %v2186
        %v2373 = vmax.f32 %v2372, %v2194
        %v2374 = vmax.f32 %v2373, %v2202
        %v2375 = vmax.f32 %v2374, %v2210
        %v2376 = vmax.f32 %v2375, %v2218
        %v2377 = vmax.f32 %v2376, %v2226
        %v2378 = vmax.f32 %v2377, %v2234
        %v2379 = vmax.f32 %v2378, %v2242
        %v2380 = vmax.f32 %v2379, %v2250
        %v2381 = vmax.f32 %v2380, %v2258
        %v2382 = vmax.f32 %v2381, %v2266
        %v2383 = vmax.f32 %v2382, %v2274
        %v2384 = vmax.f32 %v2383, %v2282
        %v2385 = vmax.f32 %v2384, %v2290
        %v2386 = vmax.f32 %v2385, %v2298
        %v2387 = vmax.f32 %v2386, %v2306
        %v2388 = vmax.f32 %v2387, %v2314
        %v2389 = vrot.slane %v2388, 4
        %v2390 = vmax.f32 %v2388, %v2389
        %v2391 = vrot.slane %v2390, 2
        %v2392 = vmax.f32 %v2390, %v2391
        %v2393 = vrot.slane %v2392, 1
        %v2394 = vmax.f32 %v2392, %v2393
        %v2395 = vmax.f32 %v2067, %v2075
        %v2396 = vmax.f32 %v2395, %v2083
        %v2397 = vmax.f32 %v2396, %v2091
        %v2398 = vmax.f32 %v2397, %v2099
        %v2399 = vmax.f32 %v2398, %v2107
        %v2400 = vmax.f32 %v2399, %v2115
        %v2401 = vmax.f32 %v2400, %v2123
        %v2402 = vmax.f32 %v2401, %v2131
        %v2403 = vmax.f32 %v2402, %v2139
        %v2404 = vmax.f32 %v2403, %v2147
        %v2405 = vmax.f32 %v2404, %v2155
        %v2406 = vmax.f32 %v2405, %v2163
        %v2407 = vmax.f32 %v2406, %v2171
        %v2408 = vmax.f32 %v2407, %v2179
        %v2409 = vmax.f32 %v2408, %v2187
        %v2410 = vmax.f32 %v2409, %v2195
        %v2411 = vmax.f32 %v2410, %v2203
        %v2412 = vmax.f32 %v2411, %v2211
        %v2413 = vmax.f32 %v2412, %v2219
        %v2414 = vmax.f32 %v2413, %v2227
        %v2415 = vmax.f32 %v2414, %v2235
        %v2416 = vmax.f32 %v2415, %v2243
        %v2417 = vmax.f32 %v2416, %v2251
        %v2418 = vmax.f32 %v2417, %v2259
        %v2419 = vmax.f32 %v2418, %v2267
        %v2420 = vmax.f32 %v2419, %v2275
        %v2421 = vmax.f32 %v2420, %v2283
        %v2422 = vmax.f32 %v2421, %v2291
        %v2423 = vmax.f32 %v2422, %v2299
        %v2424 = vmax.f32 %v2423, %v2307
        %v2425 = vmax.f32 %v2424, %v2315
        %v2426 = vrot.slane %v2425, 4
        %v2427 = vmax.f32 %v2425, %v2426
        %v2428 = vrot.slane %v2427, 2
        %v2429 = vmax.f32 %v2427, %v2428
        %v2430 = vrot.slane %v2429, 1
        %v2431 = vmax.f32 %v2429, %v2430
        %v2432 = vmax.f32 %v2068, %v2076
        %v2433 = vmax.f32 %v2432, %v2084
        %v2434 = vmax.f32 %v2433, %v2092
        %v2435 = vmax.f32 %v2434, %v2100
        %v2436 = vmax.f32 %v2435, %v2108
        %v2437 = vmax.f32 %v2436, %v2116
        %v2438 = vmax.f32 %v2437, %v2124
        %v2439 = vmax.f32 %v2438, %v2132
        %v2440 = vmax.f32 %v2439, %v2140
        %v2441 = vmax.f32 %v2440, %v2148
        %v2442 = vmax.f32 %v2441, %v2156
        %v2443 = vmax.f32 %v2442, %v2164
        %v2444 = vmax.f32 %v2443, %v2172
        %v2445 = vmax.f32 %v2444, %v2180
        %v2446 = vmax.f32 %v2445, %v2188
        %v2447 = vmax.f32 %v2446, %v2196
        %v2448 = vmax.f32 %v2447, %v2204
        %v2449 = vmax.f32 %v2448, %v2212
        %v2450 = vmax.f32 %v2449, %v2220
        %v2451 = vmax.f32 %v2450, %v2228
        %v2452 = vmax.f32 %v2451, %v2236
        %v2453 = vmax.f32 %v2452, %v2244
        %v2454 = vmax.f32 %v2453, %v2252
        %v2455 = vmax.f32 %v2454, %v2260
        %v2456 = vmax.f32 %v2455, %v2268
        %v2457 = vmax.f32 %v2456, %v2276
        %v2458 = vmax.f32 %v2457, %v2284
        %v2459 = vmax.f32 %v2458, %v2292
        %v2460 = vmax.f32 %v2459, %v2300
        %v2461 = vmax.f32 %v2460, %v2308
        %v2462 = vmax.f32 %v2461, %v2316
        %v2463 = vrot.slane %v2462, 4
        %v2464 = vmax.f32 %v2462, %v2463
        %v2465 = vrot.slane %v2464, 2
        %v2466 = vmax.f32 %v2464, %v2465
        %v2467 = vrot.slane %v2466, 1
        %v2468 = vmax.f32 %v2466, %v2467
        %v2469 = vmax.f32 %v2069, %v2077
        %v2470 = vmax.f32 %v2469, %v2085
        %v2471 = vmax.f32 %v2470, %v2093
        %v2472 = vmax.f32 %v2471, %v2101
        %v2473 = vmax.f32 %v2472, %v2109
        %v2474 = vmax.f32 %v2473, %v2117
        %v2475 = vmax.f32 %v2474, %v2125
        %v2476 = vmax.f32 %v2475, %v2133
        %v2477 = vmax.f32 %v2476, %v2141
        %v2478 = vmax.f32 %v2477, %v2149
        %v2479 = vmax.f32 %v2478, %v2157
        %v2480 = vmax.f32 %v2479, %v2165
        %v2481 = vmax.f32 %v2480, %v2173
        %v2482 = vmax.f32 %v2481, %v2181
        %v2483 = vmax.f32 %v2482, %v2189
        %v2484 = vmax.f32 %v2483, %v2197
        %v2485 = vmax.f32 %v2484, %v2205
        %v2486 = vmax.f32 %v2485, %v2213
        %v2487 = vmax.f32 %v2486, %v2221
        %v2488 = vmax.f32 %v2487, %v2229
        %v2489 = vmax.f32 %v2488, %v2237
        %v2490 = vmax.f32 %v2489, %v2245
        %v2491 = vmax.f32 %v2490, %v2253
        %v2492 = vmax.f32 %v2491, %v2261
        %v2493 = vmax.f32 %v2492, %v2269
        %v2494 = vmax.f32 %v2493, %v2277
        %v2495 = vmax.f32 %v2494, %v2285
        %v2496 = vmax.f32 %v2495, %v2293
        %v2497 = vmax.f32 %v2496, %v2301
        %v2498 = vmax.f32 %v2497, %v2309
        %v2499 = vmax.f32 %v2498, %v2317
        %v2500 = vrot.slane %v2499, 4
        %v2501 = vmax.f32 %v2499, %v2500
        %v2502 = vrot.slane %v2501, 2
        %v2503 = vmax.f32 %v2501, %v2502
        %v2504 = vrot.slane %v2503, 1
        %v2505 = vmax.f32 %v2503, %v2504
        %v2506 = vmax.f32 %v2070, %v2078
        %v2507 = vmax.f32 %v2506, %v2086
        %v2508 = vmax.f32 %v2507, %v2094
        %v2509 = vmax.f32 %v2508, %v2102
        %v2510 = vmax.f32 %v2509, %v2110
        %v2511 = vmax.f32 %v2510, %v2118
        %v2512 = vmax.f32 %v2511, %v2126
        %v2513 = vmax.f32 %v2512, %v2134
        %v2514 = vmax.f32 %v2513, %v2142
        %v2515 = vmax.f32 %v2514, %v2150
        %v2516 = vmax.f32 %v2515, %v2158
        %v2517 = vmax.f32 %v2516, %v2166
        %v2518 = vmax.f32 %v2517, %v2174
        %v2519 = vmax.f32 %v2518, %v2182
        %v2520 = vmax.f32 %v2519, %v2190
        %v2521 = vmax.f32 %v2520, %v2198
        %v2522 = vmax.f32 %v2521, %v2206
        %v2523 = vmax.f32 %v2522, %v2214
        %v2524 = vmax.f32 %v2523, %v2222
        %v2525 = vmax.f32 %v2524, %v2230
        %v2526 = vmax.f32 %v2525, %v2238
        %v2527 = vmax.f32 %v2526, %v2246
        %v2528 = vmax.f32 %v2527, %v2254
        %v2529 = vmax.f32 %v2528, %v2262
        %v2530 = vmax.f32 %v2529, %v2270
        %v2531 = vmax.f32 %v2530, %v2278
        %v2532 = vmax.f32 %v2531, %v2286
        %v2533 = vmax.f32 %v2532, %v2294
        %v2534 = vmax.f32 %v2533, %v2302
        %v2535 = vmax.f32 %v2534, %v2310
        %v2536 = vmax.f32 %v2535, %v2318
        %v2537 = vrot.slane %v2536, 4
        %v2538 = vmax.f32 %v2536, %v2537
        %v2539 = vrot.slane %v2538, 2
        %v2540 = vmax.f32 %v2538, %v2539
        %v2541 = vrot.slane %v2540, 1
        %v2542 = vmax.f32 %v2540, %v2541
        %v2543 = vmax.f32 %v2071, %v2079
        %v2544 = vmax.f32 %v2543, %v2087
        %v2545 = vmax.f32 %v2544, %v2095
        %v2546 = vmax.f32 %v2545, %v2103
        %v2547 = vmax.f32 %v2546, %v2111
        %v2548 = vmax.f32 %v2547, %v2119
        %v2549 = vmax.f32 %v2548, %v2127
        %v2550 = vmax.f32 %v2549, %v2135
        %v2551 = vmax.f32 %v2550, %v2143
        %v2552 = vmax.f32 %v2551, %v2151
        %v2553 = vmax.f32 %v2552, %v2159
        %v2554 = vmax.f32 %v2553, %v2167
        %v2555 = vmax.f32 %v2554, %v2175
        %v2556 = vmax.f32 %v2555, %v2183
        %v2557 = vmax.f32 %v2556, %v2191
        %v2558 = vmax.f32 %v2557, %v2199
        %v2559 = vmax.f32 %v2558, %v2207
        %v2560 = vmax.f32 %v2559, %v2215
        %v2561 = vmax.f32 %v2560, %v2223
        %v2562 = vmax.f32 %v2561, %v2231
        %v2563 = vmax.f32 %v2562, %v2239
        %v2564 = vmax.f32 %v2563, %v2247
        %v2565 = vmax.f32 %v2564, %v2255
        %v2566 = vmax.f32 %v2565, %v2263
        %v2567 = vmax.f32 %v2566, %v2271
        %v2568 = vmax.f32 %v2567, %v2279
        %v2569 = vmax.f32 %v2568, %v2287
        %v2570 = vmax.f32 %v2569, %v2295
        %v2571 = vmax.f32 %v2570, %v2303
        %v2572 = vmax.f32 %v2571, %v2311
        %v2573 = vmax.f32 %v2572, %v2319
        %v2574 = vrot.slane %v2573, 4
        %v2575 = vmax.f32 %v2573, %v2574
        %v2576 = vrot.slane %v2575, 2
        %v2577 = vmax.f32 %v2575, %v2576
        %v2578 = vrot.slane %v2577, 1
        %v2579 = vmax.f32 %v2577, %v2578
        %v2580 = vmax.f32 %v2072, %v2080
        %v2581 = vmax.f32 %v2580, %v2088
        %v2582 = vmax.f32 %v2581, %v2096
        %v2583 = vmax.f32 %v2582, %v2104
        %v2584 = vmax.f32 %v2583, %v2112
        %v2585 = vmax.f32 %v2584, %v2120
        %v2586 = vmax.f32 %v2585, %v2128
        %v2587 = vmax.f32 %v2586, %v2136
        %v2588 = vmax.f32 %v2587, %v2144
        %v2589 = vmax.f32 %v2588, %v2152
        %v2590 = vmax.f32 %v2589, %v2160
        %v2591 = vmax.f32 %v2590, %v2168
        %v2592 = vmax.f32 %v2591, %v2176
        %v2593 = vmax.f32 %v2592, %v2184
        %v2594 = vmax.f32 %v2593, %v2192
        %v2595 = vmax.f32 %v2594, %v2200
        %v2596 = vmax.f32 %v2595, %v2208
        %v2597 = vmax.f32 %v2596, %v2216
        %v2598 = vmax.f32 %v2597, %v2224
        %v2599 = vmax.f32 %v2598, %v2232
        %v2600 = vmax.f32 %v2599, %v2240
        %v2601 = vmax.f32 %v2600, %v2248
        %v2602 = vmax.f32 %v2601, %v2256
        %v2603 = vmax.f32 %v2602, %v2264
        %v2604 = vmax.f32 %v2603, %v2272
        %v2605 = vmax.f32 %v2604, %v2280
        %v2606 = vmax.f32 %v2605, %v2288
        %v2607 = vmax.f32 %v2606, %v2296
        %v2608 = vmax.f32 %v2607, %v2304
        %v2609 = vmax.f32 %v2608, %v2312
        %v2610 = vmax.f32 %v2609, %v2320
        %v2611 = vrot.slane %v2610, 4
        %v2612 = vmax.f32 %v2610, %v2611
        %v2613 = vrot.slane %v2612, 2
        %v2614 = vmax.f32 %v2612, %v2613
        %v2615 = vrot.slane %v2614, 1
        %v2616 = vmax.f32 %v2614, %v2615
        %p2617 = scmp.eq.s32.totalorder %s25, 0
        // Predicated region
        $region57: #{tnet_forward.2} parent=47 // pred_check
          %p2618 = pneg %p2617
        $region58: #{tnet_forward.2} parent=47 // pred_check_branch
          %2620 = sbr.rel (%p2618) target = $region60
        $region59: #{tnet_forward.2} parent=47 // pred_region
          %v2629 = vcombine.low %v2357, %v2394
          %v2630 = vcombine.low %v2431, %v2468
          %v2631 = vcombine.low %v2505, %v2542
          %v2632 = vcombine.low %v2579, %v2616
          %v2634 = vunpack.c.l.s4 1966171168
          %v2635 = vunpack.c.0.s8 %v2634
          %v2636 = vlaneseq
          %v2637 = vshrl.u32 %v2636, 7
          %v2638 = vsub.s32 %v2635, %v2637
          %v2639 = vrot.slane %v2629, %v2638
          %v2641 = vunpack.c.l.s4 1966171168
          %v2642 = vunpack.c.0.s8 %v2641
          %v2643 = vlaneseq
          %v2644 = vshrl.u32 %v2643, 7
          %v2645 = vsub.s32 %v2642, %v2644
          %v2646 = vrot.slane %v2630, %v2645
          %v2648 = vunpack.c.l.s4 1966171168
          %v2649 = vunpack.c.0.s8 %v2648
          %v2650 = vlaneseq
          %v2651 = vshrl.u32 %v2650, 7
          %v2652 = vsub.s32 %v2649, %v2651
          %v2653 = vrot.slane %v2631, %v2652
          %v2655 = vunpack.c.l.s4 1966171168
          %v2656 = vunpack.c.0.s8 %v2655
          %v2657 = vlaneseq
          %v2658 = vshrl.u32 %v2657, 7
          %v2659 = vsub.s32 %v2656, %v2658
          %v2660 = vrot.slane %v2632, %v2659
          %v2661 = vcombine.low %v2639, %v2646
          %v2662 = vcombine.low %v2653, %v2660
          %v2664 = vunpack.c.l.s4 1966171168
          %v2665 = vunpack.c.0.s8 %v2664
          %v2666 = vlaneseq
          %v2667 = vshrl.u32 %v2666, 7
          %v2668 = vsub.s32 %v2665, %v2667
          %v2669 = vrot.slane %v2661, %v2668
          %v2671 = vunpack.c.l.s4 1966171168
          %v2672 = vunpack.c.0.s8 %v2671
          %v2673 = vlaneseq
          %v2674 = vshrl.u32 %v2673, 7
          %v2675 = vsub.s32 %v2672, %v2674
          %v2676 = vrot.slane %v2662, %v2675
          %v2677 = vcombine.low %v2669, %v2676
          %2679 = vst [vmem:[%s330] sm:$0xff] %v2677
        $region60: #{tnet_forward.2} parent=47 // pred_fallthru
          _
        %p2680 = scmp.gt.s32.totalorder %s25, 0
        // Predicated region
        $region61: #{tnet_forward.2} parent=47 // pred_check
          %p2681 = pneg %p2680
        $region62: #{tnet_forward.2} parent=47 // pred_check_branch
          %2683 = sbr.rel (%p2681) target = $region64
        $region63: #{tnet_forward.2} parent=47 // pred_region
          %v2684 = vld [vmem:[%s330] sm:$0xff]
          %v2693 = vcombine.low %v2357, %v2394
          %v2694 = vcombine.low %v2431, %v2468
          %v2695 = vcombine.low %v2505, %v2542
          %v2696 = vcombine.low %v2579, %v2616
          %v2698 = vunpack.c.l.s4 1966171168
          %v2699 = vunpack.c.0.s8 %v2698
          %v2700 = vlaneseq
          %v2701 = vshrl.u32 %v2700, 7
          %v2702 = vsub.s32 %v2699, %v2701
          %v2703 = vrot.slane %v2693, %v2702
          %v2705 = vunpack.c.l.s4 1966171168
          %v2706 = vunpack.c.0.s8 %v2705
          %v2707 = vlaneseq
          %v2708 = vshrl.u32 %v2707, 7
          %v2709 = vsub.s32 %v2706, %v2708
          %v2710 = vrot.slane %v2694, %v2709
          %v2712 = vunpack.c.l.s4 1966171168
          %v2713 = vunpack.c.0.s8 %v2712
          %v2714 = vlaneseq
          %v2715 = vshrl.u32 %v2714, 7
          %v2716 = vsub.s32 %v2713, %v2715
          %v2717 = vrot.slane %v2695, %v2716
          %v2719 = vunpack.c.l.s4 1966171168
          %v2720 = vunpack.c.0.s8 %v2719
          %v2721 = vlaneseq
          %v2722 = vshrl.u32 %v2721, 7
          %v2723 = vsub.s32 %v2720, %v2722
          %v2724 = vrot.slane %v2696, %v2723
          %v2725 = vcombine.low %v2703, %v2710
          %v2726 = vcombine.low %v2717, %v2724
          %v2728 = vunpack.c.l.s4 1966171168
          %v2729 = vunpack.c.0.s8 %v2728
          %v2730 = vlaneseq
          %v2731 = vshrl.u32 %v2730, 7
          %v2732 = vsub.s32 %v2729, %v2731
          %v2733 = vrot.slane %v2725, %v2732
          %v2735 = vunpack.c.l.s4 1966171168
          %v2736 = vunpack.c.0.s8 %v2735
          %v2737 = vlaneseq
          %v2738 = vshrl.u32 %v2737, 7
          %v2739 = vsub.s32 %v2736, %v2738
          %v2740 = vrot.slane %v2726, %v2739
          %v2741 = vcombine.low %v2733, %v2740
          %v2743 = vmax.f32 %v2684, %v2741
          %2744 = vst [vmem:[%s330] sm:$0xff] %v2743
        $region64: #{tnet_forward.2} parent=47 // pred_fallthru
          _
        %p2745 = scmp.lt.s32.totalorder %s24, 1
        %s2746 = scalar_select %p2745, %s24, 1
        %s2747 = smul.addr %s2746, 8
        %s2748 = scalar_lea.vmem %s7, %s2747
        // Predicated region
        $region65: #{tnet_forward.2} parent=47 // pred_check
          %p2749 = pneg %p204
        $region66: #{tnet_forward.2} parent=47 // pred_check_branch
          %2751 = sbr.rel (%p2749) target = $region68
        $region67: #{tnet_forward.2} parent=47 // pred_region
          _
        $region68: #{tnet_forward.2} parent=47 // pred_fallthru
          _
      $region48: #{tnet_forward.2} parent=5 // pred_fallthru
        _
      %p2752 = scmp.le.s32.totalorder 2, %s15
      // Predicated region
      $region69: #{tnet_forward.2} parent=5 // pred_check
        %p2753 = pneg %p2752
      $region70: #{tnet_forward.2} parent=5 // pred_check_branch
        %2755 = sbr.rel (%p2753) target = $region72
      $region71: #{tnet_forward.2} parent=5 // pred_region
        %s2756 = ssub.s32 %s15, 2
        // Predicated region
        $region73: #{tnet_forward.2} parent=71 // pred_check
          %p2757 = pneg %p210
        $region74: #{tnet_forward.2} parent=71 // pred_check_branch
          %2759 = sbr.rel (%p2757) target = $region76
        $region75: #{tnet_forward.2} parent=71 // pred_region
          %p2760 = scmp.lt.s32.totalorder %s26, 1
          %s2761 = scalar_select %p2760, %s26, 1
          %s2762 = smul.addr %s2761, 8
          %s2763 = scalar_lea.vmem %s7, %s2762
        $region76: #{tnet_forward.2} parent=71 // pred_fallthru
          _
      $region72: #{tnet_forward.2} parent=5 // pred_fallthru
        _
    $region6: #{tnet_forward.2} parent=1 // loop_footer
      %s19 = sadd.s32 1, %s15
    $region7: #{tnet_forward.2} parent=1 // loop_footer_branch
      %14 = sbr.rel target = $region3
    $region8: #{tnet_forward.2} parent=1 // loop_exit
      _
    %2764 = vsyncpa [#allocation3], 1
    %s2765 = scalar_lea.sflag [#allocation3], 1
    %2766 = vsyncpa %s2765, 1
    %2767 = vsyncpa [#allocation5], 1

// kernel: tnet_forward.3
$region0: #{tnet_forward.3}
  #allocation0 [shape = 'u32[]', space=smem, size = 0x4, offset = 0x4, fixed_abs, tag = 'smem constant byte address 0x4 - core index']
  #allocation1 [shape = 'u32[144,128]{1,0:T(1,128)}', space=vmem, size = 0x12000, scoped, tag = 'internal scratch']
  %s0 = inlined_call_operand.vmem [shape: f32[2,1024], index: 0, kind: input, shape index: {}]
  %s1 = inlined_call_operand.vmem [shape: bf16[1024,512], index: 1, kind: input, shape index: {}]
  %s2 = inlined_call_operand.vmem [shape: f32[1,512], index: 2, kind: input, shape index: {}]
  %s3 = inlined_call_operand.vmem [shape: bf16[512,256], index: 3, kind: input, shape index: {}]
  %s4 = inlined_call_operand.vmem [shape: f32[1,256], index: 4, kind: input, shape index: {}]
  %s5 = inlined_call_operand.vmem [shape: bf16[256,128], index: 5, kind: input, shape index: {}]
  %s6 = inlined_call_operand.vmem [shape: f32[1,128], index: 6, kind: input, shape index: {}]
  %s7 = inlined_call_operand.vmem [shape: f32[2,128], index: 7, kind: output, shape index: {}]
  %s8 = sld [smem:[#allocation0]]
  $region38: #{tnet_forward.3} parent=0
    _
  %s10 = ssub.s32 1, %s8
  %s11 = scalar_select 0, %s10, %s8
  // Predicated region
  $region2: #{tnet_forward.3} parent=0 // pred_check
    _
  $region3: #{tnet_forward.3} parent=0 // pred_check_branch
    %13 = sbr.rel (0) target = $region5
  $region4: #{tnet_forward.3} parent=0 // pred_region
    _
  $region5: #{tnet_forward.3} parent=0 // pred_fallthru
    _
  // Predicated region
  $region6: #{tnet_forward.3} parent=0 // pred_check
    _
  $region7: #{tnet_forward.3} parent=0 // pred_check_branch
    %15 = sbr.rel (0) target = $region9
  $region8: #{tnet_forward.3} parent=0 // pred_region
    _
  $region9: #{tnet_forward.3} parent=0 // pred_fallthru
    _
  // Predicated region
  $region10: #{tnet_forward.3} parent=0 // pred_check
    _
  $region11: #{tnet_forward.3} parent=0 // pred_check_branch
    %17 = sbr.rel (0) target = $region13
  $region12: #{tnet_forward.3} parent=0 // pred_region
    _
  $region13: #{tnet_forward.3} parent=0 // pred_fallthru
    _
  // Predicated region
  $region14: #{tnet_forward.3} parent=0 // pred_check
    _
  $region15: #{tnet_forward.3} parent=0 // pred_check_branch
    %19 = sbr.rel (0) target = $region17
  $region16: #{tnet_forward.3} parent=0 // pred_region
    _
  $region17: #{tnet_forward.3} parent=0 // pred_fallthru
    _
  // Predicated region
  $region18: #{tnet_forward.3} parent=0 // pred_check
    _
  $region19: #{tnet_forward.3} parent=0 // pred_check_branch
    %21 = sbr.rel (0) target = $region21
  $region20: #{tnet_forward.3} parent=0 // pred_region
    _
  $region21: #{tnet_forward.3} parent=0 // pred_fallthru
    _
  // Predicated region
  $region22: #{tnet_forward.3} parent=0 // pred_check
    _
  $region23: #{tnet_forward.3} parent=0 // pred_check_branch
    %23 = sbr.rel (0) target = $region25
  $region24: #{tnet_forward.3} parent=0 // pred_region
    _
  $region25: #{tnet_forward.3} parent=0 // pred_fallthru
    _
  // Predicated region
  $region26: #{tnet_forward.3} parent=0 // pred_check
    _
  $region27: #{tnet_forward.3} parent=0 // pred_check_branch
    %25 = sbr.rel (0) target = $region29
  $region28: #{tnet_forward.3} parent=0 // pred_region
    _
  $region29: #{tnet_forward.3} parent=0 // pred_fallthru
    _
  %v27 = vld [vmem:[%s0] sm:$0xff]
  %v28 = vld [vmem:[%s0 + $0x8] sm:$0xff]
  %v31 = vcombine.high %v27, %v27
  %v33 = vunpack.c.l.s4 1983009808
  %v34 = vunpack.c.0.s8 %v33
  %v35 = vlaneseq
  %v36 = vshrl.u32 %v35, 7
  %v37 = vsub.s32 %v34, %v36
  %v38 = vrot.slane %v27, %v37
  %v40 = vunpack.c.l.s4 1983009808
  %v41 = vunpack.c.0.s8 %v40
  %v42 = vlaneseq
  %v43 = vshrl.u32 %v42, 7
  %v44 = vsub.s32 %v41, %v43
  %v45 = vrot.slane %v31, %v44
  %v46 = vcombine.high %v38, %v38
  %v47 = vcombine.high %v45, %v45
  %v48 = vcombine.high %v28, %v28
  %v50 = vunpack.c.l.s4 1983009808
  %v51 = vunpack.c.0.s8 %v50
  %v52 = vlaneseq
  %v53 = vshrl.u32 %v52, 7
  %v54 = vsub.s32 %v51, %v53
  %v55 = vrot.slane %v28, %v54
  %v57 = vunpack.c.l.s4 1983009808
  %v58 = vunpack.c.0.s8 %v57
  %v59 = vlaneseq
  %v60 = vshrl.u32 %v59, 7
  %v61 = vsub.s32 %v58, %v60
  %v62 = vrot.slane %v48, %v61
  %v63 = vcombine.high %v55, %v55
  %v64 = vcombine.high %v62, %v62
  %v73 = vpack.c.bf16 %v38, %v38
  %v74 = vpack.c.bf16 %v46, %v46
  %v75 = vpack.c.bf16 %v45, %v45
  %v76 = vpack.c.bf16 %v47, %v47
  %v77 = vpack.c.bf16 %v55, %v55
  %v78 = vpack.c.bf16 %v63, %v63
  %v79 = vpack.c.bf16 %v62, %v62
  %v80 = vpack.c.bf16 %v64, %v64
  %v81 = vld [vmem:[%s1] sm:$0xff]
  %v82 = vld [vmem:[%s1 + $0x8] sm:$0xff]
  %v83 = vld [vmem:[%s1 + $0x10] sm:$0xff]
  %v84 = vld [vmem:[%s1 + $0x18] sm:$0xff]
  %v85 = vld [vmem:[%s1 + $0x20] sm:$0xff]
  %v86 = vld [vmem:[%s1 + $0x28] sm:$0xff]
  %v87 = vld [vmem:[%s1 + $0x30] sm:$0xff]
  %v88 = vld [vmem:[%s1 + $0x38] sm:$0xff]
  %v89 = vld [vmem:[%s1 + $0x40] sm:$0xff]
  %v90 = vld [vmem:[%s1 + $0x48] sm:$0xff]
  %v91 = vld [vmem:[%s1 + $0x50] sm:$0xff]
  %v92 = vld [vmem:[%s1 + $0x58] sm:$0xff]
  %v93 = vld [vmem:[%s1 + $0x60] sm:$0xff]
  %v94 = vld [vmem:[%s1 + $0x68] sm:$0xff]
  %v95 = vld [vmem:[%s1 + $0x70] sm:$0xff]
  %v96 = vld [vmem:[%s1 + $0x78] sm:$0xff]
  %v97 = vld [vmem:[%s1 + $0x80] sm:$0xff]
  %v98 = vld [vmem:[%s1 + $0x88] sm:$0xff]
  %v99 = vld [vmem:[%s1 + $0x90] sm:$0xff]
  %v100 = vld [vmem:[%s1 + $0x98] sm:$0xff]
  %v101 = vld [vmem:[%s1 + $0xa0] sm:$0xff]
  %v102 = vld [vmem:[%s1 + $0xa8] sm:$0xff]
  %v103 = vld [vmem:[%s1 + $0xb0] sm:$0xff]
  %v104 = vld [vmem:[%s1 + $0xb8] sm:$0xff]
  %v105 = vld [vmem:[%s1 + $0xc0] sm:$0xff]
  %v106 = vld [vmem:[%s1 + $0xc8] sm:$0xff]
  %v107 = vld [vmem:[%s1 + $0xd0] sm:$0xff]
  %v108 = vld [vmem:[%s1 + $0xd8] sm:$0xff]
  %v109 = vld [vmem:[%s1 + $0xe0] sm:$0xff]
  %v110 = vld [vmem:[%s1 + $0xe8] sm:$0xff]
  %v111 = vld [vmem:[%s1 + $0xf0] sm:$0xff]
  %v112 = vld [vmem:[%s1 + $0xf8] sm:$0xff]
  %v113 = vld [vmem:[%s1 + $0x100] sm:$0xff]
  %v114 = vld [vmem:[%s1 + $0x108] sm:$0xff]
  %v115 = vld [vmem:[%s1 + $0x110] sm:$0xff]
  %v116 = vld [vmem:[%s1 + $0x118] sm:$0xff]
  %v117 = vld [vmem:[%s1 + $0x120] sm:$0xff]
  %v118 = vld [vmem:[%s1 + $0x128] sm:$0xff]
  %v119 = vld [vmem:[%s1 + $0x130] sm:$0xff]
  %v120 = vld [vmem:[%s1 + $0x138] sm:$0xff]
  %v121 = vld [vmem:[%s1 + $0x140] sm:$0xff]
  %v122 = vld [vmem:[%s1 + $0x148] sm:$0xff]
  %v123 = vld [vmem:[%s1 + $0x150] sm:$0xff]
  %v124 = vld [vmem:[%s1 + $0x158] sm:$0xff]
  %v125 = vld [vmem:[%s1 + $0x160] sm:$0xff]
  %v126 = vld [vmem:[%s1 + $0x168] sm:$0xff]
  %v127 = vld [vmem:[%s1 + $0x170] sm:$0xff]
  %v128 = vld [vmem:[%s1 + $0x178] sm:$0xff]
  %v129 = vld [vmem:[%s1 + $0x180] sm:$0xff]
  %v130 = vld [vmem:[%s1 + $0x188] sm:$0xff]
  %v131 = vld [vmem:[%s1 + $0x190] sm:$0xff]
  %v132 = vld [vmem:[%s1 + $0x198] sm:$0xff]
  %v133 = vld [vmem:[%s1 + $0x1a0] sm:$0xff]
  %v134 = vld [vmem:[%s1 + $0x1a8] sm:$0xff]
  %v135 = vld [vmem:[%s1 + $0x1b0] sm:$0xff]
  %v136 = vld [vmem:[%s1 + $0x1b8] sm:$0xff]
  %v137 = vld [vmem:[%s1 + $0x1c0] sm:$0xff]
  %v138 = vld [vmem:[%s1 + $0x1c8] sm:$0xff]
  %v139 = vld [vmem:[%s1 + $0x1d0] sm:$0xff]
  %v140 = vld [vmem:[%s1 + $0x1d8] sm:$0xff]
  %v141 = vld [vmem:[%s1 + $0x1e0] sm:$0xff]
  %v142 = vld [vmem:[%s1 + $0x1e8] sm:$0xff]
  %v143 = vld [vmem:[%s1 + $0x1f0] sm:$0xff]
  %v144 = vld [vmem:[%s1 + $0x1f8] sm:$0xff]
  %v145 = vld [vmem:[%s1 + $0x200] sm:$0xff]
  %v146 = vld [vmem:[%s1 + $0x208] sm:$0xff]
  %v147 = vld [vmem:[%s1 + $0x210] sm:$0xff]
  %v148 = vld [vmem:[%s1 + $0x218] sm:$0xff]
  %v149 = vld [vmem:[%s1 + $0x220] sm:$0xff]
  %v150 = vld [vmem:[%s1 + $0x228] sm:$0xff]
  %v151 = vld [vmem:[%s1 + $0x230] sm:$0xff]
  %v152 = vld [vmem:[%s1 + $0x238] sm:$0xff]
  %v153 = vld [vmem:[%s1 + $0x240] sm:$0xff]
  %v154 = vld [vmem:[%s1 + $0x248] sm:$0xff]
  %v155 = vld [vmem:[%s1 + $0x250] sm:$0xff]
  %v156 = vld [vmem:[%s1 + $0x258] sm:$0xff]
  %v157 = vld [vmem:[%s1 + $0x260] sm:$0xff]
  %v158 = vld [vmem:[%s1 + $0x268] sm:$0xff]
  %v159 = vld [vmem:[%s1 + $0x270] sm:$0xff]
  %v160 = vld [vmem:[%s1 + $0x278] sm:$0xff]
  %v161 = vld [vmem:[%s1 + $0x280] sm:$0xff]
  %v162 = vld [vmem:[%s1 + $0x288] sm:$0xff]
  %v163 = vld [vmem:[%s1 + $0x290] sm:$0xff]
  %v164 = vld [vmem:[%s1 + $0x298] sm:$0xff]
  %v165 = vld [vmem:[%s1 + $0x2a0] sm:$0xff]
  %v166 = vld [vmem:[%s1 + $0x2a8] sm:$0xff]
  %v167 = vld [vmem:[%s1 + $0x2b0] sm:$0xff]
  %v168 = vld [vmem:[%s1 + $0x2b8] sm:$0xff]
  %v169 = vld [vmem:[%s1 + $0x2c0] sm:$0xff]
  %v170 = vld [vmem:[%s1 + $0x2c8] sm:$0xff]
  %v171 = vld [vmem:[%s1 + $0x2d0] sm:$0xff]
  %v172 = vld [vmem:[%s1 + $0x2d8] sm:$0xff]
  %v173 = vld [vmem:[%s1 + $0x2e0] sm:$0xff]
  %v174 = vld [vmem:[%s1 + $0x2e8] sm:$0xff]
  %v175 = vld [vmem:[%s1 + $0x2f0] sm:$0xff]
  %v176 = vld [vmem:[%s1 + $0x2f8] sm:$0xff]
  %v177 = vld [vmem:[%s1 + $0x300] sm:$0xff]
  %v178 = vld [vmem:[%s1 + $0x308] sm:$0xff]
  %v179 = vld [vmem:[%s1 + $0x310] sm:$0xff]
  %v180 = vld [vmem:[%s1 + $0x318] sm:$0xff]
  %v181 = vld [vmem:[%s1 + $0x320] sm:$0xff]
  %v182 = vld [vmem:[%s1 + $0x328] sm:$0xff]
  %v183 = vld [vmem:[%s1 + $0x330] sm:$0xff]
  %v184 = vld [vmem:[%s1 + $0x338] sm:$0xff]
  %v185 = vld [vmem:[%s1 + $0x340] sm:$0xff]
  %v186 = vld [vmem:[%s1 + $0x348] sm:$0xff]
  %v187 = vld [vmem:[%s1 + $0x350] sm:$0xff]
  %v188 = vld [vmem:[%s1 + $0x358] sm:$0xff]
  %v189 = vld [vmem:[%s1 + $0x360] sm:$0xff]
  %v190 = vld [vmem:[%s1 + $0x368] sm:$0xff]
  %v191 = vld [vmem:[%s1 + $0x370] sm:$0xff]
  %v192 = vld [vmem:[%s1 + $0x378] sm:$0xff]
  %v193 = vld [vmem:[%s1 + $0x380] sm:$0xff]
  %v194 = vld [vmem:[%s1 + $0x388] sm:$0xff]
  %v195 = vld [vmem:[%s1 + $0x390] sm:$0xff]
  %v196 = vld [vmem:[%s1 + $0x398] sm:$0xff]
  %v197 = vld [vmem:[%s1 + $0x3a0] sm:$0xff]
  %v198 = vld [vmem:[%s1 + $0x3a8] sm:$0xff]
  %v199 = vld [vmem:[%s1 + $0x3b0] sm:$0xff]
  %v200 = vld [vmem:[%s1 + $0x3b8] sm:$0xff]
  %v201 = vld [vmem:[%s1 + $0x3c0] sm:$0xff]
  %v202 = vld [vmem:[%s1 + $0x3c8] sm:$0xff]
  %v203 = vld [vmem:[%s1 + $0x3d0] sm:$0xff]
  %v204 = vld [vmem:[%s1 + $0x3d8] sm:$0xff]
  %v205 = vld [vmem:[%s1 + $0x3e0] sm:$0xff]
  %v206 = vld [vmem:[%s1 + $0x3e8] sm:$0xff]
  %v207 = vld [vmem:[%s1 + $0x3f0] sm:$0xff]
  %v208 = vld [vmem:[%s1 + $0x3f8] sm:$0xff]
  %v209 = vld [vmem:[%s1 + $0x400] sm:$0xff]
  %v210 = vld [vmem:[%s1 + $0x408] sm:$0xff]
  %v211 = vld [vmem:[%s1 + $0x410] sm:$0xff]
  %v212 = vld [vmem:[%s1 + $0x418] sm:$0xff]
  %v213 = vld [vmem:[%s1 + $0x420] sm:$0xff]
  %v214 = vld [vmem:[%s1 + $0x428] sm:$0xff]
  %v215 = vld [vmem:[%s1 + $0x430] sm:$0xff]
  %v216 = vld [vmem:[%s1 + $0x438] sm:$0xff]
  %v217 = vld [vmem:[%s1 + $0x440] sm:$0xff]
  %v218 = vld [vmem:[%s1 + $0x448] sm:$0xff]
  %v219 = vld [vmem:[%s1 + $0x450] sm:$0xff]
  %v220 = vld [vmem:[%s1 + $0x458] sm:$0xff]
  %v221 = vld [vmem:[%s1 + $0x460] sm:$0xff]
  %v222 = vld [vmem:[%s1 + $0x468] sm:$0xff]
  %v223 = vld [vmem:[%s1 + $0x470] sm:$0xff]
  %v224 = vld [vmem:[%s1 + $0x478] sm:$0xff]
  %v225 = vld [vmem:[%s1 + $0x480] sm:$0xff]
  %v226 = vld [vmem:[%s1 + $0x488] sm:$0xff]
  %v227 = vld [vmem:[%s1 + $0x490] sm:$0xff]
  %v228 = vld [vmem:[%s1 + $0x498] sm:$0xff]
  %v229 = vld [vmem:[%s1 + $0x4a0] sm:$0xff]
  %v230 = vld [vmem:[%s1 + $0x4a8] sm:$0xff]
  %v231 = vld [vmem:[%s1 + $0x4b0] sm:$0xff]
  %v232 = vld [vmem:[%s1 + $0x4b8] sm:$0xff]
  %v233 = vld [vmem:[%s1 + $0x4c0] sm:$0xff]
  %v234 = vld [vmem:[%s1 + $0x4c8] sm:$0xff]
  %v235 = vld [vmem:[%s1 + $0x4d0] sm:$0xff]
  %v236 = vld [vmem:[%s1 + $0x4d8] sm:$0xff]
  %v237 = vld [vmem:[%s1 + $0x4e0] sm:$0xff]
  %v238 = vld [vmem:[%s1 + $0x4e8] sm:$0xff]
  %v239 = vld [vmem:[%s1 + $0x4f0] sm:$0xff]
  %v240 = vld [vmem:[%s1 + $0x4f8] sm:$0xff]
  %v241 = vld [vmem:[%s1 + $0x500] sm:$0xff]
  %v242 = vld [vmem:[%s1 + $0x508] sm:$0xff]
  %v243 = vld [vmem:[%s1 + $0x510] sm:$0xff]
  %v244 = vld [vmem:[%s1 + $0x518] sm:$0xff]
  %v245 = vld [vmem:[%s1 + $0x520] sm:$0xff]
  %v246 = vld [vmem:[%s1 + $0x528] sm:$0xff]
  %v247 = vld [vmem:[%s1 + $0x530] sm:$0xff]
  %v248 = vld [vmem:[%s1 + $0x538] sm:$0xff]
  %v249 = vld [vmem:[%s1 + $0x540] sm:$0xff]
  %v250 = vld [vmem:[%s1 + $0x548] sm:$0xff]
  %v251 = vld [vmem:[%s1 + $0x550] sm:$0xff]
  %v252 = vld [vmem:[%s1 + $0x558] sm:$0xff]
  %v253 = vld [vmem:[%s1 + $0x560] sm:$0xff]
  %v254 = vld [vmem:[%s1 + $0x568] sm:$0xff]
  %v255 = vld [vmem:[%s1 + $0x570] sm:$0xff]
  %v256 = vld [vmem:[%s1 + $0x578] sm:$0xff]
  %v257 = vld [vmem:[%s1 + $0x580] sm:$0xff]
  %v258 = vld [vmem:[%s1 + $0x588] sm:$0xff]
  %v259 = vld [vmem:[%s1 + $0x590] sm:$0xff]
  %v260 = vld [vmem:[%s1 + $0x598] sm:$0xff]
  %v261 = vld [vmem:[%s1 + $0x5a0] sm:$0xff]
  %v262 = vld [vmem:[%s1 + $0x5a8] sm:$0xff]
  %v263 = vld [vmem:[%s1 + $0x5b0] sm:$0xff]
  %v264 = vld [vmem:[%s1 + $0x5b8] sm:$0xff]
  %v265 = vld [vmem:[%s1 + $0x5c0] sm:$0xff]
  %v266 = vld [vmem:[%s1 + $0x5c8] sm:$0xff]
  %v267 = vld [vmem:[%s1 + $0x5d0] sm:$0xff]
  %v268 = vld [vmem:[%s1 + $0x5d8] sm:$0xff]
  %v269 = vld [vmem:[%s1 + $0x5e0] sm:$0xff]
  %v270 = vld [vmem:[%s1 + $0x5e8] sm:$0xff]
  %v271 = vld [vmem:[%s1 + $0x5f0] sm:$0xff]
  %v272 = vld [vmem:[%s1 + $0x5f8] sm:$0xff]
  %v273 = vld [vmem:[%s1 + $0x600] sm:$0xff]
  %v274 = vld [vmem:[%s1 + $0x608] sm:$0xff]
  %v275 = vld [vmem:[%s1 + $0x610] sm:$0xff]
  %v276 = vld [vmem:[%s1 + $0x618] sm:$0xff]
  %v277 = vld [vmem:[%s1 + $0x620] sm:$0xff]
  %v278 = vld [vmem:[%s1 + $0x628] sm:$0xff]
  %v279 = vld [vmem:[%s1 + $0x630] sm:$0xff]
  %v280 = vld [vmem:[%s1 + $0x638] sm:$0xff]
  %v281 = vld [vmem:[%s1 + $0x640] sm:$0xff]
  %v282 = vld [vmem:[%s1 + $0x648] sm:$0xff]
  %v283 = vld [vmem:[%s1 + $0x650] sm:$0xff]
  %v284 = vld [vmem:[%s1 + $0x658] sm:$0xff]
  %v285 = vld [vmem:[%s1 + $0x660] sm:$0xff]
  %v286 = vld [vmem:[%s1 + $0x668] sm:$0xff]
  %v287 = vld [vmem:[%s1 + $0x670] sm:$0xff]
  %v288 = vld [vmem:[%s1 + $0x678] sm:$0xff]
  %v289 = vld [vmem:[%s1 + $0x680] sm:$0xff]
  %v290 = vld [vmem:[%s1 + $0x688] sm:$0xff]
  %v291 = vld [vmem:[%s1 + $0x690] sm:$0xff]
  %v292 = vld [vmem:[%s1 + $0x698] sm:$0xff]
  %v293 = vld [vmem:[%s1 + $0x6a0] sm:$0xff]
  %v294 = vld [vmem:[%s1 + $0x6a8] sm:$0xff]
  %v295 = vld [vmem:[%s1 + $0x6b0] sm:$0xff]
  %v296 = vld [vmem:[%s1 + $0x6b8] sm:$0xff]
  %v297 = vld [vmem:[%s1 + $0x6c0] sm:$0xff]
  %v298 = vld [vmem:[%s1 + $0x6c8] sm:$0xff]
  %v299 = vld [vmem:[%s1 + $0x6d0] sm:$0xff]
  %v300 = vld [vmem:[%s1 + $0x6d8] sm:$0xff]
  %v301 = vld [vmem:[%s1 + $0x6e0] sm:$0xff]
  %v302 = vld [vmem:[%s1 + $0x6e8] sm:$0xff]
  %v303 = vld [vmem:[%s1 + $0x6f0] sm:$0xff]
  %v304 = vld [vmem:[%s1 + $0x6f8] sm:$0xff]
  %v305 = vld [vmem:[%s1 + $0x700] sm:$0xff]
  %v306 = vld [vmem:[%s1 + $0x708] sm:$0xff]
  %v307 = vld [vmem:[%s1 + $0x710] sm:$0xff]
  %v308 = vld [vmem:[%s1 + $0x718] sm:$0xff]
  %v309 = vld [vmem:[%s1 + $0x720] sm:$0xff]
  %v310 = vld [vmem:[%s1 + $0x728] sm:$0xff]
  %v311 = vld [vmem:[%s1 + $0x730] sm:$0xff]
  %v312 = vld [vmem:[%s1 + $0x738] sm:$0xff]
  %v313 = vld [vmem:[%s1 + $0x740] sm:$0xff]
  %v314 = vld [vmem:[%s1 + $0x748] sm:$0xff]
  %v315 = vld [vmem:[%s1 + $0x750] sm:$0xff]
  %v316 = vld [vmem:[%s1 + $0x758] sm:$0xff]
  %v317 = vld [vmem:[%s1 + $0x760] sm:$0xff]
  %v318 = vld [vmem:[%s1 + $0x768] sm:$0xff]
  %v319 = vld [vmem:[%s1 + $0x770] sm:$0xff]
  %v320 = vld [vmem:[%s1 + $0x778] sm:$0xff]
  %v321 = vld [vmem:[%s1 + $0x780] sm:$0xff]
  %v322 = vld [vmem:[%s1 + $0x788] sm:$0xff]
  %v323 = vld [vmem:[%s1 + $0x790] sm:$0xff]
  %v324 = vld [vmem:[%s1 + $0x798] sm:$0xff]
  %v325 = vld [vmem:[%s1 + $0x7a0] sm:$0xff]
  %v326 = vld [vmem:[%s1 + $0x7a8] sm:$0xff]
  %v327 = vld [vmem:[%s1 + $0x7b0] sm:$0xff]
  %v328 = vld [vmem:[%s1 + $0x7b8] sm:$0xff]
  %v329 = vld [vmem:[%s1 + $0x7c0] sm:$0xff]
  %v330 = vld [vmem:[%s1 + $0x7c8] sm:$0xff]
  %v331 = vld [vmem:[%s1 + $0x7d0] sm:$0xff]
  %v332 = vld [vmem:[%s1 + $0x7d8] sm:$0xff]
  %v333 = vld [vmem:[%s1 + $0x7e0] sm:$0xff]
  %v334 = vld [vmem:[%s1 + $0x7e8] sm:$0xff]
  %v335 = vld [vmem:[%s1 + $0x7f0] sm:$0xff]
  %v336 = vld [vmem:[%s1 + $0x7f8] sm:$0xff]
  %v337 = vld [vmem:[%s2] sm:$0xf]
  %v339 = vlaneseq
  %v340 = vshrl.u32 %v339, 7
  %v341 = vsub.s32 0, %v340
  %v342 = vrot.slane %v337, %v341
  %v343 = vlaneseq
  %v344 = vshrl.u32 %v343, 7
  %v345 = vsub.s32 1, %v344
  %v346 = vrot.slane %v337, %v345
  %v347 = vlaneseq
  %v348 = vshrl.u32 %v347, 7
  %v349 = vsub.s32 2, %v348
  %v350 = vrot.slane %v337, %v349
  %v351 = vlaneseq
  %v352 = vshrl.u32 %v351, 7
  %v353 = vsub.s32 3, %v352
  %v354 = vrot.slane %v337, %v353
  %v615 = vunpack.c.l.b16 %v81
  %v616 = vunpack.c.h.b16 %v81
  %v617 = vunpack.c.l.b16 %v82
  %v618 = vunpack.c.h.b16 %v82
  %v619 = vunpack.c.l.b16 %v83
  %v620 = vunpack.c.h.b16 %v83
  %v621 = vunpack.c.l.b16 %v84
  %v622 = vunpack.c.h.b16 %v84
  %v623 = vunpack.c.l.b16 %v85
  %v624 = vunpack.c.h.b16 %v85
  %v625 = vunpack.c.l.b16 %v86
  %v626 = vunpack.c.h.b16 %v86
  %v627 = vunpack.c.l.b16 %v87
  %v628 = vunpack.c.h.b16 %v87
  %v629 = vunpack.c.l.b16 %v88
  %v630 = vunpack.c.h.b16 %v88
  %v631 = vunpack.c.l.b16 %v89
  %v632 = vunpack.c.h.b16 %v89
  %v633 = vunpack.c.l.b16 %v90
  %v634 = vunpack.c.h.b16 %v90
  %v635 = vunpack.c.l.b16 %v91
  %v636 = vunpack.c.h.b16 %v91
  %v637 = vunpack.c.l.b16 %v92
  %v638 = vunpack.c.h.b16 %v92
  %v639 = vunpack.c.l.b16 %v93
  %v640 = vunpack.c.h.b16 %v93
  %v641 = vunpack.c.l.b16 %v94
  %v642 = vunpack.c.h.b16 %v94
  %v643 = vunpack.c.l.b16 %v95
  %v644 = vunpack.c.h.b16 %v95
  %v645 = vunpack.c.l.b16 %v96
  %v646 = vunpack.c.h.b16 %v96
  %v647 = vunpack.c.l.b16 %v97
  %v648 = vunpack.c.h.b16 %v97
  %v649 = vunpack.c.l.b16 %v98
  %v650 = vunpack.c.h.b16 %v98
  %v651 = vunpack.c.l.b16 %v99
  %v652 = vunpack.c.h.b16 %v99
  %v653 = vunpack.c.l.b16 %v100
  %v654 = vunpack.c.h.b16 %v100
  %v655 = vunpack.c.l.b16 %v101
  %v656 = vunpack.c.h.b16 %v101
  %v657 = vunpack.c.l.b16 %v102
  %v658 = vunpack.c.h.b16 %v102
  %v659 = vunpack.c.l.b16 %v103
  %v660 = vunpack.c.h.b16 %v103
  %v661 = vunpack.c.l.b16 %v104
  %v662 = vunpack.c.h.b16 %v104
  %v663 = vunpack.c.l.b16 %v105
  %v664 = vunpack.c.h.b16 %v105
  %v665 = vunpack.c.l.b16 %v106
  %v666 = vunpack.c.h.b16 %v106
  %v667 = vunpack.c.l.b16 %v107
  %v668 = vunpack.c.h.b16 %v107
  %v669 = vunpack.c.l.b16 %v108
  %v670 = vunpack.c.h.b16 %v108
  %v671 = vunpack.c.l.b16 %v109
  %v672 = vunpack.c.h.b16 %v109
  %v673 = vunpack.c.l.b16 %v110
  %v674 = vunpack.c.h.b16 %v110
  %v675 = vunpack.c.l.b16 %v111
  %v676 = vunpack.c.h.b16 %v111
  %v677 = vunpack.c.l.b16 %v112
  %v678 = vunpack.c.h.b16 %v112
  %v679 = vunpack.c.l.b16 %v113
  %v680 = vunpack.c.h.b16 %v113
  %v681 = vunpack.c.l.b16 %v114
  %v682 = vunpack.c.h.b16 %v114
  %v683 = vunpack.c.l.b16 %v115
  %v684 = vunpack.c.h.b16 %v115
  %v685 = vunpack.c.l.b16 %v116
  %v686 = vunpack.c.h.b16 %v116
  %v687 = vunpack.c.l.b16 %v117
  %v688 = vunpack.c.h.b16 %v117
  %v689 = vunpack.c.l.b16 %v118
  %v690 = vunpack.c.h.b16 %v118
  %v691 = vunpack.c.l.b16 %v119
  %v692 = vunpack.c.h.b16 %v119
  %v693 = vunpack.c.l.b16 %v120
  %v694 = vunpack.c.h.b16 %v120
  %v695 = vunpack.c.l.b16 %v121
  %v696 = vunpack.c.h.b16 %v121
  %v697 = vunpack.c.l.b16 %v122
  %v698 = vunpack.c.h.b16 %v122
  %v699 = vunpack.c.l.b16 %v123
  %v700 = vunpack.c.h.b16 %v123
  %v701 = vunpack.c.l.b16 %v124
  %v702 = vunpack.c.h.b16 %v124
  %v703 = vunpack.c.l.b16 %v125
  %v704 = vunpack.c.h.b16 %v125
  %v705 = vunpack.c.l.b16 %v126
  %v706 = vunpack.c.h.b16 %v126
  %v707 = vunpack.c.l.b16 %v127
  %v708 = vunpack.c.h.b16 %v127
  %v709 = vunpack.c.l.b16 %v128
  %v710 = vunpack.c.h.b16 %v128
  %v711 = vunpack.c.l.b16 %v129
  %v712 = vunpack.c.h.b16 %v129
  %v713 = vunpack.c.l.b16 %v130
  %v714 = vunpack.c.h.b16 %v130
  %v715 = vunpack.c.l.b16 %v131
  %v716 = vunpack.c.h.b16 %v131
  %v717 = vunpack.c.l.b16 %v132
  %v718 = vunpack.c.h.b16 %v132
  %v719 = vunpack.c.l.b16 %v133
  %v720 = vunpack.c.h.b16 %v133
  %v721 = vunpack.c.l.b16 %v134
  %v722 = vunpack.c.h.b16 %v134
  %v723 = vunpack.c.l.b16 %v135
  %v724 = vunpack.c.h.b16 %v135
  %v725 = vunpack.c.l.b16 %v136
  %v726 = vunpack.c.h.b16 %v136
  %v727 = vunpack.c.l.b16 %v137
  %v728 = vunpack.c.h.b16 %v137
  %v729 = vunpack.c.l.b16 %v138
  %v730 = vunpack.c.h.b16 %v138
  %v731 = vunpack.c.l.b16 %v139
  %v732 = vunpack.c.h.b16 %v139
  %v733 = vunpack.c.l.b16 %v140
  %v734 = vunpack.c.h.b16 %v140
  %v735 = vunpack.c.l.b16 %v141
  %v736 = vunpack.c.h.b16 %v141
  %v737 = vunpack.c.l.b16 %v142
  %v738 = vunpack.c.h.b16 %v142
  %v739 = vunpack.c.l.b16 %v143
  %v740 = vunpack.c.h.b16 %v143
  %v741 = vunpack.c.l.b16 %v144
  %v742 = vunpack.c.h.b16 %v144
  %v743 = vunpack.c.l.b16 %v145
  %v744 = vunpack.c.h.b16 %v145
  %v745 = vunpack.c.l.b16 %v146
  %v746 = vunpack.c.h.b16 %v146
  %v747 = vunpack.c.l.b16 %v147
  %v748 = vunpack.c.h.b16 %v147
  %v749 = vunpack.c.l.b16 %v148
  %v750 = vunpack.c.h.b16 %v148
  %v751 = vunpack.c.l.b16 %v149
  %v752 = vunpack.c.h.b16 %v149
  %v753 = vunpack.c.l.b16 %v150
  %v754 = vunpack.c.h.b16 %v150
  %v755 = vunpack.c.l.b16 %v151
  %v756 = vunpack.c.h.b16 %v151
  %v757 = vunpack.c.l.b16 %v152
  %v758 = vunpack.c.h.b16 %v152
  %v759 = vunpack.c.l.b16 %v153
  %v760 = vunpack.c.h.b16 %v153
  %v761 = vunpack.c.l.b16 %v154
  %v762 = vunpack.c.h.b16 %v154
  %v763 = vunpack.c.l.b16 %v155
  %v764 = vunpack.c.h.b16 %v155
  %v765 = vunpack.c.l.b16 %v156
  %v766 = vunpack.c.h.b16 %v156
  %v767 = vunpack.c.l.b16 %v157
  %v768 = vunpack.c.h.b16 %v157
  %v769 = vunpack.c.l.b16 %v158
  %v770 = vunpack.c.h.b16 %v158
  %v771 = vunpack.c.l.b16 %v159
  %v772 = vunpack.c.h.b16 %v159
  %v773 = vunpack.c.l.b16 %v160
  %v774 = vunpack.c.h.b16 %v160
  %v775 = vunpack.c.l.b16 %v161
  %v776 = vunpack.c.h.b16 %v161
  %v777 = vunpack.c.l.b16 %v162
  %v778 = vunpack.c.h.b16 %v162
  %v779 = vunpack.c.l.b16 %v163
  %v780 = vunpack.c.h.b16 %v163
  %v781 = vunpack.c.l.b16 %v164
  %v782 = vunpack.c.h.b16 %v164
  %v783 = vunpack.c.l.b16 %v165
  %v784 = vunpack.c.h.b16 %v165
  %v785 = vunpack.c.l.b16 %v166
  %v786 = vunpack.c.h.b16 %v166
  %v787 = vunpack.c.l.b16 %v167
  %v788 = vunpack.c.h.b16 %v167
  %v789 = vunpack.c.l.b16 %v168
  %v790 = vunpack.c.h.b16 %v168
  %v791 = vunpack.c.l.b16 %v169
  %v792 = vunpack.c.h.b16 %v169
  %v793 = vunpack.c.l.b16 %v170
  %v794 = vunpack.c.h.b16 %v170
  %v795 = vunpack.c.l.b16 %v171
  %v796 = vunpack.c.h.b16 %v171
  %v797 = vunpack.c.l.b16 %v172
  %v798 = vunpack.c.h.b16 %v172
  %v799 = vunpack.c.l.b16 %v173
  %v800 = vunpack.c.h.b16 %v173
  %v801 = vunpack.c.l.b16 %v174
  %v802 = vunpack.c.h.b16 %v174
  %v803 = vunpack.c.l.b16 %v175
  %v804 = vunpack.c.h.b16 %v175
  %v805 = vunpack.c.l.b16 %v176
  %v806 = vunpack.c.h.b16 %v176
  %v807 = vunpack.c.l.b16 %v177
  %v808 = vunpack.c.h.b16 %v177
  %v809 = vunpack.c.l.b16 %v178
  %v810 = vunpack.c.h.b16 %v178
  %v811 = vunpack.c.l.b16 %v179
  %v812 = vunpack.c.h.b16 %v179
  %v813 = vunpack.c.l.b16 %v180
  %v814 = vunpack.c.h.b16 %v180
  %v815 = vunpack.c.l.b16 %v181
  %v816 = vunpack.c.h.b16 %v181
  %v817 = vunpack.c.l.b16 %v182
  %v818 = vunpack.c.h.b16 %v182
  %v819 = vunpack.c.l.b16 %v183
  %v820 = vunpack.c.h.b16 %v183
  %v821 = vunpack.c.l.b16 %v184
  %v822 = vunpack.c.h.b16 %v184
  %v823 = vunpack.c.l.b16 %v185
  %v824 = vunpack.c.h.b16 %v185
  %v825 = vunpack.c.l.b16 %v186
  %v826 = vunpack.c.h.b16 %v186
  %v827 = vunpack.c.l.b16 %v187
  %v828 = vunpack.c.h.b16 %v187
  %v829 = vunpack.c.l.b16 %v188
  %v830 = vunpack.c.h.b16 %v188
  %v831 = vunpack.c.l.b16 %v189
  %v832 = vunpack.c.h.b16 %v189
  %v833 = vunpack.c.l.b16 %v190
  %v834 = vunpack.c.h.b16 %v190
  %v835 = vunpack.c.l.b16 %v191
  %v836 = vunpack.c.h.b16 %v191
  %v837 = vunpack.c.l.b16 %v192
  %v838 = vunpack.c.h.b16 %v192
  %v839 = vunpack.c.l.b16 %v193
  %v840 = vunpack.c.h.b16 %v193
  %v841 = vunpack.c.l.b16 %v194
  %v842 = vunpack.c.h.b16 %v194
  %v843 = vunpack.c.l.b16 %v195
  %v844 = vunpack.c.h.b16 %v195
  %v845 = vunpack.c.l.b16 %v196
  %v846 = vunpack.c.h.b16 %v196
  %v847 = vunpack.c.l.b16 %v197
  %v848 = vunpack.c.h.b16 %v197
  %v849 = vunpack.c.l.b16 %v198
  %v850 = vunpack.c.h.b16 %v198
  %v851 = vunpack.c.l.b16 %v199
  %v852 = vunpack.c.h.b16 %v199
  %v853 = vunpack.c.l.b16 %v200
  %v854 = vunpack.c.h.b16 %v200
  %v855 = vunpack.c.l.b16 %v201
  %v856 = vunpack.c.h.b16 %v201
  %v857 = vunpack.c.l.b16 %v202
  %v858 = vunpack.c.h.b16 %v202
  %v859 = vunpack.c.l.b16 %v203
  %v860 = vunpack.c.h.b16 %v203
  %v861 = vunpack.c.l.b16 %v204
  %v862 = vunpack.c.h.b16 %v204
  %v863 = vunpack.c.l.b16 %v205
  %v864 = vunpack.c.h.b16 %v205
  %v865 = vunpack.c.l.b16 %v206
  %v866 = vunpack.c.h.b16 %v206
  %v867 = vunpack.c.l.b16 %v207
  %v868 = vunpack.c.h.b16 %v207
  %v869 = vunpack.c.l.b16 %v208
  %v870 = vunpack.c.h.b16 %v208
  %v871 = vunpack.c.l.b16 %v209
  %v872 = vunpack.c.h.b16 %v209
  %v873 = vunpack.c.l.b16 %v210
  %v874 = vunpack.c.h.b16 %v210
  %v875 = vunpack.c.l.b16 %v211
  %v876 = vunpack.c.h.b16 %v211
  %v877 = vunpack.c.l.b16 %v212
  %v878 = vunpack.c.h.b16 %v212
  %v879 = vunpack.c.l.b16 %v213
  %v880 = vunpack.c.h.b16 %v213
  %v881 = vunpack.c.l.b16 %v214
  %v882 = vunpack.c.h.b16 %v214
  %v883 = vunpack.c.l.b16 %v215
  %v884 = vunpack.c.h.b16 %v215
  %v885 = vunpack.c.l.b16 %v216
  %v886 = vunpack.c.h.b16 %v216
  %v887 = vunpack.c.l.b16 %v217
  %v888 = vunpack.c.h.b16 %v217
  %v889 = vunpack.c.l.b16 %v218
  %v890 = vunpack.c.h.b16 %v218
  %v891 = vunpack.c.l.b16 %v219
  %v892 = vunpack.c.h.b16 %v219
  %v893 = vunpack.c.l.b16 %v220
  %v894 = vunpack.c.h.b16 %v220
  %v895 = vunpack.c.l.b16 %v221
  %v896 = vunpack.c.h.b16 %v221
  %v897 = vunpack.c.l.b16 %v222
  %v898 = vunpack.c.h.b16 %v222
  %v899 = vunpack.c.l.b16 %v223
  %v900 = vunpack.c.h.b16 %v223
  %v901 = vunpack.c.l.b16 %v224
  %v902 = vunpack.c.h.b16 %v224
  %v903 = vunpack.c.l.b16 %v225
  %v904 = vunpack.c.h.b16 %v225
  %v905 = vunpack.c.l.b16 %v226
  %v906 = vunpack.c.h.b16 %v226
  %v907 = vunpack.c.l.b16 %v227
  %v908 = vunpack.c.h.b16 %v227
  %v909 = vunpack.c.l.b16 %v228
  %v910 = vunpack.c.h.b16 %v228
  %v911 = vunpack.c.l.b16 %v229
  %v912 = vunpack.c.h.b16 %v229
  %v913 = vunpack.c.l.b16 %v230
  %v914 = vunpack.c.h.b16 %v230
  %v915 = vunpack.c.l.b16 %v231
  %v916 = vunpack.c.h.b16 %v231
  %v917 = vunpack.c.l.b16 %v232
  %v918 = vunpack.c.h.b16 %v232
  %v919 = vunpack.c.l.b16 %v233
  %v920 = vunpack.c.h.b16 %v233
  %v921 = vunpack.c.l.b16 %v234
  %v922 = vunpack.c.h.b16 %v234
  %v923 = vunpack.c.l.b16 %v235
  %v924 = vunpack.c.h.b16 %v235
  %v925 = vunpack.c.l.b16 %v236
  %v926 = vunpack.c.h.b16 %v236
  %v927 = vunpack.c.l.b16 %v237
  %v928 = vunpack.c.h.b16 %v237
  %v929 = vunpack.c.l.b16 %v238
  %v930 = vunpack.c.h.b16 %v238
  %v931 = vunpack.c.l.b16 %v239
  %v932 = vunpack.c.h.b16 %v239
  %v933 = vunpack.c.l.b16 %v240
  %v934 = vunpack.c.h.b16 %v240
  %v935 = vunpack.c.l.b16 %v241
  %v936 = vunpack.c.h.b16 %v241
  %v937 = vunpack.c.l.b16 %v242
  %v938 = vunpack.c.h.b16 %v242
  %v939 = vunpack.c.l.b16 %v243
  %v940 = vunpack.c.h.b16 %v243
  %v941 = vunpack.c.l.b16 %v244
  %v942 = vunpack.c.h.b16 %v244
  %v943 = vunpack.c.l.b16 %v245
  %v944 = vunpack.c.h.b16 %v245
  %v945 = vunpack.c.l.b16 %v246
  %v946 = vunpack.c.h.b16 %v246
  %v947 = vunpack.c.l.b16 %v247
  %v948 = vunpack.c.h.b16 %v247
  %v949 = vunpack.c.l.b16 %v248
  %v950 = vunpack.c.h.b16 %v248
  %v951 = vunpack.c.l.b16 %v249
  %v952 = vunpack.c.h.b16 %v249
  %v953 = vunpack.c.l.b16 %v250
  %v954 = vunpack.c.h.b16 %v250
  %v955 = vunpack.c.l.b16 %v251
  %v956 = vunpack.c.h.b16 %v251
  %v957 = vunpack.c.l.b16 %v252
  %v958 = vunpack.c.h.b16 %v252
  %v959 = vunpack.c.l.b16 %v253
  %v960 = vunpack.c.h.b16 %v253
  %v961 = vunpack.c.l.b16 %v254
  %v962 = vunpack.c.h.b16 %v254
  %v963 = vunpack.c.l.b16 %v255
  %v964 = vunpack.c.h.b16 %v255
  %v965 = vunpack.c.l.b16 %v256
  %v966 = vunpack.c.h.b16 %v256
  %v967 = vunpack.c.l.b16 %v257
  %v968 = vunpack.c.h.b16 %v257
  %v969 = vunpack.c.l.b16 %v258
  %v970 = vunpack.c.h.b16 %v258
  %v971 = vunpack.c.l.b16 %v259
  %v972 = vunpack.c.h.b16 %v259
  %v973 = vunpack.c.l.b16 %v260
  %v974 = vunpack.c.h.b16 %v260
  %v975 = vunpack.c.l.b16 %v261
  %v976 = vunpack.c.h.b16 %v261
  %v977 = vunpack.c.l.b16 %v262
  %v978 = vunpack.c.h.b16 %v262
  %v979 = vunpack.c.l.b16 %v263
  %v980 = vunpack.c.h.b16 %v263
  %v981 = vunpack.c.l.b16 %v264
  %v982 = vunpack.c.h.b16 %v264
  %v983 = vunpack.c.l.b16 %v265
  %v984 = vunpack.c.h.b16 %v265
  %v985 = vunpack.c.l.b16 %v266
  %v986 = vunpack.c.h.b16 %v266
  %v987 = vunpack.c.l.b16 %v267
  %v988 = vunpack.c.h.b16 %v267
  %v989 = vunpack.c.l.b16 %v268
  %v990 = vunpack.c.h.b16 %v268
  %v991 = vunpack.c.l.b16 %v269
  %v992 = vunpack.c.h.b16 %v269
  %v993 = vunpack.c.l.b16 %v270
  %v994 = vunpack.c.h.b16 %v270
  %v995 = vunpack.c.l.b16 %v271
  %v996 = vunpack.c.h.b16 %v271
  %v997 = vunpack.c.l.b16 %v272
  %v998 = vunpack.c.h.b16 %v272
  %v999 = vunpack.c.l.b16 %v273
  %v1000 = vunpack.c.h.b16 %v273
  %v1001 = vunpack.c.l.b16 %v274
  %v1002 = vunpack.c.h.b16 %v274
  %v1003 = vunpack.c.l.b16 %v275
  %v1004 = vunpack.c.h.b16 %v275
  %v1005 = vunpack.c.l.b16 %v276
  %v1006 = vunpack.c.h.b16 %v276
  %v1007 = vunpack.c.l.b16 %v277
  %v1008 = vunpack.c.h.b16 %v277
  %v1009 = vunpack.c.l.b16 %v278
  %v1010 = vunpack.c.h.b16 %v278
  %v1011 = vunpack.c.l.b16 %v279
  %v1012 = vunpack.c.h.b16 %v279
  %v1013 = vunpack.c.l.b16 %v280
  %v1014 = vunpack.c.h.b16 %v280
  %v1015 = vunpack.c.l.b16 %v281
  %v1016 = vunpack.c.h.b16 %v281
  %v1017 = vunpack.c.l.b16 %v282
  %v1018 = vunpack.c.h.b16 %v282
  %v1019 = vunpack.c.l.b16 %v283
  %v1020 = vunpack.c.h.b16 %v283
  %v1021 = vunpack.c.l.b16 %v284
  %v1022 = vunpack.c.h.b16 %v284
  %v1023 = vunpack.c.l.b16 %v285
  %v1024 = vunpack.c.h.b16 %v285
  %v1025 = vunpack.c.l.b16 %v286
  %v1026 = vunpack.c.h.b16 %v286
  %v1027 = vunpack.c.l.b16 %v287
  %v1028 = vunpack.c.h.b16 %v287
  %v1029 = vunpack.c.l.b16 %v288
  %v1030 = vunpack.c.h.b16 %v288
  %v1031 = vunpack.c.l.b16 %v289
  %v1032 = vunpack.c.h.b16 %v289
  %v1033 = vunpack.c.l.b16 %v290
  %v1034 = vunpack.c.h.b16 %v290
  %v1035 = vunpack.c.l.b16 %v291
  %v1036 = vunpack.c.h.b16 %v291
  %v1037 = vunpack.c.l.b16 %v292
  %v1038 = vunpack.c.h.b16 %v292
  %v1039 = vunpack.c.l.b16 %v293
  %v1040 = vunpack.c.h.b16 %v293
  %v1041 = vunpack.c.l.b16 %v294
  %v1042 = vunpack.c.h.b16 %v294
  %v1043 = vunpack.c.l.b16 %v295
  %v1044 = vunpack.c.h.b16 %v295
  %v1045 = vunpack.c.l.b16 %v296
  %v1046 = vunpack.c.h.b16 %v296
  %v1047 = vunpack.c.l.b16 %v297
  %v1048 = vunpack.c.h.b16 %v297
  %v1049 = vunpack.c.l.b16 %v298
  %v1050 = vunpack.c.h.b16 %v298
  %v1051 = vunpack.c.l.b16 %v299
  %v1052 = vunpack.c.h.b16 %v299
  %v1053 = vunpack.c.l.b16 %v300
  %v1054 = vunpack.c.h.b16 %v300
  %v1055 = vunpack.c.l.b16 %v301
  %v1056 = vunpack.c.h.b16 %v301
  %v1057 = vunpack.c.l.b16 %v302
  %v1058 = vunpack.c.h.b16 %v302
  %v1059 = vunpack.c.l.b16 %v303
  %v1060 = vunpack.c.h.b16 %v303
  %v1061 = vunpack.c.l.b16 %v304
  %v1062 = vunpack.c.h.b16 %v304
  %v1063 = vunpack.c.l.b16 %v305
  %v1064 = vunpack.c.h.b16 %v305
  %v1065 = vunpack.c.l.b16 %v306
  %v1066 = vunpack.c.h.b16 %v306
  %v1067 = vunpack.c.l.b16 %v307
  %v1068 = vunpack.c.h.b16 %v307
  %v1069 = vunpack.c.l.b16 %v308
  %v1070 = vunpack.c.h.b16 %v308
  %v1071 = vunpack.c.l.b16 %v309
  %v1072 = vunpack.c.h.b16 %v309
  %v1073 = vunpack.c.l.b16 %v310
  %v1074 = vunpack.c.h.b16 %v310
  %v1075 = vunpack.c.l.b16 %v311
  %v1076 = vunpack.c.h.b16 %v311
  %v1077 = vunpack.c.l.b16 %v312
  %v1078 = vunpack.c.h.b16 %v312
  %v1079 = vunpack.c.l.b16 %v313
  %v1080 = vunpack.c.h.b16 %v313
  %v1081 = vunpack.c.l.b16 %v314
  %v1082 = vunpack.c.h.b16 %v314
  %v1083 = vunpack.c.l.b16 %v315
  %v1084 = vunpack.c.h.b16 %v315
  %v1085 = vunpack.c.l.b16 %v316
  %v1086 = vunpack.c.h.b16 %v316
  %v1087 = vunpack.c.l.b16 %v317
  %v1088 = vunpack.c.h.b16 %v317
  %v1089 = vunpack.c.l.b16 %v318
  %v1090 = vunpack.c.h.b16 %v318
  %v1091 = vunpack.c.l.b16 %v319
  %v1092 = vunpack.c.h.b16 %v319
  %v1093 = vunpack.c.l.b16 %v320
  %v1094 = vunpack.c.h.b16 %v320
  %v1095 = vunpack.c.l.b16 %v321
  %v1096 = vunpack.c.h.b16 %v321
  %v1097 = vunpack.c.l.b16 %v322
  %v1098 = vunpack.c.h.b16 %v322
  %v1099 = vunpack.c.l.b16 %v323
  %v1100 = vunpack.c.h.b16 %v323
  %v1101 = vunpack.c.l.b16 %v324
  %v1102 = vunpack.c.h.b16 %v324
  %v1103 = vunpack.c.l.b16 %v325
  %v1104 = vunpack.c.h.b16 %v325
  %v1105 = vunpack.c.l.b16 %v326
  %v1106 = vunpack.c.h.b16 %v326
  %v1107 = vunpack.c.l.b16 %v327
  %v1108 = vunpack.c.h.b16 %v327
  %v1109 = vunpack.c.l.b16 %v328
  %v1110 = vunpack.c.h.b16 %v328
  %v1111 = vunpack.c.l.b16 %v329
  %v1112 = vunpack.c.h.b16 %v329
  %v1113 = vunpack.c.l.b16 %v330
  %v1114 = vunpack.c.h.b16 %v330
  %v1115 = vunpack.c.l.b16 %v331
  %v1116 = vunpack.c.h.b16 %v331
  %v1117 = vunpack.c.l.b16 %v332
  %v1118 = vunpack.c.h.b16 %v332
  %v1119 = vunpack.c.l.b16 %v333
  %v1120 = vunpack.c.h.b16 %v333
  %v1121 = vunpack.c.l.b16 %v334
  %v1122 = vunpack.c.h.b16 %v334
  %v1123 = vunpack.c.l.b16 %v335
  %v1124 = vunpack.c.h.b16 %v335
  %v1125 = vunpack.c.l.b16 %v336
  %v1126 = vunpack.c.h.b16 %v336
  %v1127 = vpack.c.b16 %v619, %v615
  %v1128 = vpack.c.b16 %v620, %v616
  %v1129 = vpack.c.b16 %v621, %v617
  %v1130 = vpack.c.b16 %v622, %v618
  %v1131 = vpack.c.b16 %v627, %v623
  %v1132 = vpack.c.b16 %v628, %v624
  %v1133 = vpack.c.b16 %v629, %v625
  %v1134 = vpack.c.b16 %v630, %v626
  %v1135 = vpack.c.b16 %v635, %v631
  %v1136 = vpack.c.b16 %v636, %v632
  %v1137 = vpack.c.b16 %v637, %v633
  %v1138 = vpack.c.b16 %v638, %v634
  %v1139 = vpack.c.b16 %v643, %v639
  %v1140 = vpack.c.b16 %v644, %v640
  %v1141 = vpack.c.b16 %v645, %v641
  %v1142 = vpack.c.b16 %v646, %v642
  %v1143 = vpack.c.b16 %v651, %v647
  %v1144 = vpack.c.b16 %v652, %v648
  %v1145 = vpack.c.b16 %v653, %v649
  %v1146 = vpack.c.b16 %v654, %v650
  %v1147 = vpack.c.b16 %v659, %v655
  %v1148 = vpack.c.b16 %v660, %v656
  %v1149 = vpack.c.b16 %v661, %v657
  %v1150 = vpack.c.b16 %v662, %v658
  %v1151 = vpack.c.b16 %v667, %v663
  %v1152 = vpack.c.b16 %v668, %v664
  %v1153 = vpack.c.b16 %v669, %v665
  %v1154 = vpack.c.b16 %v670, %v666
  %v1155 = vpack.c.b16 %v675, %v671
  %v1156 = vpack.c.b16 %v676, %v672
  %v1157 = vpack.c.b16 %v677, %v673
  %v1158 = vpack.c.b16 %v678, %v674
  %v1159 = vpack.c.b16 %v683, %v679
  %v1160 = vpack.c.b16 %v684, %v680
  %v1161 = vpack.c.b16 %v685, %v681
  %v1162 = vpack.c.b16 %v686, %v682
  %v1163 = vpack.c.b16 %v691, %v687
  %v1164 = vpack.c.b16 %v692, %v688
  %v1165 = vpack.c.b16 %v693, %v689
  %v1166 = vpack.c.b16 %v694, %v690
  %v1167 = vpack.c.b16 %v699, %v695
  %v1168 = vpack.c.b16 %v700, %v696
  %v1169 = vpack.c.b16 %v701, %v697
  %v1170 = vpack.c.b16 %v702, %v698
  %v1171 = vpack.c.b16 %v707, %v703
  %v1172 = vpack.c.b16 %v708, %v704
  %v1173 = vpack.c.b16 %v709, %v705
  %v1174 = vpack.c.b16 %v710, %v706
  %v1175 = vpack.c.b16 %v715, %v711
  %v1176 = vpack.c.b16 %v716, %v712
  %v1177 = vpack.c.b16 %v717, %v713
  %v1178 = vpack.c.b16 %v718, %v714
  %v1179 = vpack.c.b16 %v723, %v719
  %v1180 = vpack.c.b16 %v724, %v720
  %v1181 = vpack.c.b16 %v725, %v721
  %v1182 = vpack.c.b16 %v726, %v722
  %v1183 = vpack.c.b16 %v731, %v727
  %v1184 = vpack.c.b16 %v732, %v728
  %v1185 = vpack.c.b16 %v733, %v729
  %v1186 = vpack.c.b16 %v734, %v730
  %v1187 = vpack.c.b16 %v739, %v735
  %v1188 = vpack.c.b16 %v740, %v736
  %v1189 = vpack.c.b16 %v741, %v737
  %v1190 = vpack.c.b16 %v742, %v738
  %v1191 = vpack.c.b16 %v747, %v743
  %v1192 = vpack.c.b16 %v748, %v744
  %v1193 = vpack.c.b16 %v749, %v745
  %v1194 = vpack.c.b16 %v750, %v746
  %v1195 = vpack.c.b16 %v755, %v751
  %v1196 = vpack.c.b16 %v756, %v752
  %v1197 = vpack.c.b16 %v757, %v753
  %v1198 = vpack.c.b16 %v758, %v754
  %v1199 = vpack.c.b16 %v763, %v759
  %v1200 = vpack.c.b16 %v764, %v760
  %v1201 = vpack.c.b16 %v765, %v761
  %v1202 = vpack.c.b16 %v766, %v762
  %v1203 = vpack.c.b16 %v771, %v767
  %v1204 = vpack.c.b16 %v772, %v768
  %v1205 = vpack.c.b16 %v773, %v769
  %v1206 = vpack.c.b16 %v774, %v770
  %v1207 = vpack.c.b16 %v779, %v775
  %v1208 = vpack.c.b16 %v780, %v776
  %v1209 = vpack.c.b16 %v781, %v777
  %v1210 = vpack.c.b16 %v782, %v778
  %v1211 = vpack.c.b16 %v787, %v783
  %v1212 = vpack.c.b16 %v788, %v784
  %v1213 = vpack.c.b16 %v789, %v785
  %v1214 = vpack.c.b16 %v790, %v786
  %v1215 = vpack.c.b16 %v795, %v791
  %v1216 = vpack.c.b16 %v796, %v792
  %v1217 = vpack.c.b16 %v797, %v793
  %v1218 = vpack.c.b16 %v798, %v794
  %v1219 = vpack.c.b16 %v803, %v799
  %v1220 = vpack.c.b16 %v804, %v800
  %v1221 = vpack.c.b16 %v805, %v801
  %v1222 = vpack.c.b16 %v806, %v802
  %v1223 = vpack.c.b16 %v811, %v807
  %v1224 = vpack.c.b16 %v812, %v808
  %v1225 = vpack.c.b16 %v813, %v809
  %v1226 = vpack.c.b16 %v814, %v810
  %v1227 = vpack.c.b16 %v819, %v815
  %v1228 = vpack.c.b16 %v820, %v816
  %v1229 = vpack.c.b16 %v821, %v817
  %v1230 = vpack.c.b16 %v822, %v818
  %v1231 = vpack.c.b16 %v827, %v823
  %v1232 = vpack.c.b16 %v828, %v824
  %v1233 = vpack.c.b16 %v829, %v825
  %v1234 = vpack.c.b16 %v830, %v826
  %v1235 = vpack.c.b16 %v835, %v831
  %v1236 = vpack.c.b16 %v836, %v832
  %v1237 = vpack.c.b16 %v837, %v833
  %v1238 = vpack.c.b16 %v838, %v834
  %v1239 = vpack.c.b16 %v843, %v839
  %v1240 = vpack.c.b16 %v844, %v840
  %v1241 = vpack.c.b16 %v845, %v841
  %v1242 = vpack.c.b16 %v846, %v842
  %v1243 = vpack.c.b16 %v851, %v847
  %v1244 = vpack.c.b16 %v852, %v848
  %v1245 = vpack.c.b16 %v853, %v849
  %v1246 = vpack.c.b16 %v854, %v850
  %v1247 = vpack.c.b16 %v859, %v855
  %v1248 = vpack.c.b16 %v860, %v856
  %v1249 = vpack.c.b16 %v861, %v857
  %v1250 = vpack.c.b16 %v862, %v858
  %v1251 = vpack.c.b16 %v867, %v863
  %v1252 = vpack.c.b16 %v868, %v864
  %v1253 = vpack.c.b16 %v869, %v865
  %v1254 = vpack.c.b16 %v870, %v866
  %v1255 = vpack.c.b16 %v875, %v871
  %v1256 = vpack.c.b16 %v876, %v872
  %v1257 = vpack.c.b16 %v877, %v873
  %v1258 = vpack.c.b16 %v878, %v874
  %v1259 = vpack.c.b16 %v883, %v879
  %v1260 = vpack.c.b16 %v884, %v880
  %v1261 = vpack.c.b16 %v885, %v881
  %v1262 = vpack.c.b16 %v886, %v882
  %v1263 = vpack.c.b16 %v891, %v887
  %v1264 = vpack.c.b16 %v892, %v888
  %v1265 = vpack.c.b16 %v893, %v889
  %v1266 = vpack.c.b16 %v894, %v890
  %v1267 = vpack.c.b16 %v899, %v895
  %v1268 = vpack.c.b16 %v900, %v896
  %v1269 = vpack.c.b16 %v901, %v897
  %v1270 = vpack.c.b16 %v902, %v898
  %v1271 = vpack.c.b16 %v907, %v903
  %v1272 = vpack.c.b16 %v908, %v904
  %v1273 = vpack.c.b16 %v909, %v905
  %v1274 = vpack.c.b16 %v910, %v906
  %v1275 = vpack.c.b16 %v915, %v911
  %v1276 = vpack.c.b16 %v916, %v912
  %v1277 = vpack.c.b16 %v917, %v913
  %v1278 = vpack.c.b16 %v918, %v914
  %v1279 = vpack.c.b16 %v923, %v919
  %v1280 = vpack.c.b16 %v924, %v920
  %v1281 = vpack.c.b16 %v925, %v921
  %v1282 = vpack.c.b16 %v926, %v922
  %v1283 = vpack.c.b16 %v931, %v927
  %v1284 = vpack.c.b16 %v932, %v928
  %v1285 = vpack.c.b16 %v933, %v929
  %v1286 = vpack.c.b16 %v934, %v930
  %v1287 = vpack.c.b16 %v939, %v935
  %v1288 = vpack.c.b16 %v940, %v936
  %v1289 = vpack.c.b16 %v941, %v937
  %v1290 = vpack.c.b16 %v942, %v938
  %v1291 = vpack.c.b16 %v947, %v943
  %v1292 = vpack.c.b16 %v948, %v944
  %v1293 = vpack.c.b16 %v949, %v945
  %v1294 = vpack.c.b16 %v950, %v946
  %v1295 = vpack.c.b16 %v955, %v951
  %v1296 = vpack.c.b16 %v956, %v952
  %v1297 = vpack.c.b16 %v957, %v953
  %v1298 = vpack.c.b16 %v958, %v954
  %v1299 = vpack.c.b16 %v963, %v959
  %v1300 = vpack.c.b16 %v964, %v960
  %v1301 = vpack.c.b16 %v965, %v961
  %v1302 = vpack.c.b16 %v966, %v962
  %v1303 = vpack.c.b16 %v971, %v967
  %v1304 = vpack.c.b16 %v972, %v968
  %v1305 = vpack.c.b16 %v973, %v969
  %v1306 = vpack.c.b16 %v974, %v970
  %v1307 = vpack.c.b16 %v979, %v975
  %v1308 = vpack.c.b16 %v980, %v976
  %v1309 = vpack.c.b16 %v981, %v977
  %v1310 = vpack.c.b16 %v982, %v978
  %v1311 = vpack.c.b16 %v987, %v983
  %v1312 = vpack.c.b16 %v988, %v984
  %v1313 = vpack.c.b16 %v989, %v985
  %v1314 = vpack.c.b16 %v990, %v986
  %v1315 = vpack.c.b16 %v995, %v991
  %v1316 = vpack.c.b16 %v996, %v992
  %v1317 = vpack.c.b16 %v997, %v993
  %v1318 = vpack.c.b16 %v998, %v994
  %v1319 = vpack.c.b16 %v1003, %v999
  %v1320 = vpack.c.b16 %v1004, %v1000
  %v1321 = vpack.c.b16 %v1005, %v1001
  %v1322 = vpack.c.b16 %v1006, %v1002
  %v1323 = vpack.c.b16 %v1011, %v1007
  %v1324 = vpack.c.b16 %v1012, %v1008
  %v1325 = vpack.c.b16 %v1013, %v1009
  %v1326 = vpack.c.b16 %v1014, %v1010
  %v1327 = vpack.c.b16 %v1019, %v1015
  %v1328 = vpack.c.b16 %v1020, %v1016
  %v1329 = vpack.c.b16 %v1021, %v1017
  %v1330 = vpack.c.b16 %v1022, %v1018
  %v1331 = vpack.c.b16 %v1027, %v1023
  %v1332 = vpack.c.b16 %v1028, %v1024
  %v1333 = vpack.c.b16 %v1029, %v1025
  %v1334 = vpack.c.b16 %v1030, %v1026
  %v1335 = vpack.c.b16 %v1035, %v1031
  %v1336 = vpack.c.b16 %v1036, %v1032
  %v1337 = vpack.c.b16 %v1037, %v1033
  %v1338 = vpack.c.b16 %v1038, %v1034
  %v1339 = vpack.c.b16 %v1043, %v1039
  %v1340 = vpack.c.b16 %v1044, %v1040
  %v1341 = vpack.c.b16 %v1045, %v1041
  %v1342 = vpack.c.b16 %v1046, %v1042
  %v1343 = vpack.c.b16 %v1051, %v1047
  %v1344 = vpack.c.b16 %v1052, %v1048
  %v1345 = vpack.c.b16 %v1053, %v1049
  %v1346 = vpack.c.b16 %v1054, %v1050
  %v1347 = vpack.c.b16 %v1059, %v1055
  %v1348 = vpack.c.b16 %v1060, %v1056
  %v1349 = vpack.c.b16 %v1061, %v1057
  %v1350 = vpack.c.b16 %v1062, %v1058
  %v1351 = vpack.c.b16 %v1067, %v1063
  %v1352 = vpack.c.b16 %v1068, %v1064
  %v1353 = vpack.c.b16 %v1069, %v1065
  %v1354 = vpack.c.b16 %v1070, %v1066
  %v1355 = vpack.c.b16 %v1075, %v1071
  %v1356 = vpack.c.b16 %v1076, %v1072
  %v1357 = vpack.c.b16 %v1077, %v1073
  %v1358 = vpack.c.b16 %v1078, %v1074
  %v1359 = vpack.c.b16 %v1083, %v1079
  %v1360 = vpack.c.b16 %v1084, %v1080
  %v1361 = vpack.c.b16 %v1085, %v1081
  %v1362 = vpack.c.b16 %v1086, %v1082
  %v1363 = vpack.c.b16 %v1091, %v1087
  %v1364 = vpack.c.b16 %v1092, %v1088
  %v1365 = vpack.c.b16 %v1093, %v1089
  %v1366 = vpack.c.b16 %v1094, %v1090
  %v1367 = vpack.c.b16 %v1099, %v1095
  %v1368 = vpack.c.b16 %v1100, %v1096
  %v1369 = vpack.c.b16 %v1101, %v1097
  %v1370 = vpack.c.b16 %v1102, %v1098
  %v1371 = vpack.c.b16 %v1107, %v1103
  %v1372 = vpack.c.b16 %v1108, %v1104
  %v1373 = vpack.c.b16 %v1109, %v1105
  %v1374 = vpack.c.b16 %v1110, %v1106
  %v1375 = vpack.c.b16 %v1115, %v1111
  %v1376 = vpack.c.b16 %v1116, %v1112
  %v1377 = vpack.c.b16 %v1117, %v1113
  %v1378 = vpack.c.b16 %v1118, %v1114
  %v1379 = vpack.c.b16 %v1123, %v1119
  %v1380 = vpack.c.b16 %v1124, %v1120
  %v1381 = vpack.c.b16 %v1125, %v1121
  %v1382 = vpack.c.b16 %v1126, %v1122
  %1639 = vmatprep.subr.bf16.mxu0 %v1128
  %1640 = vmatpush1.bf16.msra.mxu0 %v1127
  %1641 = vmatprep.subr.bf16.mxu0 %v1132
  %1642 = vmatpush1.bf16.msra.mxu0 %v1131
  %1643 = vmatprep.subr.bf16.mxu0 %v1136
  %1644 = vmatpush1.bf16.msra.mxu0 %v1135
  %1645 = vmatprep.subr.bf16.mxu0 %v1140
  %1646 = vmatpush1.bf16.msra.mxu0 %v1139
  %1647 = vmatprep.subr.bf16.mxu0 %v1144
  %1648 = vmatpush1.bf16.msra.mxu0 %v1143
  %1649 = vmatprep.subr.bf16.mxu0 %v1148
  %1650 = vmatpush1.bf16.msra.mxu0 %v1147
  %1651 = vmatprep.subr.bf16.mxu0 %v1152
  %1652 = vmatpush1.bf16.msra.mxu0 %v1151
  %1653 = vmatprep.subr.bf16.mxu0 %v1156
  %1654 = vmatpush1.bf16.msra.mxu0 %v1155
  %1655 = vmatprep.subr.bf16.mxu0 %v1160
  %1656 = vmatpush1.bf16.msra.mxu0 %v1159
  %1657 = vmatprep.subr.bf16.mxu0 %v1164
  %1658 = vmatpush1.bf16.msra.mxu0 %v1163
  %1659 = vmatprep.subr.bf16.mxu0 %v1168
  %1660 = vmatpush1.bf16.msra.mxu0 %v1167
  %1661 = vmatprep.subr.bf16.mxu0 %v1172
  %1662 = vmatpush1.bf16.msra.mxu0 %v1171
  %1663 = vmatprep.subr.bf16.mxu0 %v1176
  %1664 = vmatpush1.bf16.msra.mxu0 %v1175
  %1665 = vmatprep.subr.bf16.mxu0 %v1180
  %1666 = vmatpush1.bf16.msra.mxu0 %v1179
  %1667 = vmatprep.subr.bf16.mxu0 %v1184
  %1668 = vmatpush1.bf16.msra.mxu0 %v1183
  %1669 = vmatprep.subr.bf16.mxu0 %v1188
  %1670 = vmatpush1.bf16.msra.mxu0 %v1187
  %1671 = vmatprep.mubr.bf16.mxu0 %v74
  %1672 = vmatmul.mubr.bf16.gmra.mrb[0].mxu0 %v73
  %v1673 = vpop.f32.mrb[0].mxu0
  %v1674 = vadd.f32 %v342, %v1673
  %v1675 = vpop.f32.mrb[0].mxu0
  %v1676 = vadd.f32 %v346, %v1675
  %v1677 = vpop.f32.mrb[0].mxu0
  %v1678 = vpop.f32.mrb[0].mxu0
  %1679 = vdwg.mxu0
  %1680 = vmatprep.subr.bf16.mxu0 %v1192
  %1681 = vmatpush1.bf16.msra.mxu0 %v1191
  %1682 = vmatprep.subr.bf16.mxu0 %v1196
  %1683 = vmatpush1.bf16.msra.mxu0 %v1195
  %1684 = vmatprep.subr.bf16.mxu0 %v1200
  %1685 = vmatpush1.bf16.msra.mxu0 %v1199
  %1686 = vmatprep.subr.bf16.mxu0 %v1204
  %1687 = vmatpush1.bf16.msra.mxu0 %v1203
  %1688 = vmatprep.subr.bf16.mxu0 %v1208
  %1689 = vmatpush1.bf16.msra.mxu0 %v1207
  %1690 = vmatprep.subr.bf16.mxu0 %v1212
  %1691 = vmatpush1.bf16.msra.mxu0 %v1211
  %1692 = vmatprep.subr.bf16.mxu0 %v1216
  %1693 = vmatpush1.bf16.msra.mxu0 %v1215
  %1694 = vmatprep.subr.bf16.mxu0 %v1220
  %1695 = vmatpush1.bf16.msra.mxu0 %v1219
  %1696 = vmatprep.subr.bf16.mxu0 %v1224
  %1697 = vmatpush1.bf16.msra.mxu0 %v1223
  %1698 = vmatprep.subr.bf16.mxu0 %v1228
  %1699 = vmatpush1.bf16.msra.mxu0 %v1227
  %1700 = vmatprep.subr.bf16.mxu0 %v1232
  %1701 = vmatpush1.bf16.msra.mxu0 %v1231
  %1702 = vmatprep.subr.bf16.mxu0 %v1236
  %1703 = vmatpush1.bf16.msra.mxu0 %v1235
  %1704 = vmatprep.subr.bf16.mxu0 %v1240
  %1705 = vmatpush1.bf16.msra.mxu0 %v1239
  %1706 = vmatprep.subr.bf16.mxu0 %v1244
  %1707 = vmatpush1.bf16.msra.mxu0 %v1243
  %1708 = vmatprep.subr.bf16.mxu0 %v1248
  %1709 = vmatpush1.bf16.msra.mxu0 %v1247
  %1710 = vmatprep.subr.bf16.mxu0 %v1252
  %1711 = vmatpush1.bf16.msra.mxu0 %v1251
  %1712 = vmatprep.mubr.bf16.mxu0 %v76
  %1713 = vmatmul.mubr.bf16.gmra.mrb[0].mxu0 %v75
  %v1714 = vpop.f32.mrb[0].mxu0
  %v1715 = vadd.f32 %v1674, %v1714
  %v1716 = vpop.f32.mrb[0].mxu0
  %v1717 = vadd.f32 %v1676, %v1716
  %v1718 = vpop.f32.mrb[0].mxu0
  %v1719 = vpop.f32.mrb[0].mxu0
  %1720 = vdwg.mxu0
  %1721 = vmatprep.subr.bf16.mxu0 %v1256
  %1722 = vmatpush1.bf16.msra.mxu0 %v1255
  %1723 = vmatprep.subr.bf16.mxu0 %v1260
  %1724 = vmatpush1.bf16.msra.mxu0 %v1259
  %1725 = vmatprep.subr.bf16.mxu0 %v1264
  %1726 = vmatpush1.bf16.msra.mxu0 %v1263
  %1727 = vmatprep.subr.bf16.mxu0 %v1268
  %1728 = vmatpush1.bf16.msra.mxu0 %v1267
  %1729 = vmatprep.subr.bf16.mxu0 %v1272
  %1730 = vmatpush1.bf16.msra.mxu0 %v1271
  %1731 = vmatprep.subr.bf16.mxu0 %v1276
  %1732 = vmatpush1.bf16.msra.mxu0 %v1275
  %1733 = vmatprep.subr.bf16.mxu0 %v1280
  %1734 = vmatpush1.bf16.msra.mxu0 %v1279
  %1735 = vmatprep.subr.bf16.mxu0 %v1284
  %1736 = vmatpush1.bf16.msra.mxu0 %v1283
  %1737 = vmatprep.subr.bf16.mxu0 %v1288
  %1738 = vmatpush1.bf16.msra.mxu0 %v1287
  %1739 = vmatprep.subr.bf16.mxu0 %v1292
  %1740 = vmatpush1.bf16.msra.mxu0 %v1291
  %1741 = vmatprep.subr.bf16.mxu0 %v1296
  %1742 = vmatpush1.bf16.msra.mxu0 %v1295
  %1743 = vmatprep.subr.bf16.mxu0 %v1300
  %1744 = vmatpush1.bf16.msra.mxu0 %v1299
  %1745 = vmatprep.subr.bf16.mxu0 %v1304
  %1746 = vmatpush1.bf16.msra.mxu0 %v1303
  %1747 = vmatprep.subr.bf16.mxu0 %v1308
  %1748 = vmatpush1.bf16.msra.mxu0 %v1307
  %1749 = vmatprep.subr.bf16.mxu0 %v1312
  %1750 = vmatpush1.bf16.msra.mxu0 %v1311
  %1751 = vmatprep.subr.bf16.mxu0 %v1316
  %1752 = vmatpush1.bf16.msra.mxu0 %v1315
  %1753 = vmatprep.mubr.bf16.mxu0 %v78
  %1754 = vmatmul.mubr.bf16.gmra.mrb[0].mxu0 %v77
  %v1755 = vpop.f32.mrb[0].mxu0
  %v1756 = vadd.f32 %v1715, %v1755
  %v1757 = vpop.f32.mrb[0].mxu0
  %v1758 = vadd.f32 %v1717, %v1757
  %v1759 = vpop.f32.mrb[0].mxu0
  %v1760 = vpop.f32.mrb[0].mxu0
  %1761 = vdwg.mxu0
  %1762 = vmatprep.subr.bf16.mxu0 %v1320
  %1763 = vmatpush1.bf16.msra.mxu0 %v1319
  %1764 = vmatprep.subr.bf16.mxu0 %v1324
  %1765 = vmatpush1.bf16.msra.mxu0 %v1323
  %1766 = vmatprep.subr.bf16.mxu0 %v1328
  %1767 = vmatpush1.bf16.msra.mxu0 %v1327
  %1768 = vmatprep.subr.bf16.mxu0 %v1332
  %1769 = vmatpush1.bf16.msra.mxu0 %v1331
  %1770 = vmatprep.subr.bf16.mxu0 %v1336
  %1771 = vmatpush1.bf16.msra.mxu0 %v1335
  %1772 = vmatprep.subr.bf16.mxu0 %v1340
  %1773 = vmatpush1.bf16.msra.mxu0 %v1339
  %1774 = vmatprep.subr.bf16.mxu0 %v1344
  %1775 = vmatpush1.bf16.msra.mxu0 %v1343
  %1776 = vmatprep.subr.bf16.mxu0 %v1348
  %1777 = vmatpush1.bf16.msra.mxu0 %v1347
  %1778 = vmatprep.subr.bf16.mxu0 %v1352
  %1779 = vmatpush1.bf16.msra.mxu0 %v1351
  %1780 = vmatprep.subr.bf16.mxu0 %v1356
  %1781 = vmatpush1.bf16.msra.mxu0 %v1355
  %1782 = vmatprep.subr.bf16.mxu0 %v1360
  %1783 = vmatpush1.bf16.msra.mxu0 %v1359
  %1784 = vmatprep.subr.bf16.mxu0 %v1364
  %1785 = vmatpush1.bf16.msra.mxu0 %v1363
  %1786 = vmatprep.subr.bf16.mxu0 %v1368
  %1787 = vmatpush1.bf16.msra.mxu0 %v1367
  %1788 = vmatprep.subr.bf16.mxu0 %v1372
  %1789 = vmatpush1.bf16.msra.mxu0 %v1371
  %1790 = vmatprep.subr.bf16.mxu0 %v1376
  %1791 = vmatpush1.bf16.msra.mxu0 %v1375
  %1792 = vmatprep.subr.bf16.mxu0 %v1380
  %1793 = vmatpush1.bf16.msra.mxu0 %v1379
  %1794 = vmatprep.mubr.bf16.mxu0 %v80
  %1795 = vmatmul.mubr.bf16.gmra.mrb[0].mxu0 %v79
  %v1796 = vpop.f32.mrb[0].mxu0
  %v1797 = vadd.f32 %v1756, %v1796
  %v1798 = vpop.f32.mrb[0].mxu0
  %v1799 = vadd.f32 %v1758, %v1798
  %v1800 = vpop.f32.mrb[0].mxu0
  %v1801 = vpop.f32.mrb[0].mxu0
  %1802 = vdwg.mxu0
  %1803 = vmatprep.subr.bf16.mxu0 %v1130
  %1804 = vmatpush1.bf16.msra.mxu0 %v1129
  %1805 = vmatprep.subr.bf16.mxu0 %v1134
  %1806 = vmatpush1.bf16.msra.mxu0 %v1133
  %1807 = vmatprep.subr.bf16.mxu0 %v1138
  %1808 = vmatpush1.bf16.msra.mxu0 %v1137
  %1809 = vmatprep.subr.bf16.mxu0 %v1142
  %1810 = vmatpush1.bf16.msra.mxu0 %v1141
  %1811 = vmatprep.subr.bf16.mxu0 %v1146
  %1812 = vmatpush1.bf16.msra.mxu0 %v1145
  %1813 = vmatprep.subr.bf16.mxu0 %v1150
  %1814 = vmatpush1.bf16.msra.mxu0 %v1149
  %1815 = vmatprep.subr.bf16.mxu0 %v1154
  %1816 = vmatpush1.bf16.msra.mxu0 %v1153
  %1817 = vmatprep.subr.bf16.mxu0 %v1158
  %1818 = vmatpush1.bf16.msra.mxu0 %v1157
  %1819 = vmatprep.subr.bf16.mxu0 %v1162
  %1820 = vmatpush1.bf16.msra.mxu0 %v1161
  %1821 = vmatprep.subr.bf16.mxu0 %v1166
  %1822 = vmatpush1.bf16.msra.mxu0 %v1165
  %1823 = vmatprep.subr.bf16.mxu0 %v1170
  %1824 = vmatpush1.bf16.msra.mxu0 %v1169
  %1825 = vmatprep.subr.bf16.mxu0 %v1174
  %1826 = vmatpush1.bf16.msra.mxu0 %v1173
  %1827 = vmatprep.subr.bf16.mxu0 %v1178
  %1828 = vmatpush1.bf16.msra.mxu0 %v1177
  %1829 = vmatprep.subr.bf16.mxu0 %v1182
  %1830 = vmatpush1.bf16.msra.mxu0 %v1181
  %1831 = vmatprep.subr.bf16.mxu0 %v1186
  %1832 = vmatpush1.bf16.msra.mxu0 %v1185
  %1833 = vmatprep.subr.bf16.mxu0 %v1190
  %1834 = vmatpush1.bf16.msra.mxu0 %v1189
  %1835 = vmatprep.mubr.bf16.mxu0 %v74
  %1836 = vmatmul.mubr.bf16.gmra.mrb[0].mxu0 %v73
  %v1837 = vpop.f32.mrb[0].mxu0
  %v1838 = vadd.f32 %v350, %v1837
  %v1839 = vpop.f32.mrb[0].mxu0
  %v1840 = vadd.f32 %v354, %v1839
  %v1841 = vpop.f32.mrb[0].mxu0
  %v1842 = vpop.f32.mrb[0].mxu0
  %1843 = vdwg.mxu0
  %1844 = vmatprep.subr.bf16.mxu0 %v1194
  %1845 = vmatpush1.bf16.msra.mxu0 %v1193
  %1846 = vmatprep.subr.bf16.mxu0 %v1198
  %1847 = vmatpush1.bf16.msra.mxu0 %v1197
  %1848 = vmatprep.subr.bf16.mxu0 %v1202
  %1849 = vmatpush1.bf16.msra.mxu0 %v1201
  %1850 = vmatprep.subr.bf16.mxu0 %v1206
  %1851 = vmatpush1.bf16.msra.mxu0 %v1205
  %1852 = vmatprep.subr.bf16.mxu0 %v1210
  %1853 = vmatpush1.bf16.msra.mxu0 %v1209
  %1854 = vmatprep.subr.bf16.mxu0 %v1214
  %1855 = vmatpush1.bf16.msra.mxu0 %v1213
  %1856 = vmatprep.subr.bf16.mxu0 %v1218
  %1857 = vmatpush1.bf16.msra.mxu0 %v1217
  %1858 = vmatprep.subr.bf16.mxu0 %v1222
  %1859 = vmatpush1.bf16.msra.mxu0 %v1221
  %1860 = vmatprep.subr.bf16.mxu0 %v1226
  %1861 = vmatpush1.bf16.msra.mxu0 %v1225
  %1862 = vmatprep.subr.bf16.mxu0 %v1230
  %1863 = vmatpush1.bf16.msra.mxu0 %v1229
  %1864 = vmatprep.subr.bf16.mxu0 %v1234
  %1865 = vmatpush1.bf16.msra.mxu0 %v1233
  %1866 = vmatprep.subr.bf16.mxu0 %v1238
  %1867 = vmatpush1.bf16.msra.mxu0 %v1237
  %1868 = vmatprep.subr.bf16.mxu0 %v1242
  %1869 = vmatpush1.bf16.msra.mxu0 %v1241
  %1870 = vmatprep.subr.bf16.mxu0 %v1246
  %1871 = vmatpush1.bf16.msra.mxu0 %v1245
  %1872 = vmatprep.subr.bf16.mxu0 %v1250
  %1873 = vmatpush1.bf16.msra.mxu0 %v1249
  %1874 = vmatprep.subr.bf16.mxu0 %v1254
  %1875 = vmatpush1.bf16.msra.mxu0 %v1253
  %1876 = vmatprep.mubr.bf16.mxu0 %v76
  %1877 = vmatmul.mubr.bf16.gmra.mrb[0].mxu0 %v75
  %v1878 = vpop.f32.mrb[0].mxu0
  %v1879 = vadd.f32 %v1838, %v1878
  %v1880 = vpop.f32.mrb[0].mxu0
  %v1881 = vadd.f32 %v1840, %v1880
  %v1882 = vpop.f32.mrb[0].mxu0
  %v1883 = vpop.f32.mrb[0].mxu0
  %1884 = vdwg.mxu0
  %1885 = vmatprep.subr.bf16.mxu0 %v1258
  %1886 = vmatpush1.bf16.msra.mxu0 %v1257
  %1887 = vmatprep.subr.bf16.mxu0 %v1262
  %1888 = vmatpush1.bf16.msra.mxu0 %v1261
  %1889 = vmatprep.subr.bf16.mxu0 %v1266
  %1890 = vmatpush1.bf16.msra.mxu0 %v1265
  %1891 = vmatprep.subr.bf16.mxu0 %v1270
  %1892 = vmatpush1.bf16.msra.mxu0 %v1269
  %1893 = vmatprep.subr.bf16.mxu0 %v1274
  %1894 = vmatpush1.bf16.msra.mxu0 %v1273
  %1895 = vmatprep.subr.bf16.mxu0 %v1278
  %1896 = vmatpush1.bf16.msra.mxu0 %v1277
  %1897 = vmatprep.subr.bf16.mxu0 %v1282
  %1898 = vmatpush1.bf16.msra.mxu0 %v1281
  %1899 = vmatprep.subr.bf16.mxu0 %v1286
  %1900 = vmatpush1.bf16.msra.mxu0 %v1285
  %1901 = vmatprep.subr.bf16.mxu0 %v1290
  %1902 = vmatpush1.bf16.msra.mxu0 %v1289
  %1903 = vmatprep.subr.bf16.mxu0 %v1294
  %1904 = vmatpush1.bf16.msra.mxu0 %v1293
  %1905 = vmatprep.subr.bf16.mxu0 %v1298
  %1906 = vmatpush1.bf16.msra.mxu0 %v1297
  %1907 = vmatprep.subr.bf16.mxu0 %v1302
  %1908 = vmatpush1.bf16.msra.mxu0 %v1301
  %1909 = vmatprep.subr.bf16.mxu0 %v1306
  %1910 = vmatpush1.bf16.msra.mxu0 %v1305
  %1911 = vmatprep.subr.bf16.mxu0 %v1310
  %1912 = vmatpush1.bf16.msra.mxu0 %v1309
  %1913 = vmatprep.subr.bf16.mxu0 %v1314
  %1914 = vmatpush1.bf16.msra.mxu0 %v1313
  %1915 = vmatprep.subr.bf16.mxu0 %v1318
  %1916 = vmatpush1.bf16.msra.mxu0 %v1317
  %1917 = vmatprep.mubr.bf16.mxu0 %v78
  %1918 = vmatmul.mubr.bf16.gmra.mrb[0].mxu0 %v77
  %v1919 = vpop.f32.mrb[0].mxu0
  %v1920 = vadd.f32 %v1879, %v1919
  %v1921 = vpop.f32.mrb[0].mxu0
  %v1922 = vadd.f32 %v1881, %v1921
  %v1923 = vpop.f32.mrb[0].mxu0
  %v1924 = vpop.f32.mrb[0].mxu0
  %1925 = vdwg.mxu0
  %1926 = vmatprep.subr.bf16.mxu0 %v1322
  %1927 = vmatpush1.bf16.msra.mxu0 %v1321
  %1928 = vmatprep.subr.bf16.mxu0 %v1326
  %1929 = vmatpush1.bf16.msra.mxu0 %v1325
  %1930 = vmatprep.subr.bf16.mxu0 %v1330
  %1931 = vmatpush1.bf16.msra.mxu0 %v1329
  %1932 = vmatprep.subr.bf16.mxu0 %v1334
  %1933 = vmatpush1.bf16.msra.mxu0 %v1333
  %1934 = vmatprep.subr.bf16.mxu0 %v1338
  %1935 = vmatpush1.bf16.msra.mxu0 %v1337
  %1936 = vmatprep.subr.bf16.mxu0 %v1342
  %1937 = vmatpush1.bf16.msra.mxu0 %v1341
  %1938 = vmatprep.subr.bf16.mxu0 %v1346
  %1939 = vmatpush1.bf16.msra.mxu0 %v1345
  %1940 = vmatprep.subr.bf16.mxu0 %v1350
  %1941 = vmatpush1.bf16.msra.mxu0 %v1349
  %1942 = vmatprep.subr.bf16.mxu0 %v1354
  %1943 = vmatpush1.bf16.msra.mxu0 %v1353
  %1944 = vmatprep.subr.bf16.mxu0 %v1358
  %1945 = vmatpush1.bf16.msra.mxu0 %v1357
  %1946 = vmatprep.subr.bf16.mxu0 %v1362
  %1947 = vmatpush1.bf16.msra.mxu0 %v1361
  %1948 = vmatprep.subr.bf16.mxu0 %v1366
  %1949 = vmatpush1.bf16.msra.mxu0 %v1365
  %1950 = vmatprep.subr.bf16.mxu0 %v1370
  %1951 = vmatpush1.bf16.msra.mxu0 %v1369
  %1952 = vmatprep.subr.bf16.mxu0 %v1374
  %1953 = vmatpush1.bf16.msra.mxu0 %v1373
  %1954 = vmatprep.subr.bf16.mxu0 %v1378
  %1955 = vmatpush1.bf16.msra.mxu0 %v1377
  %1956 = vmatprep.subr.bf16.mxu0 %v1382
  %1957 = vmatpush1.bf16.msra.mxu0 %v1381
  %1958 = vmatprep.mubr.bf16.mxu0 %v80
  %1959 = vmatmul.mubr.bf16.gmra.mrb[0].mxu0 %v79
  %v1960 = vpop.f32.mrb[0].mxu0
  %v1961 = vadd.f32 %v1920, %v1960
  %v1962 = vpop.f32.mrb[0].mxu0
  %v1963 = vadd.f32 %v1922, %v1962
  %v1964 = vpop.f32.mrb[0].mxu0
  %v1965 = vpop.f32.mrb[0].mxu0
  %1966 = vdwg.mxu0
  %v1967 = vmax.f32 %v1797, 0.0
  %v1968 = vmax.f32 %v1799, 0.0
  %v1969 = vmax.f32 %v1961, 0.0
  %v1970 = vmax.f32 %v1963, 0.0
  %v1971 = vpack.c.bf16 %v1967, %v1967
  %v1972 = vpack.c.bf16 %v1968, %v1968
  %v1973 = vpack.c.bf16 %v1969, %v1969
  %v1974 = vpack.c.bf16 %v1970, %v1970
  %v1975 = vld [vmem:[%s3] sm:$0xff]
  %v1976 = vld [vmem:[%s3 + $0x8] sm:$0xff]
  %v1977 = vld [vmem:[%s3 + $0x10] sm:$0xff]
  %v1978 = vld [vmem:[%s3 + $0x18] sm:$0xff]
  %v1979 = vld [vmem:[%s3 + $0x20] sm:$0xff]
  %v1980 = vld [vmem:[%s3 + $0x28] sm:$0xff]
  %v1981 = vld [vmem:[%s3 + $0x30] sm:$0xff]
  %v1982 = vld [vmem:[%s3 + $0x38] sm:$0xff]
  %v1983 = vld [vmem:[%s3 + $0x40] sm:$0xff]
  %v1984 = vld [vmem:[%s3 + $0x48] sm:$0xff]
  %v1985 = vld [vmem:[%s3 + $0x50] sm:$0xff]
  %v1986 = vld [vmem:[%s3 + $0x58] sm:$0xff]
  %v1987 = vld [vmem:[%s3 + $0x60] sm:$0xff]
  %v1988 = vld [vmem:[%s3 + $0x68] sm:$0xff]
  %v1989 = vld [vmem:[%s3 + $0x70] sm:$0xff]
  %v1990 = vld [vmem:[%s3 + $0x78] sm:$0xff]
  %v1991 = vld [vmem:[%s3 + $0x80] sm:$0xff]
  %v1992 = vld [vmem:[%s3 + $0x88] sm:$0xff]
  %v1993 = vld [vmem:[%s3 + $0x90] sm:$0xff]
  %v1994 = vld [vmem:[%s3 + $0x98] sm:$0xff]
  %v1995 = vld [vmem:[%s3 + $0xa0] sm:$0xff]
  %v1996 = vld [vmem:[%s3 + $0xa8] sm:$0xff]
  %v1997 = vld [vmem:[%s3 + $0xb0] sm:$0xff]
  %v1998 = vld [vmem:[%s3 + $0xb8] sm:$0xff]
  %v1999 = vld [vmem:[%s3 + $0xc0] sm:$0xff]
  %v2000 = vld [vmem:[%s3 + $0xc8] sm:$0xff]
  %v2001 = vld [vmem:[%s3 + $0xd0] sm:$0xff]
  %v2002 = vld [vmem:[%s3 + $0xd8] sm:$0xff]
  %v2003 = vld [vmem:[%s3 + $0xe0] sm:$0xff]
  %v2004 = vld [vmem:[%s3 + $0xe8] sm:$0xff]
  %v2005 = vld [vmem:[%s3 + $0xf0] sm:$0xff]
  %v2006 = vld [vmem:[%s3 + $0xf8] sm:$0xff]
  %v2007 = vld [vmem:[%s3 + $0x100] sm:$0xff]
  %v2008 = vld [vmem:[%s3 + $0x108] sm:$0xff]
  %v2009 = vld [vmem:[%s3 + $0x110] sm:$0xff]
  %v2010 = vld [vmem:[%s3 + $0x118] sm:$0xff]
  %v2011 = vld [vmem:[%s3 + $0x120] sm:$0xff]
  %v2012 = vld [vmem:[%s3 + $0x128] sm:$0xff]
  %v2013 = vld [vmem:[%s3 + $0x130] sm:$0xff]
  %v2014 = vld [vmem:[%s3 + $0x138] sm:$0xff]
  %v2015 = vld [vmem:[%s3 + $0x140] sm:$0xff]
  %v2016 = vld [vmem:[%s3 + $0x148] sm:$0xff]
  %v2017 = vld [vmem:[%s3 + $0x150] sm:$0xff]
  %v2018 = vld [vmem:[%s3 + $0x158] sm:$0xff]
  %v2019 = vld [vmem:[%s3 + $0x160] sm:$0xff]
  %v2020 = vld [vmem:[%s3 + $0x168] sm:$0xff]
  %v2021 = vld [vmem:[%s3 + $0x170] sm:$0xff]
  %v2022 = vld [vmem:[%s3 + $0x178] sm:$0xff]
  %v2023 = vld [vmem:[%s3 + $0x180] sm:$0xff]
  %v2024 = vld [vmem:[%s3 + $0x188] sm:$0xff]
  %v2025 = vld [vmem:[%s3 + $0x190] sm:$0xff]
  %v2026 = vld [vmem:[%s3 + $0x198] sm:$0xff]
  %v2027 = vld [vmem:[%s3 + $0x1a0] sm:$0xff]
  %v2028 = vld [vmem:[%s3 + $0x1a8] sm:$0xff]
  %v2029 = vld [vmem:[%s3 + $0x1b0] sm:$0xff]
  %v2030 = vld [vmem:[%s3 + $0x1b8] sm:$0xff]
  %v2031 = vld [vmem:[%s3 + $0x1c0] sm:$0xff]
  %v2032 = vld [vmem:[%s3 + $0x1c8] sm:$0xff]
  %v2033 = vld [vmem:[%s3 + $0x1d0] sm:$0xff]
  %v2034 = vld [vmem:[%s3 + $0x1d8] sm:$0xff]
  %v2035 = vld [vmem:[%s3 + $0x1e0] sm:$0xff]
  %v2036 = vld [vmem:[%s3 + $0x1e8] sm:$0xff]
  %v2037 = vld [vmem:[%s3 + $0x1f0] sm:$0xff]
  %v2038 = vld [vmem:[%s3 + $0x1f8] sm:$0xff]
  %v2039 = vld [vmem:[%s4] sm:$0x3]
  %v2041 = vlaneseq
  %v2042 = vshrl.u32 %v2041, 7
  %v2043 = vsub.s32 0, %v2042
  %v2044 = vrot.slane %v2039, %v2043
  %v2045 = vlaneseq
  %v2046 = vshrl.u32 %v2045, 7
  %v2047 = vsub.s32 1, %v2046
  %v2048 = vrot.slane %v2039, %v2047
  %v2115 = vunpack.c.l.b16 %v1975
  %v2116 = vunpack.c.h.b16 %v1975
  %v2117 = vunpack.c.l.b16 %v1976
  %v2118 = vunpack.c.h.b16 %v1976
  %v2119 = vunpack.c.l.b16 %v1977
  %v2120 = vunpack.c.h.b16 %v1977
  %v2121 = vunpack.c.l.b16 %v1978
  %v2122 = vunpack.c.h.b16 %v1978
  %v2123 = vunpack.c.l.b16 %v1979
  %v2124 = vunpack.c.h.b16 %v1979
  %v2125 = vunpack.c.l.b16 %v1980
  %v2126 = vunpack.c.h.b16 %v1980
  %v2127 = vunpack.c.l.b16 %v1981
  %v2128 = vunpack.c.h.b16 %v1981
  %v2129 = vunpack.c.l.b16 %v1982
  %v2130 = vunpack.c.h.b16 %v1982
  %v2131 = vunpack.c.l.b16 %v1983
  %v2132 = vunpack.c.h.b16 %v1983
  %v2133 = vunpack.c.l.b16 %v1984
  %v2134 = vunpack.c.h.b16 %v1984
  %v2135 = vunpack.c.l.b16 %v1985
  %v2136 = vunpack.c.h.b16 %v1985
  %v2137 = vunpack.c.l.b16 %v1986
  %v2138 = vunpack.c.h.b16 %v1986
  %v2139 = vunpack.c.l.b16 %v1987
  %v2140 = vunpack.c.h.b16 %v1987
  %v2141 = vunpack.c.l.b16 %v1988
  %v2142 = vunpack.c.h.b16 %v1988
  %v2143 = vunpack.c.l.b16 %v1989
  %v2144 = vunpack.c.h.b16 %v1989
  %v2145 = vunpack.c.l.b16 %v1990
  %v2146 = vunpack.c.h.b16 %v1990
  %v2147 = vunpack.c.l.b16 %v1991
  %v2148 = vunpack.c.h.b16 %v1991
  %v2149 = vunpack.c.l.b16 %v1992
  %v2150 = vunpack.c.h.b16 %v1992
  %v2151 = vunpack.c.l.b16 %v1993
  %v2152 = vunpack.c.h.b16 %v1993
  %v2153 = vunpack.c.l.b16 %v1994
  %v2154 = vunpack.c.h.b16 %v1994
  %v2155 = vunpack.c.l.b16 %v1995
  %v2156 = vunpack.c.h.b16 %v1995
  %v2157 = vunpack.c.l.b16 %v1996
  %v2158 = vunpack.c.h.b16 %v1996
  %v2159 = vunpack.c.l.b16 %v1997
  %v2160 = vunpack.c.h.b16 %v1997
  %v2161 = vunpack.c.l.b16 %v1998
  %v2162 = vunpack.c.h.b16 %v1998
  %v2163 = vunpack.c.l.b16 %v1999
  %v2164 = vunpack.c.h.b16 %v1999
  %v2165 = vunpack.c.l.b16 %v2000
  %v2166 = vunpack.c.h.b16 %v2000
  %v2167 = vunpack.c.l.b16 %v2001
  %v2168 = vunpack.c.h.b16 %v2001
  %v2169 = vunpack.c.l.b16 %v2002
  %v2170 = vunpack.c.h.b16 %v2002
  %v2171 = vunpack.c.l.b16 %v2003
  %v2172 = vunpack.c.h.b16 %v2003
  %v2173 = vunpack.c.l.b16 %v2004
  %v2174 = vunpack.c.h.b16 %v2004
  %v2175 = vunpack.c.l.b16 %v2005
  %v2176 = vunpack.c.h.b16 %v2005
  %v2177 = vunpack.c.l.b16 %v2006
  %v2178 = vunpack.c.h.b16 %v2006
  %v2179 = vunpack.c.l.b16 %v2007
  %v2180 = vunpack.c.h.b16 %v2007
  %v2181 = vunpack.c.l.b16 %v2008
  %v2182 = vunpack.c.h.b16 %v2008
  %v2183 = vunpack.c.l.b16 %v2009
  %v2184 = vunpack.c.h.b16 %v2009
  %v2185 = vunpack.c.l.b16 %v2010
  %v2186 = vunpack.c.h.b16 %v2010
  %v2187 = vunpack.c.l.b16 %v2011
  %v2188 = vunpack.c.h.b16 %v2011
  %v2189 = vunpack.c.l.b16 %v2012
  %v2190 = vunpack.c.h.b16 %v2012
  %v2191 = vunpack.c.l.b16 %v2013
  %v2192 = vunpack.c.h.b16 %v2013
  %v2193 = vunpack.c.l.b16 %v2014
  %v2194 = vunpack.c.h.b16 %v2014
  %v2195 = vunpack.c.l.b16 %v2015
  %v2196 = vunpack.c.h.b16 %v2015
  %v2197 = vunpack.c.l.b16 %v2016
  %v2198 = vunpack.c.h.b16 %v2016
  %v2199 = vunpack.c.l.b16 %v2017
  %v2200 = vunpack.c.h.b16 %v2017
  %v2201 = vunpack.c.l.b16 %v2018
  %v2202 = vunpack.c.h.b16 %v2018
  %v2203 = vunpack.c.l.b16 %v2019
  %v2204 = vunpack.c.h.b16 %v2019
  %v2205 = vunpack.c.l.b16 %v2020
  %v2206 = vunpack.c.h.b16 %v2020
  %v2207 = vunpack.c.l.b16 %v2021
  %v2208 = vunpack.c.h.b16 %v2021
  %v2209 = vunpack.c.l.b16 %v2022
  %v2210 = vunpack.c.h.b16 %v2022
  %v2211 = vunpack.c.l.b16 %v2023
  %v2212 = vunpack.c.h.b16 %v2023
  %v2213 = vunpack.c.l.b16 %v2024
  %v2214 = vunpack.c.h.b16 %v2024
  %v2215 = vunpack.c.l.b16 %v2025
  %v2216 = vunpack.c.h.b16 %v2025
  %v2217 = vunpack.c.l.b16 %v2026
  %v2218 = vunpack.c.h.b16 %v2026
  %v2219 = vunpack.c.l.b16 %v2027
  %v2220 = vunpack.c.h.b16 %v2027
  %v2221 = vunpack.c.l.b16 %v2028
  %v2222 = vunpack.c.h.b16 %v2028
  %v2223 = vunpack.c.l.b16 %v2029
  %v2224 = vunpack.c.h.b16 %v2029
  %v2225 = vunpack.c.l.b16 %v2030
  %v2226 = vunpack.c.h.b16 %v2030
  %v2227 = vunpack.c.l.b16 %v2031
  %v2228 = vunpack.c.h.b16 %v2031
  %v2229 = vunpack.c.l.b16 %v2032
  %v2230 = vunpack.c.h.b16 %v2032
  %v2231 = vunpack.c.l.b16 %v2033
  %v2232 = vunpack.c.h.b16 %v2033
  %v2233 = vunpack.c.l.b16 %v2034
  %v2234 = vunpack.c.h.b16 %v2034
  %v2235 = vunpack.c.l.b16 %v2035
  %v2236 = vunpack.c.h.b16 %v2035
  %v2237 = vunpack.c.l.b16 %v2036
  %v2238 = vunpack.c.h.b16 %v2036
  %v2239 = vunpack.c.l.b16 %v2037
  %v2240 = vunpack.c.h.b16 %v2037
  %v2241 = vunpack.c.l.b16 %v2038
  %v2242 = vunpack.c.h.b16 %v2038
  %v2243 = vpack.c.b16 %v2117, %v2115
  %v2244 = vpack.c.b16 %v2118, %v2116
  %v2245 = vpack.c.b16 %v2121, %v2119
  %v2246 = vpack.c.b16 %v2122, %v2120
  %v2247 = vpack.c.b16 %v2125, %v2123
  %v2248 = vpack.c.b16 %v2126, %v2124
  %v2249 = vpack.c.b16 %v2129, %v2127
  %v2250 = vpack.c.b16 %v2130, %v2128
  %v2251 = vpack.c.b16 %v2133, %v2131
  %v2252 = vpack.c.b16 %v2134, %v2132
  %v2253 = vpack.c.b16 %v2137, %v2135
  %v2254 = vpack.c.b16 %v2138, %v2136
  %v2255 = vpack.c.b16 %v2141, %v2139
  %v2256 = vpack.c.b16 %v2142, %v2140
  %v2257 = vpack.c.b16 %v2145, %v2143
  %v2258 = vpack.c.b16 %v2146, %v2144
  %v2259 = vpack.c.b16 %v2149, %v2147
  %v2260 = vpack.c.b16 %v2150, %v2148
  %v2261 = vpack.c.b16 %v2153, %v2151
  %v2262 = vpack.c.b16 %v2154, %v2152
  %v2263 = vpack.c.b16 %v2157, %v2155
  %v2264 = vpack.c.b16 %v2158, %v2156
  %v2265 = vpack.c.b16 %v2161, %v2159
  %v2266 = vpack.c.b16 %v2162, %v2160
  %v2267 = vpack.c.b16 %v2165, %v2163
  %v2268 = vpack.c.b16 %v2166, %v2164
  %v2269 = vpack.c.b16 %v2169, %v2167
  %v2270 = vpack.c.b16 %v2170, %v2168
  %v2271 = vpack.c.b16 %v2173, %v2171
  %v2272 = vpack.c.b16 %v2174, %v2172
  %v2273 = vpack.c.b16 %v2177, %v2175
  %v2274 = vpack.c.b16 %v2178, %v2176
  %v2275 = vpack.c.b16 %v2181, %v2179
  %v2276 = vpack.c.b16 %v2182, %v2180
  %v2277 = vpack.c.b16 %v2185, %v2183
  %v2278 = vpack.c.b16 %v2186, %v2184
  %v2279 = vpack.c.b16 %v2189, %v2187
  %v2280 = vpack.c.b16 %v2190, %v2188
  %v2281 = vpack.c.b16 %v2193, %v2191
  %v2282 = vpack.c.b16 %v2194, %v2192
  %v2283 = vpack.c.b16 %v2197, %v2195
  %v2284 = vpack.c.b16 %v2198, %v2196
  %v2285 = vpack.c.b16 %v2201, %v2199
  %v2286 = vpack.c.b16 %v2202, %v2200
  %v2287 = vpack.c.b16 %v2205, %v2203
  %v2288 = vpack.c.b16 %v2206, %v2204
  %v2289 = vpack.c.b16 %v2209, %v2207
  %v2290 = vpack.c.b16 %v2210, %v2208
  %v2291 = vpack.c.b16 %v2213, %v2211
  %v2292 = vpack.c.b16 %v2214, %v2212
  %v2293 = vpack.c.b16 %v2217, %v2215
  %v2294 = vpack.c.b16 %v2218, %v2216
  %v2295 = vpack.c.b16 %v2221, %v2219
  %v2296 = vpack.c.b16 %v2222, %v2220
  %v2297 = vpack.c.b16 %v2225, %v2223
  %v2298 = vpack.c.b16 %v2226, %v2224
  %v2299 = vpack.c.b16 %v2229, %v2227
  %v2300 = vpack.c.b16 %v2230, %v2228
  %v2301 = vpack.c.b16 %v2233, %v2231
  %v2302 = vpack.c.b16 %v2234, %v2232
  %v2303 = vpack.c.b16 %v2237, %v2235
  %v2304 = vpack.c.b16 %v2238, %v2236
  %v2305 = vpack.c.b16 %v2241, %v2239
  %v2306 = vpack.c.b16 %v2242, %v2240
  %2371 = vmatprep.subr.bf16.mxu0 %v2244
  %2372 = vmatpush1.bf16.msra.mxu0 %v2243
  %2373 = vmatprep.subr.bf16.mxu0 %v2246
  %2374 = vmatpush1.bf16.msra.mxu0 %v2245
  %2375 = vmatprep.subr.bf16.mxu0 %v2248
  %2376 = vmatpush1.bf16.msra.mxu0 %v2247
  %2377 = vmatprep.subr.bf16.mxu0 %v2250
  %2378 = vmatpush1.bf16.msra.mxu0 %v2249
  %2379 = vmatprep.subr.bf16.mxu0 %v2252
  %2380 = vmatpush1.bf16.msra.mxu0 %v2251
  %2381 = vmatprep.subr.bf16.mxu0 %v2254
  %2382 = vmatpush1.bf16.msra.mxu0 %v2253
  %2383 = vmatprep.subr.bf16.mxu0 %v2256
  %2384 = vmatpush1.bf16.msra.mxu0 %v2255
  %2385 = vmatprep.subr.bf16.mxu0 %v2258
  %2386 = vmatpush1.bf16.msra.mxu0 %v2257
  %2387 = vmatprep.subr.bf16.mxu0 %v2260
  %2388 = vmatpush1.bf16.msra.mxu0 %v2259
  %2389 = vmatprep.subr.bf16.mxu0 %v2262
  %2390 = vmatpush1.bf16.msra.mxu0 %v2261
  %2391 = vmatprep.subr.bf16.mxu0 %v2264
  %2392 = vmatpush1.bf16.msra.mxu0 %v2263
  %2393 = vmatprep.subr.bf16.mxu0 %v2266
  %2394 = vmatpush1.bf16.msra.mxu0 %v2265
  %2395 = vmatprep.subr.bf16.mxu0 %v2268
  %2396 = vmatpush1.bf16.msra.mxu0 %v2267
  %2397 = vmatprep.subr.bf16.mxu0 %v2270
  %2398 = vmatpush1.bf16.msra.mxu0 %v2269
  %2399 = vmatprep.subr.bf16.mxu0 %v2272
  %2400 = vmatpush1.bf16.msra.mxu0 %v2271
  %2401 = vmatprep.subr.bf16.mxu0 %v2274
  %2402 = vmatpush1.bf16.msra.mxu0 %v2273
  %2403 = vmatprep.mubr.bf16.mxu0 %v1972
  %2404 = vmatmul.mubr.bf16.gmra.mrb[0].mxu0 %v1971
  %v2405 = vpop.f32.mrb[0].mxu0
  %v2406 = vadd.f32 %v2044, %v2405
  %v2407 = vpop.f32.mrb[0].mxu0
  %v2408 = vadd.f32 %v2048, %v2407
  %v2409 = vpop.f32.mrb[0].mxu0
  %v2410 = vpop.f32.mrb[0].mxu0
  %2411 = vdwg.mxu0
  %2412 = vmatprep.subr.bf16.mxu0 %v2276
  %2413 = vmatpush1.bf16.msra.mxu0 %v2275
  %2414 = vmatprep.subr.bf16.mxu0 %v2278
  %2415 = vmatpush1.bf16.msra.mxu0 %v2277
  %2416 = vmatprep.subr.bf16.mxu0 %v2280
  %2417 = vmatpush1.bf16.msra.mxu0 %v2279
  %2418 = vmatprep.subr.bf16.mxu0 %v2282
  %2419 = vmatpush1.bf16.msra.mxu0 %v2281
  %2420 = vmatprep.subr.bf16.mxu0 %v2284
  %2421 = vmatpush1.bf16.msra.mxu0 %v2283
  %2422 = vmatprep.subr.bf16.mxu0 %v2286
  %2423 = vmatpush1.bf16.msra.mxu0 %v2285
  %2424 = vmatprep.subr.bf16.mxu0 %v2288
  %2425 = vmatpush1.bf16.msra.mxu0 %v2287
  %2426 = vmatprep.subr.bf16.mxu0 %v2290
  %2427 = vmatpush1.bf16.msra.mxu0 %v2289
  %2428 = vmatprep.subr.bf16.mxu0 %v2292
  %2429 = vmatpush1.bf16.msra.mxu0 %v2291
  %2430 = vmatprep.subr.bf16.mxu0 %v2294
  %2431 = vmatpush1.bf16.msra.mxu0 %v2293
  %2432 = vmatprep.subr.bf16.mxu0 %v2296
  %2433 = vmatpush1.bf16.msra.mxu0 %v2295
  %2434 = vmatprep.subr.bf16.mxu0 %v2298
  %2435 = vmatpush1.bf16.msra.mxu0 %v2297
  %2436 = vmatprep.subr.bf16.mxu0 %v2300
  %2437 = vmatpush1.bf16.msra.mxu0 %v2299
  %2438 = vmatprep.subr.bf16.mxu0 %v2302
  %2439 = vmatpush1.bf16.msra.mxu0 %v2301
  %2440 = vmatprep.subr.bf16.mxu0 %v2304
  %2441 = vmatpush1.bf16.msra.mxu0 %v2303
  %2442 = vmatprep.subr.bf16.mxu0 %v2306
  %2443 = vmatpush1.bf16.msra.mxu0 %v2305
  %2444 = vmatprep.mubr.bf16.mxu0 %v1974
  %2445 = vmatmul.mubr.bf16.gmra.mrb[0].mxu0 %v1973
  %v2446 = vpop.f32.mrb[0].mxu0
  %v2447 = vadd.f32 %v2406, %v2446
  %v2448 = vpop.f32.mrb[0].mxu0
  %v2449 = vadd.f32 %v2408, %v2448
  %v2450 = vpop.f32.mrb[0].mxu0
  %v2451 = vpop.f32.mrb[0].mxu0
  %2452 = vdwg.mxu0
  %v2453 = vmax.f32 %v2447, 0.0
  %v2454 = vmax.f32 %v2449, 0.0
  %v2455 = vpack.c.bf16 %v2453, %v2453
  %v2456 = vpack.c.bf16 %v2454, %v2454
  %v2457 = vld [vmem:[%s5] sm:$0xf]
  %v2458 = vld [vmem:[%s5 + $0x4] sm:$0xf]
  %v2459 = vld [vmem:[%s5 + $0x8] sm:$0xf]
  %v2460 = vld [vmem:[%s5 + $0xc] sm:$0xf]
  %v2461 = vld [vmem:[%s5 + $0x10] sm:$0xf]
  %v2462 = vld [vmem:[%s5 + $0x14] sm:$0xf]
  %v2463 = vld [vmem:[%s5 + $0x18] sm:$0xf]
  %v2464 = vld [vmem:[%s5 + $0x1c] sm:$0xf]
  %v2465 = vld [vmem:[%s5 + $0x20] sm:$0xf]
  %v2466 = vld [vmem:[%s5 + $0x24] sm:$0xf]
  %v2467 = vld [vmem:[%s5 + $0x28] sm:$0xf]
  %v2468 = vld [vmem:[%s5 + $0x2c] sm:$0xf]
  %v2469 = vld [vmem:[%s5 + $0x30] sm:$0xf]
  %v2470 = vld [vmem:[%s5 + $0x34] sm:$0xf]
  %v2471 = vld [vmem:[%s5 + $0x38] sm:$0xf]
  %v2472 = vld [vmem:[%s5 + $0x3c] sm:$0xf]
  %v2473 = vld [vmem:[%s5 + $0x40] sm:$0xf]
  %v2474 = vld [vmem:[%s5 + $0x44] sm:$0xf]
  %v2475 = vld [vmem:[%s5 + $0x48] sm:$0xf]
  %v2476 = vld [vmem:[%s5 + $0x4c] sm:$0xf]
  %v2477 = vld [vmem:[%s5 + $0x50] sm:$0xf]
  %v2478 = vld [vmem:[%s5 + $0x54] sm:$0xf]
  %v2479 = vld [vmem:[%s5 + $0x58] sm:$0xf]
  %v2480 = vld [vmem:[%s5 + $0x5c] sm:$0xf]
  %v2481 = vld [vmem:[%s5 + $0x60] sm:$0xf]
  %v2482 = vld [vmem:[%s5 + $0x64] sm:$0xf]
  %v2483 = vld [vmem:[%s5 + $0x68] sm:$0xf]
  %v2484 = vld [vmem:[%s5 + $0x6c] sm:$0xf]
  %v2485 = vld [vmem:[%s5 + $0x70] sm:$0xf]
  %v2486 = vld [vmem:[%s5 + $0x74] sm:$0xf]
  %v2487 = vld [vmem:[%s5 + $0x78] sm:$0xf]
  %v2488 = vld [vmem:[%s5 + $0x7c] sm:$0xf]
  %v2489 = vld [vmem:[%s6] sm:$0x1]
  %v2491 = vlaneseq
  %v2492 = vshrl.u32 %v2491, 7
  %v2493 = vsub.s32 0, %v2492
  %v2494 = vrot.slane %v2489, %v2493
  %v2528 = vunpack.c.l.b16 %v2457
  %v2529 = vunpack.c.l.b16 %v2458
  %v2530 = vunpack.c.l.b16 %v2459
  %v2531 = vunpack.c.l.b16 %v2460
  %v2532 = vunpack.c.l.b16 %v2461
  %v2533 = vunpack.c.l.b16 %v2462
  %v2534 = vunpack.c.l.b16 %v2463
  %v2535 = vunpack.c.l.b16 %v2464
  %v2536 = vunpack.c.l.b16 %v2465
  %v2537 = vunpack.c.l.b16 %v2466
  %v2538 = vunpack.c.l.b16 %v2467
  %v2539 = vunpack.c.l.b16 %v2468
  %v2540 = vunpack.c.l.b16 %v2469
  %v2541 = vunpack.c.l.b16 %v2470
  %v2542 = vunpack.c.l.b16 %v2471
  %v2543 = vunpack.c.l.b16 %v2472
  %v2544 = vunpack.c.l.b16 %v2473
  %v2545 = vunpack.c.l.b16 %v2474
  %v2546 = vunpack.c.l.b16 %v2475
  %v2547 = vunpack.c.l.b16 %v2476
  %v2548 = vunpack.c.l.b16 %v2477
  %v2549 = vunpack.c.l.b16 %v2478
  %v2550 = vunpack.c.l.b16 %v2479
  %v2551 = vunpack.c.l.b16 %v2480
  %v2552 = vunpack.c.l.b16 %v2481
  %v2553 = vunpack.c.l.b16 %v2482
  %v2554 = vunpack.c.l.b16 %v2483
  %v2555 = vunpack.c.l.b16 %v2484
  %v2556 = vunpack.c.l.b16 %v2485
  %v2557 = vunpack.c.l.b16 %v2486
  %v2558 = vunpack.c.l.b16 %v2487
  %v2559 = vunpack.c.l.b16 %v2488
  %v2560 = vpack.c.b16 %v2529, %v2528
  %v2561 = vpack.c.b16 %v2531, %v2530
  %v2562 = vpack.c.b16 %v2533, %v2532
  %v2563 = vpack.c.b16 %v2535, %v2534
  %v2564 = vpack.c.b16 %v2537, %v2536
  %v2565 = vpack.c.b16 %v2539, %v2538
  %v2566 = vpack.c.b16 %v2541, %v2540
  %v2567 = vpack.c.b16 %v2543, %v2542
  %v2568 = vpack.c.b16 %v2545, %v2544
  %v2569 = vpack.c.b16 %v2547, %v2546
  %v2570 = vpack.c.b16 %v2549, %v2548
  %v2571 = vpack.c.b16 %v2551, %v2550
  %v2572 = vpack.c.b16 %v2553, %v2552
  %v2573 = vpack.c.b16 %v2555, %v2554
  %v2574 = vpack.c.b16 %v2557, %v2556
  %v2575 = vpack.c.b16 %v2559, %v2558
  %2592 = vmatprep.subr.bf16.mxu0 0
  %2593 = vmatpush1.bf16.msra.mxu0 %v2560
  %2594 = vmatprep.subr.bf16.mxu0 0
  %2595 = vmatpush1.bf16.msra.mxu0 %v2561
  %2596 = vmatprep.subr.bf16.mxu0 0
  %2597 = vmatpush1.bf16.msra.mxu0 %v2562
  %2598 = vmatprep.subr.bf16.mxu0 0
  %2599 = vmatpush1.bf16.msra.mxu0 %v2563
  %2600 = vmatprep.subr.bf16.mxu0 0
  %2601 = vmatpush1.bf16.msra.mxu0 %v2564
  %2602 = vmatprep.subr.bf16.mxu0 0
  %2603 = vmatpush1.bf16.msra.mxu0 %v2565
  %2604 = vmatprep.subr.bf16.mxu0 0
  %2605 = vmatpush1.bf16.msra.mxu0 %v2566
  %2606 = vmatprep.subr.bf16.mxu0 0
  %2607 = vmatpush1.bf16.msra.mxu0 %v2567
  %2608 = vmatprep.subr.bf16.mxu0 0
  %2609 = vmatpush1.bf16.msra.mxu0 %v2568
  %2610 = vmatprep.subr.bf16.mxu0 0
  %2611 = vmatpush1.bf16.msra.mxu0 %v2569
  %2612 = vmatprep.subr.bf16.mxu0 0
  %2613 = vmatpush1.bf16.msra.mxu0 %v2570
  %2614 = vmatprep.subr.bf16.mxu0 0
  %2615 = vmatpush1.bf16.msra.mxu0 %v2571
  %2616 = vmatprep.subr.bf16.mxu0 0
  %2617 = vmatpush1.bf16.msra.mxu0 %v2572
  %2618 = vmatprep.subr.bf16.mxu0 0
  %2619 = vmatpush1.bf16.msra.mxu0 %v2573
  %2620 = vmatprep.subr.bf16.mxu0 0
  %2621 = vmatpush1.bf16.msra.mxu0 %v2574
  %2622 = vmatprep.subr.bf16.mxu0 0
  %2623 = vmatpush1.bf16.msra.mxu0 %v2575
  %2624 = vmatprep.mubr.bf16.mxu0 %v2456
  %2625 = vmatmul.mubr.bf16.gmra.mrb[0].mxu0 %v2455
  %v2626 = vpop.f32.mrb[0].mxu0
  %v2627 = vadd.f32 %v2494, %v2626
  %v2628 = vpop.f32.mrb[0].mxu0
  %v2629 = vpop.f32.mrb[0].mxu0
  %v2630 = vpop.f32.mrb[0].mxu0
  %2631 = vdwg.mxu0
  %2632 = vst [vmem:[%s7] sm:$0x3] %v2627
  // Predicated region
  $region30: #{tnet_forward.3} parent=0 // pred_check
    _
  $region31: #{tnet_forward.3} parent=0 // pred_check_branch
    %2634 = sbr.rel (0) target = $region33
  $region32: #{tnet_forward.3} parent=0 // pred_region
    _
  $region33: #{tnet_forward.3} parent=0 // pred_fallthru
    _
  // Predicated region
  $region34: #{tnet_forward.3} parent=0 // pred_check
    _
  $region35: #{tnet_forward.3} parent=0 // pred_check_branch
    %2636 = sbr.rel (0) target = $region37
  $region36: #{tnet_forward.3} parent=0 // pred_region
    _
  $region37: #{tnet_forward.3} parent=0 // pred_fallthru
    _

</llo_original>
